<compile_context>
chip_gen: v7x
topology: tpu7x:2x2x1
jax: 0.10.0
libtpu: 0.0.40
codegen_flags: <defaults>
</compile_context>

<pallas_src>
import functools

import jax
import jax.numpy as jnp
from jax.experimental import pallas as pl
from jax.experimental.pallas import tpu as pltpu

STEPS = 3
LN_EPS = 1e-5
LANE = 128               # lane width; narrow dims padded up to this
TARGET_TILE_B = 1024     # batch-tile target (review: 512-2048)
MIN_TILE_B = 128


def _round_up(v, m):
    return ((v + m - 1) // m) * m


def _choose_tile_b(b_pad):
    """Largest 128-multiple tile <= TARGET_TILE_B dividing b_pad; keep >=2 tiles
    when the batch allows it so v7x's two TensorCores both get work."""
    t = min(TARGET_TILE_B, b_pad)
    if b_pad >= 2 * MIN_TILE_B:
        t = min(t, b_pad // 2)
    t = max(MIN_TILE_B, (t // MIN_TILE_B) * MIN_TILE_B)
    while b_pad % t:
        t -= MIN_TILE_B
    return t


def als_kernel(x_ref, idx_ref,
               w_enc_ref, b_enc_ref,
               w1z_ref, gw_tab_ref,
               w2_ref, b2_ref,
               ln_w_ref, ln_b_ref,
               w_dec_ref, b_dec_ref,
               out_ref):
    tb = x_ref.shape[0]
    ng_pad = gw_tab_ref.shape[0]

    # ---- encoder: z = relu(x @ W_enc + b_enc); bf16 MXU, f32 accumulate ----
    z = jnp.dot(x_ref[...], w_enc_ref[...],
                preferred_element_type=jnp.float32) + b_enc_ref[...]
    z = jnp.maximum(z, 0.0)

    # Per-row generator indices for all steps (tiny (tb, STEPS) int32 tile).
    idx = idx_ref[...]
    lane_iota = jax.lax.broadcasted_iota(jnp.int32, (tb, ng_pad), 1)

    # ---- serial chain: z -> relu(z @ W1z + gw_table[idx_s]) @ W2 + b2 ----
    # gw_table already includes the op_net first-layer bias b1.
    for s in range(STEPS):
        onehot = (idx[:, s:s + 1] == lane_iota).astype(jnp.bfloat16)
        gw_s = jnp.dot(onehot, gw_tab_ref[...],
                       preferred_element_type=jnp.float32)
        h = jnp.dot(z.astype(jnp.bfloat16), w1z_ref[...],
                    preferred_element_type=jnp.float32) + gw_s
        h = jnp.maximum(h, 0.0)
        z = jnp.dot(h.astype(jnp.bfloat16), w2_ref[...],
                    preferred_element_type=jnp.float32) + b2_ref[...]

    # ---- LayerNorm over the last dim (f32) ----
    mean = jnp.mean(z, axis=-1, keepdims=True)
    centered = z - mean
    var = jnp.mean(centered * centered, axis=-1, keepdims=True)
    zn = centered * jax.lax.rsqrt(var + LN_EPS)
    zn = zn * ln_w_ref[...] + ln_b_ref[...]

    # ---- decoder into a lane-dense (padded-to-128) output: unmasked vst ----
    out = jnp.dot(zn.astype(jnp.bfloat16), w_dec_ref[...],
                  preferred_element_type=jnp.float32) + b_dec_ref[...]
    out_ref[...] = out.astype(out_ref.dtype)


def _full_spec(shape):
    """Whole-array block, VMEM-resident across the batch grid."""
    nd = len(shape)
    return pl.BlockSpec(shape, lambda i, _nd=nd: (0,) * _nd)


@functools.partial(jax.jit, static_argnames=("num_classes",))
def als_forward(x, g_indices, kp, *, num_classes):
    """x: (B, input_dim) f32.  g_indices: (STEPS, B) int32 generator indices."""
    b, input_dim = x.shape
    latent = kp["w_enc_t"].shape[1]
    # Faithful to the PyTorch module's quirk: LayerNorm(input_dim) on z.
    assert input_dim == latent, "LayerNorm(input_dim) on z requires input_dim == latent_dim"
    c_pad = kp["w_dec_t"].shape[1]

    # Halve the x HBM stream: MXU operands are bf16 anyway.
    x = x.astype(jnp.bfloat16)
    # (STEPS, B) -> (B, STEPS) so each tile's index slab is one dense 2-D block.
    idx = jnp.transpose(g_indices).astype(jnp.int32)

    # Pad batch to a multiple of 128, then pick a large tile that divides it.
    b_pad = _round_up(b, MIN_TILE_B)
    if b_pad != b:
        x = jnp.pad(x, ((0, b_pad - b), (0, 0)))
        idx = jnp.pad(idx, ((0, b_pad - b), (0, 0)))
    tile_b = _choose_tile_b(b_pad)
    grid = (b_pad // tile_b,)

    ng_pad = kp["gw_table"].shape[0]
    flops = int(2 * b_pad * latent
                * (input_dim + STEPS * (ng_pad + 2 * latent) + c_pad))
    bytes_accessed = int(x.size * x.dtype.itemsize
                         + idx.size * idx.dtype.itemsize
                         + sum(v.size * v.dtype.itemsize for v in kp.values())
                         + b_pad * c_pad * 4)

    out = pl.pallas_call(
        als_kernel,
        out_shape=jax.ShapeDtypeStruct((b_pad, c_pad), jnp.float32),
        grid=grid,
        in_specs=[
            pl.BlockSpec((tile_b, input_dim), lambda i: (i, 0)),   # x (bf16)
            pl.BlockSpec((tile_b, STEPS), lambda i: (i, 0)),       # indices (i32)
            _full_spec(kp["w_enc_t"].shape),
            _full_spec(kp["b_enc"].shape),
            _full_spec(kp["w1z_t"].shape),
            _full_spec(kp["gw_table"].shape),
            _full_spec(kp["w2_t"].shape),
            _full_spec(kp["b2"].shape),
            _full_spec(kp["ln_w"].shape),
            _full_spec(kp["ln_b"].shape),
            _full_spec(kp["w_dec_t"].shape),
            _full_spec(kp["b_dec"].shape),
        ],
        out_specs=pl.BlockSpec((tile_b, c_pad), lambda i: (i, 0)),
        compiler_params=pltpu.CompilerParams(
            # batch tiles are independent -> megacore-shardable on v7x
            dimension_semantics=("parallel",),
            # safe on v5e/v6e (128 MiB phys) and v7x (64 MiB phys)
            vmem_limit_bytes=32 * 1024 * 1024,
        ),
        cost_estimate=pl.CostEstimate(
            flops=flops, transcendentals=b_pad, bytes_accessed=bytes_accessed),
    )(
        x, idx,
        kp["w_enc_t"], kp["b_enc"],
        kp["w1z_t"], kp["gw_table"],
        kp["w2_t"], kp["b2"],
        kp["ln_w"], kp["ln_b"],
        kp["w_dec_t"], kp["b_dec"],
    )
    return out[:b, :num_classes]


def init_params(key, input_dim, latent_dim, num_generators, num_classes):
    ks = jax.random.split(key, 8)
    scale = 0.05
    # Linear weights stored pre-transposed: (in_dim, out_dim).
    w_enc_t = scale * jax.random.normal(ks[0], (input_dim, latent_dim), jnp.float32)
    b_enc = scale * jax.random.normal(ks[1], (1, latent_dim), jnp.float32)
    # op_net first layer (2*latent -> latent), split into z-half / g-half.
    w1_t = scale * jax.random.normal(ks[2], (2 * latent_dim, latent_dim), jnp.float32)
    w1z_t, w1g_t = w1_t[:latent_dim], w1_t[latent_dim:]
    b1 = scale * jax.random.normal(ks[3], (1, latent_dim), jnp.float32)
    w2_t = scale * jax.random.normal(ks[4], (latent_dim, latent_dim), jnp.float32)
    b2 = scale * jax.random.normal(ks[5], (1, latent_dim), jnp.float32)
    ln_w = jnp.ones((1, input_dim), jnp.float32)   # LayerNorm(input_dim) params
    ln_b = jnp.zeros((1, input_dim), jnp.float32)
    w_dec_t = scale * jax.random.normal(ks[6], (latent_dim, num_classes), jnp.float32)
    b_dec = scale * jax.random.normal(ks[7], (1, num_classes), jnp.float32)
    generators = jax.random.normal(jax.random.fold_in(key, 99),
                                   (num_generators, latent_dim), jnp.float32)
    params = dict(w_enc_t=w_enc_t, b_enc=b_enc,
                  w1z_t=w1z_t, w1g_t=w1g_t, b1=b1,
                  w2_t=w2_t, b2=b2,
                  ln_w=ln_w, ln_b=ln_b,
                  w_dec_t=w_dec_t, b_dec=b_dec)
    return params, generators


def prepare_kernel_params(params, generators, num_classes):
    """bf16 MXU weights; fold generators@W1g+b1 into a padded gw_table; pad
    decoder columns to a lane multiple (zeros)."""
    latent = params["w_dec_t"].shape[0]
    num_generators = generators.shape[0]

    # Per-generator contribution to the op_net pre-activation (f32, exact),
    # rounded once to bf16 for the in-kernel one-hot gather matmul.
    gw = generators @ params["w1g_t"] + params["b1"]          # (NG, latent) f32
    ng_pad = _round_up(num_generators, LANE)
    gw_table = jnp.zeros((ng_pad, latent), jnp.float32).at[:num_generators].set(gw)

    c_pad = _round_up(num_classes, LANE)
    w_dec_pad = jnp.zeros((latent, c_pad), jnp.float32).at[:, :num_classes].set(params["w_dec_t"])
    b_dec_pad = jnp.zeros((1, c_pad), jnp.float32).at[:, :num_classes].set(params["b_dec"])

    return dict(
        w_enc_t=params["w_enc_t"].astype(jnp.bfloat16),
        b_enc=params["b_enc"],                       # f32 (added to f32 acc)
        w1z_t=params["w1z_t"].astype(jnp.bfloat16),
        gw_table=gw_table.astype(jnp.bfloat16),
        w2_t=params["w2_t"].astype(jnp.bfloat16),
        b2=params["b2"],
        ln_w=params["ln_w"],
        ln_b=params["ln_b"],
        w_dec_t=w_dec_pad.astype(jnp.bfloat16),
        b_dec=b_dec_pad,
    )


def reference_forward(x, g_per_step, params):
    """Pure-JAX f32 reference mirroring the PyTorch forward."""
    z = jnp.maximum(x @ params["w_enc_t"] + params["b_enc"], 0.0)
    for s in range(STEPS):
        g = g_per_step[s]
        h = jnp.maximum(z @ params["w1z_t"] + g @ params["w1g_t"] + params["b1"], 0.0)
        z = h @ params["w2_t"] + params["b2"]
    mean = jnp.mean(z, axis=-1, keepdims=True)
    var = jnp.mean((z - mean) ** 2, axis=-1, keepdims=True)
    zn = (z - mean) / jnp.sqrt(var + LN_EPS)
    zn = zn * params["ln_w"] + params["ln_b"]
    return zn @ params["w_dec_t"] + params["b_dec"]


if __name__ == "__main__":
    # input_dim == latent_dim == 128 (lane-dense; required by the original
    # module's LayerNorm(input_dim) applied to z). Batch 512 -> 2 grid tiles
    # of 256 rows each (tile selection keeps >=2 tiles for v7x megacore).
    B, INPUT_DIM, LATENT_DIM = 512, 128, 128
    NUM_GENERATORS, NUM_CLASSES = 16, 10

    key = jax.random.PRNGKey(0)
    k_param, k_x, k_idx = jax.random.split(key, 3)

    params, generators = init_params(k_param, INPUT_DIM, LATENT_DIM,
                                     NUM_GENERATORS, NUM_CLASSES)
    x = jax.random.normal(k_x, (B, INPUT_DIM), jnp.float32)

    # Emulate torch.randint(0, num_generators, (B,)) per step, deterministically.
    # TODO(synk): torch draws these indices at runtime inside forward(); here
    # they are drawn in the wrapper and fed to the kernel as an int32 stream.
    g_indices = jax.random.randint(k_idx, (STEPS, B), 0, NUM_GENERATORS,
                                   dtype=jnp.int32)

    kparams = prepare_kernel_params(params, generators, NUM_CLASSES)
    out = als_forward(x, g_indices, kparams, num_classes=NUM_CLASSES)
    out = jax.block_until_ready(out)

    g_per_step = generators[g_indices]              # (STEPS, B, LATENT), f32
    ref = reference_forward(x, g_per_step, params)
    assert out.shape == (B, NUM_CLASSES)
    # bf16 MXU operands / bf16 gw_table vs f32 reference -> loosened tolerance.
    assert jnp.allclose(out, ref, atol=5e-2, rtol=5e-2), "mismatch vs JAX reference"

    print("KERNEL_OK")
</pallas_src>

<mosaic_0001>
module attributes {stable_mosaic.version = 11 : i64} {
  func.func @als_kernel(%arg0: i32, %arg1: memref<256x128xbf16, #tpu.memory_space<vmem>>, %arg2: memref<256x3xi32, #tpu.memory_space<vmem>>, %arg3: memref<128x128xbf16, #tpu.memory_space<vmem>>, %arg4: memref<1x128xf32, #tpu.memory_space<vmem>>, %arg5: memref<128x128xbf16, #tpu.memory_space<vmem>>, %arg6: memref<128x128xbf16, #tpu.memory_space<vmem>>, %arg7: memref<128x128xbf16, #tpu.memory_space<vmem>>, %arg8: memref<1x128xf32, #tpu.memory_space<vmem>>, %arg9: memref<1x128xf32, #tpu.memory_space<vmem>>, %arg10: memref<1x128xf32, #tpu.memory_space<vmem>>, %arg11: memref<128x128xbf16, #tpu.memory_space<vmem>>, %arg12: memref<1x128xf32, #tpu.memory_space<vmem>>, %arg13: memref<256x128xf32, #tpu.memory_space<vmem>>) attributes {dimension_semantics = [#tpu.dimension_semantics<parallel>], iteration_bounds = array<i64: 2>, scalar_prefetch = 0 : i64, scratch_operands = 0 : i64, tpu.core_type = #tpu.core_type<tc>, window_params = [{transform_indices = @transform_0, window_bounds = array<i64: 256, 128>}, {transform_indices = @transform_1, window_bounds = array<i64: 256, 3>}, {pipeline_mode = #tpu.pipeline_mode<synchronous>, transform_indices = @transform_2, window_bounds = array<i64: 128, 128>}, {pipeline_mode = #tpu.pipeline_mode<synchronous>, transform_indices = @transform_3, window_bounds = array<i64: 1, 128>}, {pipeline_mode = #tpu.pipeline_mode<synchronous>, transform_indices = @transform_4, window_bounds = array<i64: 128, 128>}, {pipeline_mode = #tpu.pipeline_mode<synchronous>, transform_indices = @transform_5, window_bounds = array<i64: 128, 128>}, {pipeline_mode = #tpu.pipeline_mode<synchronous>, transform_indices = @transform_6, window_bounds = array<i64: 128, 128>}, {pipeline_mode = #tpu.pipeline_mode<synchronous>, transform_indices = @transform_7, window_bounds = array<i64: 1, 128>}, {pipeline_mode = #tpu.pipeline_mode<synchronous>, transform_indices = @transform_8, window_bounds = array<i64: 1, 128>}, {pipeline_mode = #tpu.pipeline_mode<synchronous>, transform_indices = @transform_9, window_bounds = array<i64: 1, 128>}, {pipeline_mode = #tpu.pipeline_mode<synchronous>, transform_indices = @transform_10, window_bounds = array<i64: 128, 128>}, {pipeline_mode = #tpu.pipeline_mode<synchronous>, transform_indices = @transform_11, window_bounds = array<i64: 1, 128>}, {transform_indices = @transform_12, window_bounds = array<i64: 256, 128>}]} {
    %c0 = arith.constant 0 : index
    %c0_0 = arith.constant 0 : index
    %0 = vector.load %arg1[%c0, %c0_0] : memref<256x128xbf16, #tpu.memory_space<vmem>>, vector<256x128xbf16>
    %c0_1 = arith.constant 0 : index
    %c0_2 = arith.constant 0 : index
    %1 = vector.load %arg3[%c0_1, %c0_2] : memref<128x128xbf16, #tpu.memory_space<vmem>>, vector<128x128xbf16>
    %cst = arith.constant dense<0.000000e+00> : vector<256x128xf32>
    %2 = tpu.matmul %0, %1, %cst {dimension_numbers = #tpu.dot_dimension_numbers<[1], [0], [0], [1], [0, 0, 1, 1], [], []>} : vector<256x128xbf16>, vector<128x128xbf16>, vector<256x128xf32> -> vector<256x128xf32>
    %c0_3 = arith.constant 0 : index
    %c0_4 = arith.constant 0 : index
    %3 = vector.load %arg4[%c0_3, %c0_4] : memref<1x128xf32, #tpu.memory_space<vmem>>, vector<1x128xf32>
    %4 = vector.broadcast %3 : vector<1x128xf32> to vector<256x128xf32>
    %5 = arith.addf %2, %4 : vector<256x128xf32>
    %cst_5 = arith.constant 0.000000e+00 : f32
    %6 = vector.broadcast %cst_5 : f32 to vector<256x128xf32>
    %7 = arith.maximumf %5, %6 : vector<256x128xf32>
    %c0_6 = arith.constant 0 : index
    %c0_7 = arith.constant 0 : index
    %8 = vector.load %arg2[%c0_6, %c0_7] : memref<256x3xi32, #tpu.memory_space<vmem>>, vector<256x3xi32>
    %9 = tpu.iota {dimensions = array<i32: 1>} : vector<256x128xi32>
    %10 = vector.extract_strided_slice %8 {offsets = [0, 0], sizes = [256, 1], strides = [1, 1]} : vector<256x3xi32> to vector<256x1xi32>
    %11 = vector.broadcast %10 : vector<256x1xi32> to vector<256x128xi32>
    %12 = arith.cmpi eq, %11, %9 : vector<256x128xi32>
    %13 = arith.extui %12 : vector<256x128xi1> to vector<256x128xi32>
    %14 = arith.sitofp %13 : vector<256x128xi32> to vector<256x128xf32>
    %15 = arith.truncf %14 : vector<256x128xf32> to vector<256x128xbf16>
    %c0_8 = arith.constant 0 : index
    %c0_9 = arith.constant 0 : index
    %16 = vector.load %arg6[%c0_8, %c0_9] : memref<128x128xbf16, #tpu.memory_space<vmem>>, vector<128x128xbf16>
    %cst_10 = arith.constant dense<0.000000e+00> : vector<256x128xf32>
    %17 = tpu.matmul %15, %16, %cst_10 {dimension_numbers = #tpu.dot_dimension_numbers<[1], [0], [0], [1], [0, 0, 1, 1], [], []>} : vector<256x128xbf16>, vector<128x128xbf16>, vector<256x128xf32> -> vector<256x128xf32>
    %18 = arith.truncf %7 : vector<256x128xf32> to vector<256x128xbf16>
    %c0_11 = arith.constant 0 : index
    %c0_12 = arith.constant 0 : index
    %19 = vector.load %arg5[%c0_11, %c0_12] : memref<128x128xbf16, #tpu.memory_space<vmem>>, vector<128x128xbf16>
    %cst_13 = arith.constant dense<0.000000e+00> : vector<256x128xf32>
    %20 = tpu.matmul %18, %19, %cst_13 {dimension_numbers = #tpu.dot_dimension_numbers<[1], [0], [0], [1], [0, 0, 1, 1], [], []>} : vector<256x128xbf16>, vector<128x128xbf16>, vector<256x128xf32> -> vector<256x128xf32>
    %21 = arith.addf %20, %17 : vector<256x128xf32>
    %cst_14 = arith.constant 0.000000e+00 : f32
    %22 = vector.broadcast %cst_14 : f32 to vector<256x128xf32>
    %23 = arith.maximumf %21, %22 : vector<256x128xf32>
    %24 = arith.truncf %23 : vector<256x128xf32> to vector<256x128xbf16>
    %c0_15 = arith.constant 0 : index
    %c0_16 = arith.constant 0 : index
    %25 = vector.load %arg7[%c0_15, %c0_16] : memref<128x128xbf16, #tpu.memory_space<vmem>>, vector<128x128xbf16>
    %cst_17 = arith.constant dense<0.000000e+00> : vector<256x128xf32>
    %26 = tpu.matmul %24, %25, %cst_17 {dimension_numbers = #tpu.dot_dimension_numbers<[1], [0], [0], [1], [0, 0, 1, 1], [], []>} : vector<256x128xbf16>, vector<128x128xbf16>, vector<256x128xf32> -> vector<256x128xf32>
    %c0_18 = arith.constant 0 : index
    %c0_19 = arith.constant 0 : index
    %27 = vector.load %arg8[%c0_18, %c0_19] : memref<1x128xf32, #tpu.memory_space<vmem>>, vector<1x128xf32>
    %28 = vector.broadcast %27 : vector<1x128xf32> to vector<256x128xf32>
    %29 = arith.addf %26, %28 : vector<256x128xf32>
    %30 = vector.extract_strided_slice %8 {offsets = [0, 1], sizes = [256, 1], strides = [1, 1]} : vector<256x3xi32> to vector<256x1xi32>
    %31 = vector.broadcast %30 : vector<256x1xi32> to vector<256x128xi32>
    %32 = arith.cmpi eq, %31, %9 : vector<256x128xi32>
    %33 = arith.extui %32 : vector<256x128xi1> to vector<256x128xi32>
    %34 = arith.sitofp %33 : vector<256x128xi32> to vector<256x128xf32>
    %35 = arith.truncf %34 : vector<256x128xf32> to vector<256x128xbf16>
    %c0_20 = arith.constant 0 : index
    %c0_21 = arith.constant 0 : index
    %36 = vector.load %arg6[%c0_20, %c0_21] : memref<128x128xbf16, #tpu.memory_space<vmem>>, vector<128x128xbf16>
    %cst_22 = arith.constant dense<0.000000e+00> : vector<256x128xf32>
    %37 = tpu.matmul %35, %36, %cst_22 {dimension_numbers = #tpu.dot_dimension_numbers<[1], [0], [0], [1], [0, 0, 1, 1], [], []>} : vector<256x128xbf16>, vector<128x128xbf16>, vector<256x128xf32> -> vector<256x128xf32>
    %38 = arith.truncf %29 : vector<256x128xf32> to vector<256x128xbf16>
    %c0_23 = arith.constant 0 : index
    %c0_24 = arith.constant 0 : index
    %39 = vector.load %arg5[%c0_23, %c0_24] : memref<128x128xbf16, #tpu.memory_space<vmem>>, vector<128x128xbf16>
    %cst_25 = arith.constant dense<0.000000e+00> : vector<256x128xf32>
    %40 = tpu.matmul %38, %39, %cst_25 {dimension_numbers = #tpu.dot_dimension_numbers<[1], [0], [0], [1], [0, 0, 1, 1], [], []>} : vector<256x128xbf16>, vector<128x128xbf16>, vector<256x128xf32> -> vector<256x128xf32>
    %41 = arith.addf %40, %37 : vector<256x128xf32>
    %cst_26 = arith.constant 0.000000e+00 : f32
    %42 = vector.broadcast %cst_26 : f32 to vector<256x128xf32>
    %43 = arith.maximumf %41, %42 : vector<256x128xf32>
    %44 = arith.truncf %43 : vector<256x128xf32> to vector<256x128xbf16>
    %c0_27 = arith.constant 0 : index
    %c0_28 = arith.constant 0 : index
    %45 = vector.load %arg7[%c0_27, %c0_28] : memref<128x128xbf16, #tpu.memory_space<vmem>>, vector<128x128xbf16>
    %cst_29 = arith.constant dense<0.000000e+00> : vector<256x128xf32>
    %46 = tpu.matmul %44, %45, %cst_29 {dimension_numbers = #tpu.dot_dimension_numbers<[1], [0], [0], [1], [0, 0, 1, 1], [], []>} : vector<256x128xbf16>, vector<128x128xbf16>, vector<256x128xf32> -> vector<256x128xf32>
    %c0_30 = arith.constant 0 : index
    %c0_31 = arith.constant 0 : index
    %47 = vector.load %arg8[%c0_30, %c0_31] : memref<1x128xf32, #tpu.memory_space<vmem>>, vector<1x128xf32>
    %48 = vector.broadcast %47 : vector<1x128xf32> to vector<256x128xf32>
    %49 = arith.addf %46, %48 : vector<256x128xf32>
    %50 = vector.extract_strided_slice %8 {offsets = [0, 2], sizes = [256, 1], strides = [1, 1]} : vector<256x3xi32> to vector<256x1xi32>
    %51 = vector.broadcast %50 : vector<256x1xi32> to vector<256x128xi32>
    %52 = arith.cmpi eq, %51, %9 : vector<256x128xi32>
    %53 = arith.extui %52 : vector<256x128xi1> to vector<256x128xi32>
    %54 = arith.sitofp %53 : vector<256x128xi32> to vector<256x128xf32>
    %55 = arith.truncf %54 : vector<256x128xf32> to vector<256x128xbf16>
    %c0_32 = arith.constant 0 : index
    %c0_33 = arith.constant 0 : index
    %56 = vector.load %arg6[%c0_32, %c0_33] : memref<128x128xbf16, #tpu.memory_space<vmem>>, vector<128x128xbf16>
    %cst_34 = arith.constant dense<0.000000e+00> : vector<256x128xf32>
    %57 = tpu.matmul %55, %56, %cst_34 {dimension_numbers = #tpu.dot_dimension_numbers<[1], [0], [0], [1], [0, 0, 1, 1], [], []>} : vector<256x128xbf16>, vector<128x128xbf16>, vector<256x128xf32> -> vector<256x128xf32>
    %58 = arith.truncf %49 : vector<256x128xf32> to vector<256x128xbf16>
    %c0_35 = arith.constant 0 : index
    %c0_36 = arith.constant 0 : index
    %59 = vector.load %arg5[%c0_35, %c0_36] : memref<128x128xbf16, #tpu.memory_space<vmem>>, vector<128x128xbf16>
    %cst_37 = arith.constant dense<0.000000e+00> : vector<256x128xf32>
    %60 = tpu.matmul %58, %59, %cst_37 {dimension_numbers = #tpu.dot_dimension_numbers<[1], [0], [0], [1], [0, 0, 1, 1], [], []>} : vector<256x128xbf16>, vector<128x128xbf16>, vector<256x128xf32> -> vector<256x128xf32>
    %61 = arith.addf %60, %57 : vector<256x128xf32>
    %cst_38 = arith.constant 0.000000e+00 : f32
    %62 = vector.broadcast %cst_38 : f32 to vector<256x128xf32>
    %63 = arith.maximumf %61, %62 : vector<256x128xf32>
    %64 = arith.truncf %63 : vector<256x128xf32> to vector<256x128xbf16>
    %c0_39 = arith.constant 0 : index
    %c0_40 = arith.constant 0 : index
    %65 = vector.load %arg7[%c0_39, %c0_40] : memref<128x128xbf16, #tpu.memory_space<vmem>>, vector<128x128xbf16>
    %cst_41 = arith.constant dense<0.000000e+00> : vector<256x128xf32>
    %66 = tpu.matmul %64, %65, %cst_41 {dimension_numbers = #tpu.dot_dimension_numbers<[1], [0], [0], [1], [0, 0, 1, 1], [], []>} : vector<256x128xbf16>, vector<128x128xbf16>, vector<256x128xf32> -> vector<256x128xf32>
    %c0_42 = arith.constant 0 : index
    %c0_43 = arith.constant 0 : index
    %67 = vector.load %arg8[%c0_42, %c0_43] : memref<1x128xf32, #tpu.memory_space<vmem>>, vector<1x128xf32>
    %68 = vector.broadcast %67 : vector<1x128xf32> to vector<256x128xf32>
    %69 = arith.addf %66, %68 : vector<256x128xf32>
    %cst_44 = arith.constant dense<0.000000e+00> : vector<256xf32>
    %70 = vector.multi_reduction <add>, %69, %cst_44 [1] : vector<256x128xf32> to vector<256xf32>
    %71 = vector.shape_cast %70 : vector<256xf32> to vector<256x1xf32>
    %cst_45 = arith.constant 1.280000e+02 : f32
    %72 = vector.broadcast %cst_45 : f32 to vector<256x1xf32>
    %73 = arith.divf %71, %72 : vector<256x1xf32>
    %74 = vector.broadcast %73 : vector<256x1xf32> to vector<256x128xf32>
    %75 = arith.subf %69, %74 : vector<256x128xf32>
    %76 = arith.mulf %75, %75 : vector<256x128xf32>
    %cst_46 = arith.constant dense<0.000000e+00> : vector<256xf32>
    %77 = vector.multi_reduction <add>, %76, %cst_46 [1] : vector<256x128xf32> to vector<256xf32>
    %78 = vector.shape_cast %77 : vector<256xf32> to vector<256x1xf32>
    %cst_47 = arith.constant 1.280000e+02 : f32
    %79 = vector.broadcast %cst_47 : f32 to vector<256x1xf32>
    %80 = arith.divf %78, %79 : vector<256x1xf32>
    %cst_48 = arith.constant 9.99999974E-6 : f32
    %81 = vector.broadcast %cst_48 : f32 to vector<256x1xf32>
    %82 = arith.addf %80, %81 : vector<256x1xf32>
    %83 = math.rsqrt %82 : vector<256x1xf32>
    %84 = vector.broadcast %83 : vector<256x1xf32> to vector<256x128xf32>
    %85 = arith.mulf %75, %84 : vector<256x128xf32>
    %c0_49 = arith.constant 0 : index
    %c0_50 = arith.constant 0 : index
    %86 = vector.load %arg9[%c0_49, %c0_50] : memref<1x128xf32, #tpu.memory_space<vmem>>, vector<1x128xf32>
    %87 = vector.broadcast %86 : vector<1x128xf32> to vector<256x128xf32>
    %88 = arith.mulf %85, %87 : vector<256x128xf32>
    %c0_51 = arith.constant 0 : index
    %c0_52 = arith.constant 0 : index
    %89 = vector.load %arg10[%c0_51, %c0_52] : memref<1x128xf32, #tpu.memory_space<vmem>>, vector<1x128xf32>
    %90 = vector.broadcast %89 : vector<1x128xf32> to vector<256x128xf32>
    %91 = arith.addf %88, %90 : vector<256x128xf32>
    %92 = arith.truncf %91 : vector<256x128xf32> to vector<256x128xbf16>
    %c0_53 = arith.constant 0 : index
    %c0_54 = arith.constant 0 : index
    %93 = vector.load %arg11[%c0_53, %c0_54] : memref<128x128xbf16, #tpu.memory_space<vmem>>, vector<128x128xbf16>
    %cst_55 = arith.constant dense<0.000000e+00> : vector<256x128xf32>
    %94 = tpu.matmul %92, %93, %cst_55 {dimension_numbers = #tpu.dot_dimension_numbers<[1], [0], [0], [1], [0, 0, 1, 1], [], []>} : vector<256x128xbf16>, vector<128x128xbf16>, vector<256x128xf32> -> vector<256x128xf32>
    %c0_56 = arith.constant 0 : index
    %c0_57 = arith.constant 0 : index
    %95 = vector.load %arg12[%c0_56, %c0_57] : memref<1x128xf32, #tpu.memory_space<vmem>>, vector<1x128xf32>
    %96 = vector.broadcast %95 : vector<1x128xf32> to vector<256x128xf32>
    %97 = arith.addf %94, %96 : vector<256x128xf32>
    %c0_58 = arith.constant 0 : index
    %c0_59 = arith.constant 0 : index
    %98 = vector.load %arg13[%c0_58, %c0_59] : memref<256x128xf32, #tpu.memory_space<vmem>>, vector<256x128xf32>
    tpu.vector_store %arg13[%c0_58, %c0_59], %97 {strides = array<i32>} : memref<256x128xf32, #tpu.memory_space<vmem>>, vector<256x128xf32>,
    return
  }
  func.func @transform_0(%arg0: i32) -> (i32, i32) {
    %c0_i32 = arith.constant 0 : i32
    %c0_i32_0 = arith.constant 0 : i32
    return %arg0, %c0_i32 : i32, i32
  }
  func.func @transform_1(%arg0: i32) -> (i32, i32) {
    %c0_i32 = arith.constant 0 : i32
    %c0_i32_0 = arith.constant 0 : i32
    return %arg0, %c0_i32 : i32, i32
  }
  func.func @transform_2(%arg0: i32) -> (i32, i32) {
    %c0_i32 = arith.constant 0 : i32
    %c0_i32_0 = arith.constant 0 : i32
    %c0_i32_1 = arith.constant 0 : i32
    return %c0_i32, %c0_i32_0 : i32, i32
  }
  func.func @transform_3(%arg0: i32) -> (i32, i32) {
    %c0_i32 = arith.constant 0 : i32
    %c0_i32_0 = arith.constant 0 : i32
    %c0_i32_1 = arith.constant 0 : i32
    return %c0_i32, %c0_i32_0 : i32, i32
  }
  func.func @transform_4(%arg0: i32) -> (i32, i32) {
    %c0_i32 = arith.constant 0 : i32
    %c0_i32_0 = arith.constant 0 : i32
    %c0_i32_1 = arith.constant 0 : i32
    return %c0_i32, %c0_i32_0 : i32, i32
  }
  func.func @transform_5(%arg0: i32) -> (i32, i32) {
    %c0_i32 = arith.constant 0 : i32
    %c0_i32_0 = arith.constant 0 : i32
    %c0_i32_1 = arith.constant 0 : i32
    return %c0_i32, %c0_i32_0 : i32, i32
  }
  func.func @transform_6(%arg0: i32) -> (i32, i32) {
    %c0_i32 = arith.constant 0 : i32
    %c0_i32_0 = arith.constant 0 : i32
    %c0_i32_1 = arith.constant 0 : i32
    return %c0_i32, %c0_i32_0 : i32, i32
  }
  func.func @transform_7(%arg0: i32) -> (i32, i32) {
    %c0_i32 = arith.constant 0 : i32
    %c0_i32_0 = arith.constant 0 : i32
    %c0_i32_1 = arith.constant 0 : i32
    return %c0_i32, %c0_i32_0 : i32, i32
  }
  func.func @transform_8(%arg0: i32) -> (i32, i32) {
    %c0_i32 = arith.constant 0 : i32
    %c0_i32_0 = arith.constant 0 : i32
    %c0_i32_1 = arith.constant 0 : i32
    return %c0_i32, %c0_i32_0 : i32, i32
  }
  func.func @transform_9(%arg0: i32) -> (i32, i32) {
    %c0_i32 = arith.constant 0 : i32
    %c0_i32_0 = arith.constant 0 : i32
    %c0_i32_1 = arith.constant 0 : i32
    return %c0_i32, %c0_i32_0 : i32, i32
  }
  func.func @transform_10(%arg0: i32) -> (i32, i32) {
    %c0_i32 = arith.constant 0 : i32
    %c0_i32_0 = arith.constant 0 : i32
    %c0_i32_1 = arith.constant 0 : i32
    return %c0_i32, %c0_i32_0 : i32, i32
  }
  func.func @transform_11(%arg0: i32) -> (i32, i32) {
    %c0_i32 = arith.constant 0 : i32
    %c0_i32_0 = arith.constant 0 : i32
    %c0_i32_1 = arith.constant 0 : i32
    return %c0_i32, %c0_i32_0 : i32, i32
  }
  func.func @transform_12(%arg0: i32) -> (i32, i32) {
    %c0_i32 = arith.constant 0 : i32
    %c0_i32_0 = arith.constant 0 : i32
    return %arg0, %c0_i32 : i32, i32
  }
}

</mosaic_0001>

<llo_original>
// kernel: als_forward.1
$region0: #{als_forward.1}
  #allocation0 [shape = 'u32[]', space=smem, size = 0x4, offset = 0x4, fixed_abs, tag = 'smem constant byte address 0x4 - core index']
  #allocation1 [shape = 'u32[144,128]{1,0:T(1,128)}', space=vmem, size = 0x12000, scoped, tag = 'internal scratch']
  %s0 = inlined_call_operand.vmem [shape: bf16[512,128], index: 0, kind: input, shape index: {}]
  %s1 = inlined_call_operand.vmem [shape: s32[512,3], index: 1, kind: input, shape index: {}]
  %s2 = inlined_call_operand.vmem [shape: bf16[128,128], index: 2, kind: input, shape index: {}]
  %s3 = inlined_call_operand.vmem [shape: f32[1,128], index: 3, kind: input, shape index: {}]
  %s4 = inlined_call_operand.vmem [shape: bf16[128,128], index: 4, kind: input, shape index: {}]
  %s5 = inlined_call_operand.vmem [shape: bf16[128,128], index: 5, kind: input, shape index: {}]
  %s6 = inlined_call_operand.vmem [shape: bf16[128,128], index: 6, kind: input, shape index: {}]
  %s7 = inlined_call_operand.vmem [shape: f32[1,128], index: 7, kind: input, shape index: {}]
  %s8 = inlined_call_operand.vmem [shape: f32[1,128], index: 8, kind: input, shape index: {}]
  %s9 = inlined_call_operand.vmem [shape: f32[1,128], index: 9, kind: input, shape index: {}]
  %s10 = inlined_call_operand.vmem [shape: bf16[128,128], index: 10, kind: input, shape index: {}]
  %s11 = inlined_call_operand.vmem [shape: f32[1,128], index: 11, kind: input, shape index: {}]
  %s12 = inlined_call_operand.vmem [shape: f32[512,128], index: 12, kind: output, shape index: {}]
  %s13 = sld [smem:[#allocation0]]
  $region81: #{als_forward.1} parent=0
    _
  %s15 = ssub.s32 1, %s13
  %s16 = scalar_select 0, %s15, %s13
  loop: start=0, step=1, limit=4
  $region2: #{als_forward.1} parent=0 // loop_pre_header
    _
  $region3: #{als_forward.1} parent=0 // loop_header
    %s18 = sphi 0, %s22
    %p19 = scmp.ge.s32.totalorder %s18, 4
    %s28 = sphi 0, %s30
    %s31 = sphi 0, %s28
    %s32 = sphi 0, %s31
    %s48 = sphi 0, %s32
    %s54 = sphi 0, %s56
    %s57 = sphi 0, %s54
    %s58 = sphi 0, %s57
    %s74 = sphi 0, %s58
    %s78 = sphi 0, %s78
    %s80 = sphi 0, %s78
    %s81 = sphi 0, %s80
    %s95 = sphi 0, %s81
    %s99 = sphi 0, %s99
    %s101 = sphi 0, %s99
    %s102 = sphi 0, %s101
    %s116 = sphi 0, %s102
    %s120 = sphi 0, %s120
    %s122 = sphi 0, %s120
    %s123 = sphi 0, %s122
    %s137 = sphi 0, %s123
    %s141 = sphi 0, %s141
    %s143 = sphi 0, %s141
    %s144 = sphi 0, %s143
    %s158 = sphi 0, %s144
    %s162 = sphi 0, %s162
    %s164 = sphi 0, %s162
    %s165 = sphi 0, %s164
    %s179 = sphi 0, %s165
    %s183 = sphi 0, %s183
    %s185 = sphi 0, %s183
    %s186 = sphi 0, %s185
    %s200 = sphi 0, %s186
    %s204 = sphi 0, %s204
    %s206 = sphi 0, %s204
    %s207 = sphi 0, %s206
    %s221 = sphi 0, %s207
    %s225 = sphi 0, %s225
    %s227 = sphi 0, %s225
    %s228 = sphi 0, %s227
    %s242 = sphi 0, %s228
    %s246 = sphi 0, %s246
    %s248 = sphi 0, %s246
    %s249 = sphi 0, %s248
    %s263 = sphi 0, %s249
    %s267 = sphi 0, %s267
    %s269 = sphi 0, %s267
    %s270 = sphi 0, %s269
    %s284 = sphi 0, %s270
    %s290 = sphi 0, %s292
    %s293 = sphi 0, %s290
    %s294 = sphi 0, %s293
    %s310 = sphi 0, %s294
  $region4: #{als_forward.1} parent=0 // loop_header_branch
    %21 = sbr.rel (%p19) target = $region8
  $region5: #{als_forward.1} parent=0 // loop_body
    %s23 = ssub.s32 %s18, 1
    %s24 = ssub.s32 %s18, 2
    %s25 = sadd.s32 %s18, 1
    %s26 = ssub.s32 %s18, %s25
    %p27 = scmp.eq.s32.totalorder %s26, 0
    %s29 = sadd.s32 %s28, 1
    %s30 = scalar_select %p27, %s28, %s29
    %p33 = pneg %p27
    %p34 = scmp.eq.s32.totalorder %s18, 1
    %p35 = por %p33, %p34
    %p36 = scmp.ne.s32.totalorder %s28, %s31
    %p37 = scmp.eq.s32.totalorder %s18, 0
    %p38 = por %p36, %p37
    %p39 = scmp.ne.s32.totalorder %s28, %s31
    %p40 = scmp.eq.s32.totalorder %s23, 1
    %p41 = por %p39, %p40
    %p42 = scmp.ne.s32.totalorder %s31, %s32
    %p43 = scmp.eq.s32.totalorder %s23, 0
    %p44 = por %p42, %p43
    %p45 = scmp.ne.s32.totalorder %s31, %s32
    %p46 = scmp.eq.s32.totalorder %s24, 1
    %p47 = por %p45, %p46
    %p49 = scmp.ne.s32.totalorder %s32, %s48
    %p50 = scmp.eq.s32.totalorder %s24, 0
    %p51 = por %p49, %p50
    %s52 = ssub.s32 %s18, %s25
    %p53 = scmp.eq.s32.totalorder %s52, 0
    %s55 = sadd.s32 %s54, 1
    %s56 = scalar_select %p53, %s54, %s55
    %p59 = pneg %p53
    %p60 = scmp.eq.s32.totalorder %s18, 1
    %p61 = por %p59, %p60
    %p62 = scmp.ne.s32.totalorder %s54, %s57
    %p63 = scmp.eq.s32.totalorder %s18, 0
    %p64 = por %p62, %p63
    %p65 = scmp.ne.s32.totalorder %s54, %s57
    %p66 = scmp.eq.s32.totalorder %s23, 1
    %p67 = por %p65, %p66
    %p68 = scmp.ne.s32.totalorder %s57, %s58
    %p69 = scmp.eq.s32.totalorder %s23, 0
    %p70 = por %p68, %p69
    %p71 = scmp.ne.s32.totalorder %s57, %s58
    %p72 = scmp.eq.s32.totalorder %s24, 1
    %p73 = por %p71, %p72
    %p75 = scmp.ne.s32.totalorder %s58, %s74
    %p76 = scmp.eq.s32.totalorder %s24, 0
    %p77 = por %p75, %p76
    %s79 = sadd.s32 %s78, 1
    %p82 = scmp.eq.s32.totalorder %s18, 1
    %p83 = scmp.ne.s32.totalorder %s78, %s80
    %p84 = scmp.eq.s32.totalorder %s18, 0
    %p85 = por %p83, %p84
    %p86 = scmp.ne.s32.totalorder %s78, %s80
    %p87 = scmp.eq.s32.totalorder %s23, 1
    %p88 = por %p86, %p87
    %p89 = scmp.ne.s32.totalorder %s80, %s81
    %p90 = scmp.eq.s32.totalorder %s23, 0
    %p91 = por %p89, %p90
    %p92 = scmp.ne.s32.totalorder %s80, %s81
    %p93 = scmp.eq.s32.totalorder %s24, 1
    %p94 = por %p92, %p93
    %p96 = scmp.ne.s32.totalorder %s81, %s95
    %p97 = scmp.eq.s32.totalorder %s24, 0
    %p98 = por %p96, %p97
    %s100 = sadd.s32 %s99, 1
    %p103 = scmp.eq.s32.totalorder %s18, 1
    %p104 = scmp.ne.s32.totalorder %s99, %s101
    %p105 = scmp.eq.s32.totalorder %s18, 0
    %p106 = por %p104, %p105
    %p107 = scmp.ne.s32.totalorder %s99, %s101
    %p108 = scmp.eq.s32.totalorder %s23, 1
    %p109 = por %p107, %p108
    %p110 = scmp.ne.s32.totalorder %s101, %s102
    %p111 = scmp.eq.s32.totalorder %s23, 0
    %p112 = por %p110, %p111
    %p113 = scmp.ne.s32.totalorder %s101, %s102
    %p114 = scmp.eq.s32.totalorder %s24, 1
    %p115 = por %p113, %p114
    %p117 = scmp.ne.s32.totalorder %s102, %s116
    %p118 = scmp.eq.s32.totalorder %s24, 0
    %p119 = por %p117, %p118
    %s121 = sadd.s32 %s120, 1
    %p124 = scmp.eq.s32.totalorder %s18, 1
    %p125 = scmp.ne.s32.totalorder %s120, %s122
    %p126 = scmp.eq.s32.totalorder %s18, 0
    %p127 = por %p125, %p126
    %p128 = scmp.ne.s32.totalorder %s120, %s122
    %p129 = scmp.eq.s32.totalorder %s23, 1
    %p130 = por %p128, %p129
    %p131 = scmp.ne.s32.totalorder %s122, %s123
    %p132 = scmp.eq.s32.totalorder %s23, 0
    %p133 = por %p131, %p132
    %p134 = scmp.ne.s32.totalorder %s122, %s123
    %p135 = scmp.eq.s32.totalorder %s24, 1
    %p136 = por %p134, %p135
    %p138 = scmp.ne.s32.totalorder %s123, %s137
    %p139 = scmp.eq.s32.totalorder %s24, 0
    %p140 = por %p138, %p139
    %s142 = sadd.s32 %s141, 1
    %p145 = scmp.eq.s32.totalorder %s18, 1
    %p146 = scmp.ne.s32.totalorder %s141, %s143
    %p147 = scmp.eq.s32.totalorder %s18, 0
    %p148 = por %p146, %p147
    %p149 = scmp.ne.s32.totalorder %s141, %s143
    %p150 = scmp.eq.s32.totalorder %s23, 1
    %p151 = por %p149, %p150
    %p152 = scmp.ne.s32.totalorder %s143, %s144
    %p153 = scmp.eq.s32.totalorder %s23, 0
    %p154 = por %p152, %p153
    %p155 = scmp.ne.s32.totalorder %s143, %s144
    %p156 = scmp.eq.s32.totalorder %s24, 1
    %p157 = por %p155, %p156
    %p159 = scmp.ne.s32.totalorder %s144, %s158
    %p160 = scmp.eq.s32.totalorder %s24, 0
    %p161 = por %p159, %p160
    %s163 = sadd.s32 %s162, 1
    %p166 = scmp.eq.s32.totalorder %s18, 1
    %p167 = scmp.ne.s32.totalorder %s162, %s164
    %p168 = scmp.eq.s32.totalorder %s18, 0
    %p169 = por %p167, %p168
    %p170 = scmp.ne.s32.totalorder %s162, %s164
    %p171 = scmp.eq.s32.totalorder %s23, 1
    %p172 = por %p170, %p171
    %p173 = scmp.ne.s32.totalorder %s164, %s165
    %p174 = scmp.eq.s32.totalorder %s23, 0
    %p175 = por %p173, %p174
    %p176 = scmp.ne.s32.totalorder %s164, %s165
    %p177 = scmp.eq.s32.totalorder %s24, 1
    %p178 = por %p176, %p177
    %p180 = scmp.ne.s32.totalorder %s165, %s179
    %p181 = scmp.eq.s32.totalorder %s24, 0
    %p182 = por %p180, %p181
    %s184 = sadd.s32 %s183, 1
    %p187 = scmp.eq.s32.totalorder %s18, 1
    %p188 = scmp.ne.s32.totalorder %s183, %s185
    %p189 = scmp.eq.s32.totalorder %s18, 0
    %p190 = por %p188, %p189
    %p191 = scmp.ne.s32.totalorder %s183, %s185
    %p192 = scmp.eq.s32.totalorder %s23, 1
    %p193 = por %p191, %p192
    %p194 = scmp.ne.s32.totalorder %s185, %s186
    %p195 = scmp.eq.s32.totalorder %s23, 0
    %p196 = por %p194, %p195
    %p197 = scmp.ne.s32.totalorder %s185, %s186
    %p198 = scmp.eq.s32.totalorder %s24, 1
    %p199 = por %p197, %p198
    %p201 = scmp.ne.s32.totalorder %s186, %s200
    %p202 = scmp.eq.s32.totalorder %s24, 0
    %p203 = por %p201, %p202
    %s205 = sadd.s32 %s204, 1
    %p208 = scmp.eq.s32.totalorder %s18, 1
    %p209 = scmp.ne.s32.totalorder %s204, %s206
    %p210 = scmp.eq.s32.totalorder %s18, 0
    %p211 = por %p209, %p210
    %p212 = scmp.ne.s32.totalorder %s204, %s206
    %p213 = scmp.eq.s32.totalorder %s23, 1
    %p214 = por %p212, %p213
    %p215 = scmp.ne.s32.totalorder %s206, %s207
    %p216 = scmp.eq.s32.totalorder %s23, 0
    %p217 = por %p215, %p216
    %p218 = scmp.ne.s32.totalorder %s206, %s207
    %p219 = scmp.eq.s32.totalorder %s24, 1
    %p220 = por %p218, %p219
    %p222 = scmp.ne.s32.totalorder %s207, %s221
    %p223 = scmp.eq.s32.totalorder %s24, 0
    %p224 = por %p222, %p223
    %s226 = sadd.s32 %s225, 1
    %p229 = scmp.eq.s32.totalorder %s18, 1
    %p230 = scmp.ne.s32.totalorder %s225, %s227
    %p231 = scmp.eq.s32.totalorder %s18, 0
    %p232 = por %p230, %p231
    %p233 = scmp.ne.s32.totalorder %s225, %s227
    %p234 = scmp.eq.s32.totalorder %s23, 1
    %p235 = por %p233, %p234
    %p236 = scmp.ne.s32.totalorder %s227, %s228
    %p237 = scmp.eq.s32.totalorder %s23, 0
    %p238 = por %p236, %p237
    %p239 = scmp.ne.s32.totalorder %s227, %s228
    %p240 = scmp.eq.s32.totalorder %s24, 1
    %p241 = por %p239, %p240
    %p243 = scmp.ne.s32.totalorder %s228, %s242
    %p244 = scmp.eq.s32.totalorder %s24, 0
    %p245 = por %p243, %p244
    %s247 = sadd.s32 %s246, 1
    %p250 = scmp.eq.s32.totalorder %s18, 1
    %p251 = scmp.ne.s32.totalorder %s246, %s248
    %p252 = scmp.eq.s32.totalorder %s18, 0
    %p253 = por %p251, %p252
    %p254 = scmp.ne.s32.totalorder %s246, %s248
    %p255 = scmp.eq.s32.totalorder %s23, 1
    %p256 = por %p254, %p255
    %p257 = scmp.ne.s32.totalorder %s248, %s249
    %p258 = scmp.eq.s32.totalorder %s23, 0
    %p259 = por %p257, %p258
    %p260 = scmp.ne.s32.totalorder %s248, %s249
    %p261 = scmp.eq.s32.totalorder %s24, 1
    %p262 = por %p260, %p261
    %p264 = scmp.ne.s32.totalorder %s249, %s263
    %p265 = scmp.eq.s32.totalorder %s24, 0
    %p266 = por %p264, %p265
    %s268 = sadd.s32 %s267, 1
    %p271 = scmp.eq.s32.totalorder %s18, 1
    %p272 = scmp.ne.s32.totalorder %s267, %s269
    %p273 = scmp.eq.s32.totalorder %s18, 0
    %p274 = por %p272, %p273
    %p275 = scmp.ne.s32.totalorder %s267, %s269
    %p276 = scmp.eq.s32.totalorder %s23, 1
    %p277 = por %p275, %p276
    %p278 = scmp.ne.s32.totalorder %s269, %s270
    %p279 = scmp.eq.s32.totalorder %s23, 0
    %p280 = por %p278, %p279
    %p281 = scmp.ne.s32.totalorder %s269, %s270
    %p282 = scmp.eq.s32.totalorder %s24, 1
    %p283 = por %p281, %p282
    %p285 = scmp.ne.s32.totalorder %s270, %s284
    %p286 = scmp.eq.s32.totalorder %s24, 0
    %p287 = por %p285, %p286
    %s288 = ssub.s32 %s18, %s25
    %p289 = scmp.eq.s32.totalorder %s288, 0
    %s291 = sadd.s32 %s290, 1
    %s292 = scalar_select %p289, %s290, %s291
    %p295 = pneg %p289
    %p296 = scmp.eq.s32.totalorder %s18, 1
    %p297 = por %p295, %p296
    %p298 = scmp.ne.s32.totalorder %s290, %s293
    %p299 = scmp.eq.s32.totalorder %s18, 0
    %p300 = por %p298, %p299
    %p301 = scmp.ne.s32.totalorder %s290, %s293
    %p302 = scmp.eq.s32.totalorder %s23, 1
    %p303 = por %p301, %p302
    %p304 = scmp.ne.s32.totalorder %s293, %s294
    %p305 = scmp.eq.s32.totalorder %s23, 0
    %p306 = por %p304, %p305
    %p307 = scmp.ne.s32.totalorder %s293, %s294
    %p308 = scmp.eq.s32.totalorder %s24, 1
    %p309 = por %p307, %p308
    %p311 = scmp.ne.s32.totalorder %s294, %s310
    %p312 = scmp.eq.s32.totalorder %s24, 0
    %p313 = por %p311, %p312
    %p314 = scmp.le.s32.totalorder 1, %s18
    %p315 = scmp.lt.s32.totalorder %s18, 3
    %p316 = pnand %p314, %p315
    %p317 = pneg %p316
    // Predicated region
    $region9: #{als_forward.1} parent=5 // pred_check
      _
    $region10: #{als_forward.1} parent=5 // pred_check_branch
      %319 = sbr.rel (%p316) target = $region12
    $region11: #{als_forward.1} parent=5 // pred_region
      %s320 = ssub.s32 %s18, 1
      // Predicated region
      $region13: #{als_forward.1} parent=11 // pred_check
        %p321 = pneg %p91
      $region14: #{als_forward.1} parent=11 // pred_check_branch
        %323 = sbr.rel (%p321) target = $region16
      $region15: #{als_forward.1} parent=11 // pred_region
        _
      $region16: #{als_forward.1} parent=11 // pred_fallthru
        _
      // Predicated region
      $region17: #{als_forward.1} parent=11 // pred_check
        %p324 = pneg %p112
      $region18: #{als_forward.1} parent=11 // pred_check_branch
        %326 = sbr.rel (%p324) target = $region20
      $region19: #{als_forward.1} parent=11 // pred_region
        _
      $region20: #{als_forward.1} parent=11 // pred_fallthru
        _
      // Predicated region
      $region21: #{als_forward.1} parent=11 // pred_check
        %p327 = pneg %p133
      $region22: #{als_forward.1} parent=11 // pred_check_branch
        %329 = sbr.rel (%p327) target = $region24
      $region23: #{als_forward.1} parent=11 // pred_region
        _
      $region24: #{als_forward.1} parent=11 // pred_fallthru
        _
      // Predicated region
      $region25: #{als_forward.1} parent=11 // pred_check
        %p330 = pneg %p154
      $region26: #{als_forward.1} parent=11 // pred_check_branch
        %332 = sbr.rel (%p330) target = $region28
      $region27: #{als_forward.1} parent=11 // pred_region
        _
      $region28: #{als_forward.1} parent=11 // pred_fallthru
        _
      // Predicated region
      $region29: #{als_forward.1} parent=11 // pred_check
        %p333 = pneg %p175
      $region30: #{als_forward.1} parent=11 // pred_check_branch
        %335 = sbr.rel (%p333) target = $region32
      $region31: #{als_forward.1} parent=11 // pred_region
        _
      $region32: #{als_forward.1} parent=11 // pred_fallthru
        _
      // Predicated region
      $region33: #{als_forward.1} parent=11 // pred_check
        %p336 = pneg %p196
      $region34: #{als_forward.1} parent=11 // pred_check_branch
        %338 = sbr.rel (%p336) target = $region36
      $region35: #{als_forward.1} parent=11 // pred_region
        _
      $region36: #{als_forward.1} parent=11 // pred_fallthru
        _
      // Predicated region
      $region37: #{als_forward.1} parent=11 // pred_check
        %p339 = pneg %p217
      $region38: #{als_forward.1} parent=11 // pred_check_branch
        %341 = sbr.rel (%p339) target = $region40
      $region39: #{als_forward.1} parent=11 // pred_region
        _
      $region40: #{als_forward.1} parent=11 // pred_fallthru
        _
      // Predicated region
      $region41: #{als_forward.1} parent=11 // pred_check
        %p342 = pneg %p238
      $region42: #{als_forward.1} parent=11 // pred_check_branch
        %344 = sbr.rel (%p342) target = $region44
      $region43: #{als_forward.1} parent=11 // pred_region
        _
      $region44: #{als_forward.1} parent=11 // pred_fallthru
        _
      // Predicated region
      $region45: #{als_forward.1} parent=11 // pred_check
        %p345 = pneg %p259
      $region46: #{als_forward.1} parent=11 // pred_check_branch
        %347 = sbr.rel (%p345) target = $region48
      $region47: #{als_forward.1} parent=11 // pred_region
        _
      $region48: #{als_forward.1} parent=11 // pred_fallthru
        _
      // Predicated region
      $region49: #{als_forward.1} parent=11 // pred_check
        %p348 = pneg %p280
      $region50: #{als_forward.1} parent=11 // pred_check_branch
        %350 = sbr.rel (%p348) target = $region52
      $region51: #{als_forward.1} parent=11 // pred_region
        _
      $region52: #{als_forward.1} parent=11 // pred_fallthru
        _
    $region12: #{als_forward.1} parent=5 // pred_fallthru
      _
    %p351 = scmp.lt.s32.totalorder %s18, 2
    // Predicated region
    $region53: #{als_forward.1} parent=5 // pred_check
      %p352 = pneg %p351
    $region54: #{als_forward.1} parent=5 // pred_check_branch
      %354 = sbr.rel (%p352) target = $region56
    $region55: #{als_forward.1} parent=5 // pred_region
      // Predicated region
      $region57: #{als_forward.1} parent=55 // pred_check
        %p355 = pneg %p38
      $region58: #{als_forward.1} parent=55 // pred_check_branch
        %357 = sbr.rel (%p355) target = $region60
      $region59: #{als_forward.1} parent=55 // pred_region
        %s358 = smul.u32 32, %s18
        %p359 = scmp.lt.s32.totalorder %s358, 63
        %s360 = scalar_select %p359, %s358, 63
        %s361 = smul.addr %s360, 4
        %s362 = scalar_lea.vmem %s0, %s361
        %s363 = smul.u32 32, %s18
      $region60: #{als_forward.1} parent=55 // pred_fallthru
        _
      // Predicated region
      $region61: #{als_forward.1} parent=55 // pred_check
        %p364 = pneg %p64
      $region62: #{als_forward.1} parent=55 // pred_check_branch
        %366 = sbr.rel (%p364) target = $region64
      $region63: #{als_forward.1} parent=55 // pred_region
        %s367 = smul.u32 32, %s18
        %p368 = scmp.lt.s32.totalorder %s367, 63
        %s369 = scalar_select %p368, %s367, 63
        %s370 = smul.addr %s369, 8
        %s371 = scalar_lea.vmem %s1, %s370
        %s372 = smul.u32 32, %s18
      $region64: #{als_forward.1} parent=55 // pred_fallthru
        _
    $region56: #{als_forward.1} parent=5 // pred_fallthru
      _
    %p373 = scmp.le.s32.totalorder 1, %s18
    %p374 = scmp.lt.s32.totalorder %s18, 3
    %p375 = pnand %p373, %p374
    %p376 = pneg %p375
    // Predicated region
    $region65: #{als_forward.1} parent=5 // pred_check
      _
    $region66: #{als_forward.1} parent=5 // pred_check_branch
      %378 = sbr.rel (%p375) target = $region68
    $region67: #{als_forward.1} parent=5 // pred_region
      %s379 = ssub.s32 %s18, 1
      %s380 = smul.u32 32, %s23
      %p381 = scmp.lt.s32.totalorder %s380, 63
      %s382 = scalar_select %p381, %s380, 63
      %s383 = smul.addr %s382, 4
      %s384 = scalar_lea.vmem %s0, %s383
      %p385 = pneg %p44
      %p386 = pneg %p41
      %s387 = smul.u32 32, %s23
      %p388 = scmp.lt.s32.totalorder %s387, 63
      %s389 = scalar_select %p388, %s387, 63
      %s390 = smul.addr %s389, 8
      %s391 = scalar_lea.vmem %s1, %s390
      %p392 = pneg %p70
      %p393 = pneg %p67
      %p394 = pneg %p91
      %p395 = pneg %p88
      %p396 = pneg %p112
      %p397 = pneg %p109
      %p398 = pneg %p133
      %p399 = pneg %p130
      %p400 = pneg %p154
      %p401 = pneg %p151
      %p402 = pneg %p175
      %p403 = pneg %p172
      %p404 = pneg %p196
      %p405 = pneg %p193
      %p406 = pneg %p217
      %p407 = pneg %p214
      %p408 = pneg %p238
      %p409 = pneg %p235
      %p410 = pneg %p259
      %p411 = pneg %p256
      %p412 = pneg %p280
      %p413 = pneg %p277
      %p414 = pneg %p306
      %p415 = pneg %p303
      %s416 = smul.u32 32, %s23
      %p417 = scmp.lt.s32.totalorder %s416, 63
      %s418 = scalar_select %p417, %s416, 63
      %s419 = smul.addr %s418, 8
      %s420 = scalar_lea.vmem %s12, %s419
      %s421 = smul.u32 32, %s23
      %p422 = scmp.lt.s32.totalorder %s421, 63
      %s423 = scalar_select %p422, %s421, 63
      %s424 = smul.addr %s423, 4
      %s425 = scalar_lea.vmem %s0, %s424
      %s426 = smul.u32 32, %s23
      %s427 = smul.u32 32, %s23
      %p428 = scmp.lt.s32.totalorder %s427, 63
      %s429 = scalar_select %p428, %s427, 63
      %s430 = smul.addr %s429, 8
      %s431 = scalar_lea.vmem %s1, %s430
      %s432 = smul.u32 32, %s23
      %s433 = smul.u32 32, %s23
      %p434 = scmp.lt.s32.totalorder %s433, 63
      %s435 = scalar_select %p434, %s433, 63
      %s436 = smul.addr %s435, 8
      %s437 = scalar_lea.vmem %s12, %s436
      %s438 = smul.u32 32, %s23
      %v440 = vld [vmem:[%s425] sm:$0xf]
      %v441 = vld [vmem:[%s425 + $0x4] sm:$0xf]
      %v442 = vld [vmem:[%s425 + $0x8] sm:$0xf]
      %v443 = vld [vmem:[%s425 + $0xc] sm:$0xf]
      %v444 = vld [vmem:[%s425 + $0x10] sm:$0xf]
      %v445 = vld [vmem:[%s425 + $0x14] sm:$0xf]
      %v446 = vld [vmem:[%s425 + $0x18] sm:$0xf]
      %v447 = vld [vmem:[%s425 + $0x1c] sm:$0xf]
      %v448 = vld [vmem:[%s425 + $0x20] sm:$0xf]
      %v449 = vld [vmem:[%s425 + $0x24] sm:$0xf]
      %v450 = vld [vmem:[%s425 + $0x28] sm:$0xf]
      %v451 = vld [vmem:[%s425 + $0x2c] sm:$0xf]
      %v452 = vld [vmem:[%s425 + $0x30] sm:$0xf]
      %v453 = vld [vmem:[%s425 + $0x34] sm:$0xf]
      %v454 = vld [vmem:[%s425 + $0x38] sm:$0xf]
      %v455 = vld [vmem:[%s425 + $0x3c] sm:$0xf]
      %v456 = vld [vmem:[%s425 + $0x40] sm:$0xf]
      %v457 = vld [vmem:[%s425 + $0x44] sm:$0xf]
      %v458 = vld [vmem:[%s425 + $0x48] sm:$0xf]
      %v459 = vld [vmem:[%s425 + $0x4c] sm:$0xf]
      %v460 = vld [vmem:[%s425 + $0x50] sm:$0xf]
      %v461 = vld [vmem:[%s425 + $0x54] sm:$0xf]
      %v462 = vld [vmem:[%s425 + $0x58] sm:$0xf]
      %v463 = vld [vmem:[%s425 + $0x5c] sm:$0xf]
      %v464 = vld [vmem:[%s425 + $0x60] sm:$0xf]
      %v465 = vld [vmem:[%s425 + $0x64] sm:$0xf]
      %v466 = vld [vmem:[%s425 + $0x68] sm:$0xf]
      %v467 = vld [vmem:[%s425 + $0x6c] sm:$0xf]
      %v468 = vld [vmem:[%s425 + $0x70] sm:$0xf]
      %v469 = vld [vmem:[%s425 + $0x74] sm:$0xf]
      %v470 = vld [vmem:[%s425 + $0x78] sm:$0xf]
      %v471 = vld [vmem:[%s425 + $0x7c] sm:$0xf]
      %v472 = vld [vmem:[%s2] sm:$0xf]
      %v473 = vld [vmem:[%s2 + $0x4] sm:$0xf]
      %v474 = vld [vmem:[%s2 + $0x8] sm:$0xf]
      %v475 = vld [vmem:[%s2 + $0xc] sm:$0xf]
      %v476 = vld [vmem:[%s2 + $0x10] sm:$0xf]
      %v477 = vld [vmem:[%s2 + $0x14] sm:$0xf]
      %v478 = vld [vmem:[%s2 + $0x18] sm:$0xf]
      %v479 = vld [vmem:[%s2 + $0x1c] sm:$0xf]
      %v480 = vld [vmem:[%s2 + $0x20] sm:$0xf]
      %v481 = vld [vmem:[%s2 + $0x24] sm:$0xf]
      %v482 = vld [vmem:[%s2 + $0x28] sm:$0xf]
      %v483 = vld [vmem:[%s2 + $0x2c] sm:$0xf]
      %v484 = vld [vmem:[%s2 + $0x30] sm:$0xf]
      %v485 = vld [vmem:[%s2 + $0x34] sm:$0xf]
      %v486 = vld [vmem:[%s2 + $0x38] sm:$0xf]
      %v487 = vld [vmem:[%s2 + $0x3c] sm:$0xf]
      %v488 = vld [vmem:[%s3] sm:$0x1]
      %v490 = vlaneseq
      %v491 = vshrl.u32 %v490, 7
      %v492 = vsub.s32 0, %v491
      %v493 = vrot.slane %v488, %v492
      %v527 = vunpack.c.l.b16 %v440
      %v528 = vunpack.c.l.b16 %v441
      %v529 = vunpack.c.l.b16 %v442
      %v530 = vunpack.c.l.b16 %v443
      %v531 = vunpack.c.l.b16 %v444
      %v532 = vunpack.c.l.b16 %v445
      %v533 = vunpack.c.l.b16 %v446
      %v534 = vunpack.c.l.b16 %v447
      %v535 = vunpack.c.l.b16 %v448
      %v536 = vunpack.c.l.b16 %v449
      %v537 = vunpack.c.l.b16 %v450
      %v538 = vunpack.c.l.b16 %v451
      %v539 = vunpack.c.l.b16 %v452
      %v540 = vunpack.c.l.b16 %v453
      %v541 = vunpack.c.l.b16 %v454
      %v542 = vunpack.c.l.b16 %v455
      %v543 = vunpack.c.l.b16 %v456
      %v544 = vunpack.c.l.b16 %v457
      %v545 = vunpack.c.l.b16 %v458
      %v546 = vunpack.c.l.b16 %v459
      %v547 = vunpack.c.l.b16 %v460
      %v548 = vunpack.c.l.b16 %v461
      %v549 = vunpack.c.l.b16 %v462
      %v550 = vunpack.c.l.b16 %v463
      %v551 = vunpack.c.l.b16 %v464
      %v552 = vunpack.c.l.b16 %v465
      %v553 = vunpack.c.l.b16 %v466
      %v554 = vunpack.c.l.b16 %v467
      %v555 = vunpack.c.l.b16 %v468
      %v556 = vunpack.c.l.b16 %v469
      %v557 = vunpack.c.l.b16 %v470
      %v558 = vunpack.c.l.b16 %v471
      %v559 = vpack.c.b16 %v528, %v527
      %v560 = vpack.c.b16 %v530, %v529
      %v561 = vpack.c.b16 %v532, %v531
      %v562 = vpack.c.b16 %v534, %v533
      %v563 = vpack.c.b16 %v536, %v535
      %v564 = vpack.c.b16 %v538, %v537
      %v565 = vpack.c.b16 %v540, %v539
      %v566 = vpack.c.b16 %v542, %v541
      %v567 = vpack.c.b16 %v544, %v543
      %v568 = vpack.c.b16 %v546, %v545
      %v569 = vpack.c.b16 %v548, %v547
      %v570 = vpack.c.b16 %v550, %v549
      %v571 = vpack.c.b16 %v552, %v551
      %v572 = vpack.c.b16 %v554, %v553
      %v573 = vpack.c.b16 %v556, %v555
      %v574 = vpack.c.b16 %v558, %v557
      %v607 = vunpack.c.l.b16 %v472
      %v608 = vunpack.c.l.b16 %v473
      %v609 = vunpack.c.l.b16 %v474
      %v610 = vunpack.c.l.b16 %v475
      %v611 = vunpack.c.l.b16 %v476
      %v612 = vunpack.c.l.b16 %v477
      %v613 = vunpack.c.l.b16 %v478
      %v614 = vunpack.c.l.b16 %v479
      %v615 = vunpack.c.l.b16 %v480
      %v616 = vunpack.c.l.b16 %v481
      %v617 = vunpack.c.l.b16 %v482
      %v618 = vunpack.c.l.b16 %v483
      %v619 = vunpack.c.l.b16 %v484
      %v620 = vunpack.c.l.b16 %v485
      %v621 = vunpack.c.l.b16 %v486
      %v622 = vunpack.c.l.b16 %v487
      %v623 = vpack.c.b16 %v608, %v607
      %v624 = vpack.c.b16 %v610, %v609
      %v625 = vpack.c.b16 %v612, %v611
      %v626 = vpack.c.b16 %v614, %v613
      %v627 = vpack.c.b16 %v616, %v615
      %v628 = vpack.c.b16 %v618, %v617
      %v629 = vpack.c.b16 %v620, %v619
      %v630 = vpack.c.b16 %v622, %v621
      %639 = vmatprep.subr.bf16.mxu0 0
      %640 = vmatpush1.bf16.msra.mxu0 %v623
      %641 = vmatprep.subr.bf16.mxu0 0
      %642 = vmatpush1.bf16.msra.mxu0 %v624
      %643 = vmatprep.subr.bf16.mxu0 0
      %644 = vmatpush1.bf16.msra.mxu0 %v625
      %645 = vmatprep.subr.bf16.mxu0 0
      %646 = vmatpush1.bf16.msra.mxu0 %v626
      %647 = vmatprep.subr.bf16.mxu0 0
      %648 = vmatpush1.bf16.msra.mxu0 %v627
      %649 = vmatprep.subr.bf16.mxu0 0
      %650 = vmatpush1.bf16.msra.mxu0 %v628
      %651 = vmatprep.subr.bf16.mxu0 0
      %652 = vmatpush1.bf16.msra.mxu0 %v629
      %653 = vmatprep.subr.bf16.mxu0 0
      %654 = vmatpush1.bf16.msra.mxu0 %v630
      %655 = vmatprep.subr.bf16.mxu0 0
      %656 = vmatpush1.bf16.msra.mxu0 0
      %657 = vmatprep.subr.bf16.mxu0 0
      %658 = vmatpush1.bf16.msra.mxu0 0
      %659 = vmatprep.subr.bf16.mxu0 0
      %660 = vmatpush1.bf16.msra.mxu0 0
      %661 = vmatprep.subr.bf16.mxu0 0
      %662 = vmatpush1.bf16.msra.mxu0 0
      %663 = vmatprep.subr.bf16.mxu0 0
      %664 = vmatpush1.bf16.msra.mxu0 0
      %665 = vmatprep.subr.bf16.mxu0 0
      %666 = vmatpush1.bf16.msra.mxu0 0
      %667 = vmatprep.subr.bf16.mxu0 0
      %668 = vmatpush1.bf16.msra.mxu0 0
      %669 = vmatprep.subr.bf16.mxu0 0
      %670 = vmatpush1.bf16.msra.mxu0 0
      %671 = vmatprep.mubr.bf16.mxu0 0
      %672 = vmatmul.mubr.bf16.gmra.mrb[0].mxu0 %v559
      %v673 = vpop.f32.mrb[0].mxu0
      %v674 = vadd.f32 %v493, %v673
      %v675 = vpop.f32.mrb[0].mxu0
      %v676 = vpop.f32.mrb[0].mxu0
      %v677 = vadd.f32 %v493, %v676
      %v678 = vpop.f32.mrb[0].mxu0
      %679 = vmatprep.mubr.bf16.mxu0 0
      %680 = vmatmul.mubr.bf16.gmra.mrb[0].mxu0 %v560
      %v681 = vpop.f32.mrb[0].mxu0
      %v682 = vadd.f32 %v493, %v681
      %v683 = vpop.f32.mrb[0].mxu0
      %v684 = vpop.f32.mrb[0].mxu0
      %v685 = vadd.f32 %v493, %v684
      %v686 = vpop.f32.mrb[0].mxu0
      %687 = vmatprep.mubr.bf16.mxu0 0
      %688 = vmatmul.mubr.bf16.gmra.mrb[0].mxu0 %v561
      %v689 = vpop.f32.mrb[0].mxu0
      %v690 = vadd.f32 %v493, %v689
      %v691 = vpop.f32.mrb[0].mxu0
      %v692 = vpop.f32.mrb[0].mxu0
      %v693 = vadd.f32 %v493, %v692
      %v694 = vpop.f32.mrb[0].mxu0
      %695 = vmatprep.mubr.bf16.mxu0 0
      %696 = vmatmul.mubr.bf16.gmra.mrb[0].mxu0 %v562
      %v697 = vpop.f32.mrb[0].mxu0
      %v698 = vadd.f32 %v493, %v697
      %v699 = vpop.f32.mrb[0].mxu0
      %v700 = vpop.f32.mrb[0].mxu0
      %v701 = vadd.f32 %v493, %v700
      %v702 = vpop.f32.mrb[0].mxu0
      %703 = vmatprep.mubr.bf16.mxu0 0
      %704 = vmatmul.mubr.bf16.gmra.mrb[0].mxu0 %v563
      %v705 = vpop.f32.mrb[0].mxu0
      %v706 = vadd.f32 %v493, %v705
      %v707 = vpop.f32.mrb[0].mxu0
      %v708 = vpop.f32.mrb[0].mxu0
      %v709 = vadd.f32 %v493, %v708
      %v710 = vpop.f32.mrb[0].mxu0
      %711 = vmatprep.mubr.bf16.mxu0 0
      %712 = vmatmul.mubr.bf16.gmra.mrb[0].mxu0 %v564
      %v713 = vpop.f32.mrb[0].mxu0
      %v714 = vadd.f32 %v493, %v713
      %v715 = vpop.f32.mrb[0].mxu0
      %v716 = vpop.f32.mrb[0].mxu0
      %v717 = vadd.f32 %v493, %v716
      %v718 = vpop.f32.mrb[0].mxu0
      %719 = vmatprep.mubr.bf16.mxu0 0
      %720 = vmatmul.mubr.bf16.gmra.mrb[0].mxu0 %v565
      %v721 = vpop.f32.mrb[0].mxu0
      %v722 = vadd.f32 %v493, %v721
      %v723 = vpop.f32.mrb[0].mxu0
      %v724 = vpop.f32.mrb[0].mxu0
      %v725 = vadd.f32 %v493, %v724
      %v726 = vpop.f32.mrb[0].mxu0
      %727 = vmatprep.mubr.bf16.mxu0 0
      %728 = vmatmul.mubr.bf16.gmra.mrb[0].mxu0 %v566
      %v729 = vpop.f32.mrb[0].mxu0
      %v730 = vadd.f32 %v493, %v729
      %v731 = vpop.f32.mrb[0].mxu0
      %v732 = vpop.f32.mrb[0].mxu0
      %v733 = vadd.f32 %v493, %v732
      %v734 = vpop.f32.mrb[0].mxu0
      %735 = vmatprep.mubr.bf16.mxu0 0
      %736 = vmatmul.mubr.bf16.gmra.mrb[0].mxu0 %v567
      %v737 = vpop.f32.mrb[0].mxu0
      %v738 = vadd.f32 %v493, %v737
      %v739 = vpop.f32.mrb[0].mxu0
      %v740 = vpop.f32.mrb[0].mxu0
      %v741 = vadd.f32 %v493, %v740
      %v742 = vpop.f32.mrb[0].mxu0
      %743 = vmatprep.mubr.bf16.mxu0 0
      %744 = vmatmul.mubr.bf16.gmra.mrb[0].mxu0 %v568
      %v745 = vpop.f32.mrb[0].mxu0
      %v746 = vadd.f32 %v493, %v745
      %v747 = vpop.f32.mrb[0].mxu0
      %v748 = vpop.f32.mrb[0].mxu0
      %v749 = vadd.f32 %v493, %v748
      %v750 = vpop.f32.mrb[0].mxu0
      %751 = vmatprep.mubr.bf16.mxu0 0
      %752 = vmatmul.mubr.bf16.gmra.mrb[0].mxu0 %v569
      %v753 = vpop.f32.mrb[0].mxu0
      %v754 = vadd.f32 %v493, %v753
      %v755 = vpop.f32.mrb[0].mxu0
      %v756 = vpop.f32.mrb[0].mxu0
      %v757 = vadd.f32 %v493, %v756
      %v758 = vpop.f32.mrb[0].mxu0
      %759 = vmatprep.mubr.bf16.mxu0 0
      %760 = vmatmul.mubr.bf16.gmra.mrb[0].mxu0 %v570
      %v761 = vpop.f32.mrb[0].mxu0
      %v762 = vadd.f32 %v493, %v761
      %v763 = vpop.f32.mrb[0].mxu0
      %v764 = vpop.f32.mrb[0].mxu0
      %v765 = vadd.f32 %v493, %v764
      %v766 = vpop.f32.mrb[0].mxu0
      %767 = vmatprep.mubr.bf16.mxu0 0
      %768 = vmatmul.mubr.bf16.gmra.mrb[0].mxu0 %v571
      %v769 = vpop.f32.mrb[0].mxu0
      %v770 = vadd.f32 %v493, %v769
      %v771 = vpop.f32.mrb[0].mxu0
      %v772 = vpop.f32.mrb[0].mxu0
      %v773 = vadd.f32 %v493, %v772
      %v774 = vpop.f32.mrb[0].mxu0
      %775 = vmatprep.mubr.bf16.mxu0 0
      %776 = vmatmul.mubr.bf16.gmra.mrb[0].mxu0 %v572
      %v777 = vpop.f32.mrb[0].mxu0
      %v778 = vadd.f32 %v493, %v777
      %v779 = vpop.f32.mrb[0].mxu0
      %v780 = vpop.f32.mrb[0].mxu0
      %v781 = vadd.f32 %v493, %v780
      %v782 = vpop.f32.mrb[0].mxu0
      %783 = vmatprep.mubr.bf16.mxu0 0
      %784 = vmatmul.mubr.bf16.gmra.mrb[0].mxu0 %v573
      %v785 = vpop.f32.mrb[0].mxu0
      %v786 = vadd.f32 %v493, %v785
      %v787 = vpop.f32.mrb[0].mxu0
      %v788 = vpop.f32.mrb[0].mxu0
      %v789 = vadd.f32 %v493, %v788
      %v790 = vpop.f32.mrb[0].mxu0
      %791 = vmatprep.mubr.bf16.mxu0 0
      %792 = vmatmul.mubr.bf16.gmra.mrb[0].mxu0 %v574
      %v793 = vpop.f32.mrb[0].mxu0
      %v794 = vadd.f32 %v493, %v793
      %v795 = vpop.f32.mrb[0].mxu0
      %v796 = vpop.f32.mrb[0].mxu0
      %v797 = vadd.f32 %v493, %v796
      %v798 = vpop.f32.mrb[0].mxu0
      %799 = vdwg.mxu0
      %v800 = vmax.f32 %v674, 0.0
      %v801 = vmax.f32 %v677, 0.0
      %v802 = vmax.f32 %v682, 0.0
      %v803 = vmax.f32 %v685, 0.0
      %v804 = vmax.f32 %v690, 0.0
      %v805 = vmax.f32 %v693, 0.0
      %v806 = vmax.f32 %v698, 0.0
      %v807 = vmax.f32 %v701, 0.0
      %v808 = vmax.f32 %v706, 0.0
      %v809 = vmax.f32 %v709, 0.0
      %v810 = vmax.f32 %v714, 0.0
      %v811 = vmax.f32 %v717, 0.0
      %v812 = vmax.f32 %v722, 0.0
      %v813 = vmax.f32 %v725, 0.0
      %v814 = vmax.f32 %v730, 0.0
      %v815 = vmax.f32 %v733, 0.0
      %v816 = vmax.f32 %v738, 0.0
      %v817 = vmax.f32 %v741, 0.0
      %v818 = vmax.f32 %v746, 0.0
      %v819 = vmax.f32 %v749, 0.0
      %v820 = vmax.f32 %v754, 0.0
      %v821 = vmax.f32 %v757, 0.0
      %v822 = vmax.f32 %v762, 0.0
      %v823 = vmax.f32 %v765, 0.0
      %v824 = vmax.f32 %v770, 0.0
      %v825 = vmax.f32 %v773, 0.0
      %v826 = vmax.f32 %v778, 0.0
      %v827 = vmax.f32 %v781, 0.0
      %v828 = vmax.f32 %v786, 0.0
      %v829 = vmax.f32 %v789, 0.0
      %v830 = vmax.f32 %v794, 0.0
      %v831 = vmax.f32 %v797, 0.0
      %v832 = vld [vmem:[%s431] sm:$0xff]
      %v833 = vld [vmem:[%s431 + $0x8] sm:$0xff]
      %v834 = vld [vmem:[%s431 + $0x10] sm:$0xff]
      %v835 = vld [vmem:[%s431 + $0x18] sm:$0xff]
      %v836 = vld [vmem:[%s431 + $0x20] sm:$0xff]
      %v837 = vld [vmem:[%s431 + $0x28] sm:$0xff]
      %v838 = vld [vmem:[%s431 + $0x30] sm:$0xff]
      %v839 = vld [vmem:[%s431 + $0x38] sm:$0xff]
      %v840 = vld [vmem:[%s431 + $0x40] sm:$0xff]
      %v841 = vld [vmem:[%s431 + $0x48] sm:$0xff]
      %v842 = vld [vmem:[%s431 + $0x50] sm:$0xff]
      %v843 = vld [vmem:[%s431 + $0x58] sm:$0xff]
      %v844 = vld [vmem:[%s431 + $0x60] sm:$0xff]
      %v845 = vld [vmem:[%s431 + $0x68] sm:$0xff]
      %v846 = vld [vmem:[%s431 + $0x70] sm:$0xff]
      %v847 = vld [vmem:[%s431 + $0x78] sm:$0xff]
      %v848 = vld [vmem:[%s431 + $0x80] sm:$0xff]
      %v849 = vld [vmem:[%s431 + $0x88] sm:$0xff]
      %v850 = vld [vmem:[%s431 + $0x90] sm:$0xff]
      %v851 = vld [vmem:[%s431 + $0x98] sm:$0xff]
      %v852 = vld [vmem:[%s431 + $0xa0] sm:$0xff]
      %v853 = vld [vmem:[%s431 + $0xa8] sm:$0xff]
      %v854 = vld [vmem:[%s431 + $0xb0] sm:$0xff]
      %v855 = vld [vmem:[%s431 + $0xb8] sm:$0xff]
      %v856 = vld [vmem:[%s431 + $0xc0] sm:$0xff]
      %v857 = vld [vmem:[%s431 + $0xc8] sm:$0xff]
      %v858 = vld [vmem:[%s431 + $0xd0] sm:$0xff]
      %v859 = vld [vmem:[%s431 + $0xd8] sm:$0xff]
      %v860 = vld [vmem:[%s431 + $0xe0] sm:$0xff]
      %v861 = vld [vmem:[%s431 + $0xe8] sm:$0xff]
      %v862 = vld [vmem:[%s431 + $0xf0] sm:$0xff]
      %v863 = vld [vmem:[%s431 + $0xf8] sm:$0xff]
      %v864 = vlaneseq
      %v865 = vand.u32 %v864, 127
      %866 = vset.pattern.permute.xlu0 0
      %867 = vperm.xlu0 %866, %v832
      %v868 = vpop.permute.xlu0 %867
      %869 = vset.pattern.permute.xlu0 0
      %870 = vperm.xlu0 %869, %v833
      %v871 = vpop.permute.xlu0 %870
      %872 = vset.pattern.permute.xlu0 0
      %873 = vperm.xlu0 %872, %v834
      %v874 = vpop.permute.xlu0 %873
      %875 = vset.pattern.permute.xlu0 0
      %876 = vperm.xlu0 %875, %v835
      %v877 = vpop.permute.xlu0 %876
      %878 = vset.pattern.permute.xlu0 0
      %879 = vperm.xlu0 %878, %v836
      %v880 = vpop.permute.xlu0 %879
      %881 = vset.pattern.permute.xlu0 0
      %882 = vperm.xlu0 %881, %v837
      %v883 = vpop.permute.xlu0 %882
      %884 = vset.pattern.permute.xlu0 0
      %885 = vperm.xlu0 %884, %v838
      %v886 = vpop.permute.xlu0 %885
      %887 = vset.pattern.permute.xlu0 0
      %888 = vperm.xlu0 %887, %v839
      %v889 = vpop.permute.xlu0 %888
      %890 = vset.pattern.permute.xlu0 0
      %891 = vperm.xlu0 %890, %v840
      %v892 = vpop.permute.xlu0 %891
      %893 = vset.pattern.permute.xlu0 0
      %894 = vperm.xlu0 %893, %v841
      %v895 = vpop.permute.xlu0 %894
      %896 = vset.pattern.permute.xlu0 0
      %897 = vperm.xlu0 %896, %v842
      %v898 = vpop.permute.xlu0 %897
      %899 = vset.pattern.permute.xlu0 0
      %900 = vperm.xlu0 %899, %v843
      %v901 = vpop.permute.xlu0 %900
      %902 = vset.pattern.permute.xlu0 0
      %903 = vperm.xlu0 %902, %v844
      %v904 = vpop.permute.xlu0 %903
      %905 = vset.pattern.permute.xlu0 0
      %906 = vperm.xlu0 %905, %v845
      %v907 = vpop.permute.xlu0 %906
      %908 = vset.pattern.permute.xlu0 0
      %909 = vperm.xlu0 %908, %v846
      %v910 = vpop.permute.xlu0 %909
      %911 = vset.pattern.permute.xlu0 0
      %912 = vperm.xlu0 %911, %v847
      %v913 = vpop.permute.xlu0 %912
      %914 = vset.pattern.permute.xlu0 0
      %915 = vperm.xlu0 %914, %v848
      %v916 = vpop.permute.xlu0 %915
      %917 = vset.pattern.permute.xlu0 0
      %918 = vperm.xlu0 %917, %v849
      %v919 = vpop.permute.xlu0 %918
      %920 = vset.pattern.permute.xlu0 0
      %921 = vperm.xlu0 %920, %v850
      %v922 = vpop.permute.xlu0 %921
      %923 = vset.pattern.permute.xlu0 0
      %924 = vperm.xlu0 %923, %v851
      %v925 = vpop.permute.xlu0 %924
      %926 = vset.pattern.permute.xlu0 0
      %927 = vperm.xlu0 %926, %v852
      %v928 = vpop.permute.xlu0 %927
      %929 = vset.pattern.permute.xlu0 0
      %930 = vperm.xlu0 %929, %v853
      %v931 = vpop.permute.xlu0 %930
      %932 = vset.pattern.permute.xlu0 0
      %933 = vperm.xlu0 %932, %v854
      %v934 = vpop.permute.xlu0 %933
      %935 = vset.pattern.permute.xlu0 0
      %936 = vperm.xlu0 %935, %v855
      %v937 = vpop.permute.xlu0 %936
      %938 = vset.pattern.permute.xlu0 0
      %939 = vperm.xlu0 %938, %v856
      %v940 = vpop.permute.xlu0 %939
      %941 = vset.pattern.permute.xlu0 0
      %942 = vperm.xlu0 %941, %v857
      %v943 = vpop.permute.xlu0 %942
      %944 = vset.pattern.permute.xlu0 0
      %945 = vperm.xlu0 %944, %v858
      %v946 = vpop.permute.xlu0 %945
      %947 = vset.pattern.permute.xlu0 0
      %948 = vperm.xlu0 %947, %v859
      %v949 = vpop.permute.xlu0 %948
      %950 = vset.pattern.permute.xlu0 0
      %951 = vperm.xlu0 %950, %v860
      %v952 = vpop.permute.xlu0 %951
      %953 = vset.pattern.permute.xlu0 0
      %954 = vperm.xlu0 %953, %v861
      %v955 = vpop.permute.xlu0 %954
      %956 = vset.pattern.permute.xlu0 0
      %957 = vperm.xlu0 %956, %v862
      %v958 = vpop.permute.xlu0 %957
      %959 = vset.pattern.permute.xlu0 0
      %960 = vperm.xlu0 %959, %v863
      %v961 = vpop.permute.xlu0 %960
      %vm962 = vcmp.eq.s32.totalorder %v868, %v865
      %vm963 = vcmp.eq.s32.totalorder %v871, %v865
      %vm964 = vcmp.eq.s32.totalorder %v874, %v865
      %vm965 = vcmp.eq.s32.totalorder %v877, %v865
      %vm966 = vcmp.eq.s32.totalorder %v880, %v865
      %vm967 = vcmp.eq.s32.totalorder %v883, %v865
      %vm968 = vcmp.eq.s32.totalorder %v886, %v865
      %vm969 = vcmp.eq.s32.totalorder %v889, %v865
      %vm970 = vcmp.eq.s32.totalorder %v892, %v865
      %vm971 = vcmp.eq.s32.totalorder %v895, %v865
      %vm972 = vcmp.eq.s32.totalorder %v898, %v865
      %vm973 = vcmp.eq.s32.totalorder %v901, %v865
      %vm974 = vcmp.eq.s32.totalorder %v904, %v865
      %vm975 = vcmp.eq.s32.totalorder %v907, %v865
      %vm976 = vcmp.eq.s32.totalorder %v910, %v865
      %vm977 = vcmp.eq.s32.totalorder %v913, %v865
      %vm978 = vcmp.eq.s32.totalorder %v916, %v865
      %vm979 = vcmp.eq.s32.totalorder %v919, %v865
      %vm980 = vcmp.eq.s32.totalorder %v922, %v865
      %vm981 = vcmp.eq.s32.totalorder %v925, %v865
      %vm982 = vcmp.eq.s32.totalorder %v928, %v865
      %vm983 = vcmp.eq.s32.totalorder %v931, %v865
      %vm984 = vcmp.eq.s32.totalorder %v934, %v865
      %vm985 = vcmp.eq.s32.totalorder %v937, %v865
      %vm986 = vcmp.eq.s32.totalorder %v940, %v865
      %vm987 = vcmp.eq.s32.totalorder %v943, %v865
      %vm988 = vcmp.eq.s32.totalorder %v946, %v865
      %vm989 = vcmp.eq.s32.totalorder %v949, %v865
      %vm990 = vcmp.eq.s32.totalorder %v952, %v865
      %vm991 = vcmp.eq.s32.totalorder %v955, %v865
      %vm992 = vcmp.eq.s32.totalorder %v958, %v865
      %vm993 = vcmp.eq.s32.totalorder %v961, %v865
      %v994 = vsel %vm962, 1, 0
      %v995 = vsel %vm963, 1, 0
      %v996 = vsel %vm964, 1, 0
      %v997 = vsel %vm965, 1, 0
      %v998 = vsel %vm966, 1, 0
      %v999 = vsel %vm967, 1, 0
      %v1000 = vsel %vm968, 1, 0
      %v1001 = vsel %vm969, 1, 0
      %v1002 = vsel %vm970, 1, 0
      %v1003 = vsel %vm971, 1, 0
      %v1004 = vsel %vm972, 1, 0
      %v1005 = vsel %vm973, 1, 0
      %v1006 = vsel %vm974, 1, 0
      %v1007 = vsel %vm975, 1, 0
      %v1008 = vsel %vm976, 1, 0
      %v1009 = vsel %vm977, 1, 0
      %v1010 = vsel %vm978, 1, 0
      %v1011 = vsel %vm979, 1, 0
      %v1012 = vsel %vm980, 1, 0
      %v1013 = vsel %vm981, 1, 0
      %v1014 = vsel %vm982, 1, 0
      %v1015 = vsel %vm983, 1, 0
      %v1016 = vsel %vm984, 1, 0
      %v1017 = vsel %vm985, 1, 0
      %v1018 = vsel %vm986, 1, 0
      %v1019 = vsel %vm987, 1, 0
      %v1020 = vsel %vm988, 1, 0
      %v1021 = vsel %vm989, 1, 0
      %v1022 = vsel %vm990, 1, 0
      %v1023 = vsel %vm991, 1, 0
      %v1024 = vsel %vm992, 1, 0
      %v1025 = vsel %vm993, 1, 0
      %v1026 = vcvt.s32.f32 %v994
      %v1027 = vcvt.s32.f32 %v995
      %v1028 = vcvt.s32.f32 %v996
      %v1029 = vcvt.s32.f32 %v997
      %v1030 = vcvt.s32.f32 %v998
      %v1031 = vcvt.s32.f32 %v999
      %v1032 = vcvt.s32.f32 %v1000
      %v1033 = vcvt.s32.f32 %v1001
      %v1034 = vcvt.s32.f32 %v1002
      %v1035 = vcvt.s32.f32 %v1003
      %v1036 = vcvt.s32.f32 %v1004
      %v1037 = vcvt.s32.f32 %v1005
      %v1038 = vcvt.s32.f32 %v1006
      %v1039 = vcvt.s32.f32 %v1007
      %v1040 = vcvt.s32.f32 %v1008
      %v1041 = vcvt.s32.f32 %v1009
      %v1042 = vcvt.s32.f32 %v1010
      %v1043 = vcvt.s32.f32 %v1011
      %v1044 = vcvt.s32.f32 %v1012
      %v1045 = vcvt.s32.f32 %v1013
      %v1046 = vcvt.s32.f32 %v1014
      %v1047 = vcvt.s32.f32 %v1015
      %v1048 = vcvt.s32.f32 %v1016
      %v1049 = vcvt.s32.f32 %v1017
      %v1050 = vcvt.s32.f32 %v1018
      %v1051 = vcvt.s32.f32 %v1019
      %v1052 = vcvt.s32.f32 %v1020
      %v1053 = vcvt.s32.f32 %v1021
      %v1054 = vcvt.s32.f32 %v1022
      %v1055 = vcvt.s32.f32 %v1023
      %v1056 = vcvt.s32.f32 %v1024
      %v1057 = vcvt.s32.f32 %v1025
      %v1058 = vpack.c.bf16 %v1027, %v1026
      %v1059 = vpack.c.bf16 %v1029, %v1028
      %v1060 = vpack.c.bf16 %v1031, %v1030
      %v1061 = vpack.c.bf16 %v1033, %v1032
      %v1062 = vpack.c.bf16 %v1035, %v1034
      %v1063 = vpack.c.bf16 %v1037, %v1036
      %v1064 = vpack.c.bf16 %v1039, %v1038
      %v1065 = vpack.c.bf16 %v1041, %v1040
      %v1066 = vpack.c.bf16 %v1043, %v1042
      %v1067 = vpack.c.bf16 %v1045, %v1044
      %v1068 = vpack.c.bf16 %v1047, %v1046
      %v1069 = vpack.c.bf16 %v1049, %v1048
      %v1070 = vpack.c.bf16 %v1051, %v1050
      %v1071 = vpack.c.bf16 %v1053, %v1052
      %v1072 = vpack.c.bf16 %v1055, %v1054
      %v1073 = vpack.c.bf16 %v1057, %v1056
      %v1074 = vld [vmem:[%s5] sm:$0xf]
      %v1075 = vld [vmem:[%s5 + $0x4] sm:$0xf]
      %v1076 = vld [vmem:[%s5 + $0x8] sm:$0xf]
      %v1077 = vld [vmem:[%s5 + $0xc] sm:$0xf]
      %v1078 = vld [vmem:[%s5 + $0x10] sm:$0xf]
      %v1079 = vld [vmem:[%s5 + $0x14] sm:$0xf]
      %v1080 = vld [vmem:[%s5 + $0x18] sm:$0xf]
      %v1081 = vld [vmem:[%s5 + $0x1c] sm:$0xf]
      %v1082 = vld [vmem:[%s5 + $0x20] sm:$0xf]
      %v1083 = vld [vmem:[%s5 + $0x24] sm:$0xf]
      %v1084 = vld [vmem:[%s5 + $0x28] sm:$0xf]
      %v1085 = vld [vmem:[%s5 + $0x2c] sm:$0xf]
      %v1086 = vld [vmem:[%s5 + $0x30] sm:$0xf]
      %v1087 = vld [vmem:[%s5 + $0x34] sm:$0xf]
      %v1088 = vld [vmem:[%s5 + $0x38] sm:$0xf]
      %v1089 = vld [vmem:[%s5 + $0x3c] sm:$0xf]
      %v1106 = vunpack.c.l.b16 %v1074
      %v1107 = vunpack.c.l.b16 %v1075
      %v1108 = vunpack.c.l.b16 %v1076
      %v1109 = vunpack.c.l.b16 %v1077
      %v1110 = vunpack.c.l.b16 %v1078
      %v1111 = vunpack.c.l.b16 %v1079
      %v1112 = vunpack.c.l.b16 %v1080
      %v1113 = vunpack.c.l.b16 %v1081
      %v1114 = vunpack.c.l.b16 %v1082
      %v1115 = vunpack.c.l.b16 %v1083
      %v1116 = vunpack.c.l.b16 %v1084
      %v1117 = vunpack.c.l.b16 %v1085
      %v1118 = vunpack.c.l.b16 %v1086
      %v1119 = vunpack.c.l.b16 %v1087
      %v1120 = vunpack.c.l.b16 %v1088
      %v1121 = vunpack.c.l.b16 %v1089
      %v1122 = vpack.c.b16 %v1107, %v1106
      %v1123 = vpack.c.b16 %v1109, %v1108
      %v1124 = vpack.c.b16 %v1111, %v1110
      %v1125 = vpack.c.b16 %v1113, %v1112
      %v1126 = vpack.c.b16 %v1115, %v1114
      %v1127 = vpack.c.b16 %v1117, %v1116
      %v1128 = vpack.c.b16 %v1119, %v1118
      %v1129 = vpack.c.b16 %v1121, %v1120
      %1138 = vmatprep.subr.bf16.mxu0 0
      %1139 = vmatpush1.bf16.msra.mxu0 %v1122
      %1140 = vmatprep.subr.bf16.mxu0 0
      %1141 = vmatpush1.bf16.msra.mxu0 %v1123
      %1142 = vmatprep.subr.bf16.mxu0 0
      %1143 = vmatpush1.bf16.msra.mxu0 %v1124
      %1144 = vmatprep.subr.bf16.mxu0 0
      %1145 = vmatpush1.bf16.msra.mxu0 %v1125
      %1146 = vmatprep.subr.bf16.mxu0 0
      %1147 = vmatpush1.bf16.msra.mxu0 %v1126
      %1148 = vmatprep.subr.bf16.mxu0 0
      %1149 = vmatpush1.bf16.msra.mxu0 %v1127
      %1150 = vmatprep.subr.bf16.mxu0 0
      %1151 = vmatpush1.bf16.msra.mxu0 %v1128
      %1152 = vmatprep.subr.bf16.mxu0 0
      %1153 = vmatpush1.bf16.msra.mxu0 %v1129
      %1154 = vmatprep.subr.bf16.mxu0 0
      %1155 = vmatpush1.bf16.msra.mxu0 0
      %1156 = vmatprep.subr.bf16.mxu0 0
      %1157 = vmatpush1.bf16.msra.mxu0 0
      %1158 = vmatprep.subr.bf16.mxu0 0
      %1159 = vmatpush1.bf16.msra.mxu0 0
      %1160 = vmatprep.subr.bf16.mxu0 0
      %1161 = vmatpush1.bf16.msra.mxu0 0
      %1162 = vmatprep.subr.bf16.mxu0 0
      %1163 = vmatpush1.bf16.msra.mxu0 0
      %1164 = vmatprep.subr.bf16.mxu0 0
      %1165 = vmatpush1.bf16.msra.mxu0 0
      %1166 = vmatprep.subr.bf16.mxu0 0
      %1167 = vmatpush1.bf16.msra.mxu0 0
      %1168 = vmatprep.subr.bf16.mxu0 0
      %1169 = vmatpush1.bf16.msra.mxu0 0
      %1170 = vmatprep.mubr.bf16.mxu0 0
      %1171 = vmatmul.mubr.bf16.gmra.mrb[0].mxu0 %v1058
      %v1172 = vpop.f32.mrb[0].mxu0
      %v1173 = vadd.f32 0.0, %v1172
      %v1174 = vpop.f32.mrb[0].mxu0
      %v1175 = vpop.f32.mrb[0].mxu0
      %v1176 = vadd.f32 0.0, %v1175
      %v1177 = vpop.f32.mrb[0].mxu0
      %1178 = vmatprep.mubr.bf16.mxu0 0
      %1179 = vmatmul.mubr.bf16.gmra.mrb[0].mxu0 %v1059
      %v1180 = vpop.f32.mrb[0].mxu0
      %v1181 = vadd.f32 0.0, %v1180
      %v1182 = vpop.f32.mrb[0].mxu0
      %v1183 = vpop.f32.mrb[0].mxu0
      %v1184 = vadd.f32 0.0, %v1183
      %v1185 = vpop.f32.mrb[0].mxu0
      %1186 = vmatprep.mubr.bf16.mxu0 0
      %1187 = vmatmul.mubr.bf16.gmra.mrb[0].mxu0 %v1060
      %v1188 = vpop.f32.mrb[0].mxu0
      %v1189 = vadd.f32 0.0, %v1188
      %v1190 = vpop.f32.mrb[0].mxu0
      %v1191 = vpop.f32.mrb[0].mxu0
      %v1192 = vadd.f32 0.0, %v1191
      %v1193 = vpop.f32.mrb[0].mxu0
      %1194 = vmatprep.mubr.bf16.mxu0 0
      %1195 = vmatmul.mubr.bf16.gmra.mrb[0].mxu0 %v1061
      %v1196 = vpop.f32.mrb[0].mxu0
      %v1197 = vadd.f32 0.0, %v1196
      %v1198 = vpop.f32.mrb[0].mxu0
      %v1199 = vpop.f32.mrb[0].mxu0
      %v1200 = vadd.f32 0.0, %v1199
      %v1201 = vpop.f32.mrb[0].mxu0
      %1202 = vmatprep.mubr.bf16.mxu0 0
      %1203 = vmatmul.mubr.bf16.gmra.mrb[0].mxu0 %v1062
      %v1204 = vpop.f32.mrb[0].mxu0
      %v1205 = vadd.f32 0.0, %v1204
      %v1206 = vpop.f32.mrb[0].mxu0
      %v1207 = vpop.f32.mrb[0].mxu0
      %v1208 = vadd.f32 0.0, %v1207
      %v1209 = vpop.f32.mrb[0].mxu0
      %1210 = vmatprep.mubr.bf16.mxu0 0
      %1211 = vmatmul.mubr.bf16.gmra.mrb[0].mxu0 %v1063
      %v1212 = vpop.f32.mrb[0].mxu0
      %v1213 = vadd.f32 0.0, %v1212
      %v1214 = vpop.f32.mrb[0].mxu0
      %v1215 = vpop.f32.mrb[0].mxu0
      %v1216 = vadd.f32 0.0, %v1215
      %v1217 = vpop.f32.mrb[0].mxu0
      %1218 = vmatprep.mubr.bf16.mxu0 0
      %1219 = vmatmul.mubr.bf16.gmra.mrb[0].mxu0 %v1064
      %v1220 = vpop.f32.mrb[0].mxu0
      %v1221 = vadd.f32 0.0, %v1220
      %v1222 = vpop.f32.mrb[0].mxu0
      %v1223 = vpop.f32.mrb[0].mxu0
      %v1224 = vadd.f32 0.0, %v1223
      %v1225 = vpop.f32.mrb[0].mxu0
      %1226 = vmatprep.mubr.bf16.mxu0 0
      %1227 = vmatmul.mubr.bf16.gmra.mrb[0].mxu0 %v1065
      %v1228 = vpop.f32.mrb[0].mxu0
      %v1229 = vadd.f32 0.0, %v1228
      %v1230 = vpop.f32.mrb[0].mxu0
      %v1231 = vpop.f32.mrb[0].mxu0
      %v1232 = vadd.f32 0.0, %v1231
      %v1233 = vpop.f32.mrb[0].mxu0
      %1234 = vmatprep.mubr.bf16.mxu0 0
      %1235 = vmatmul.mubr.bf16.gmra.mrb[0].mxu0 %v1066
      %v1236 = vpop.f32.mrb[0].mxu0
      %v1237 = vadd.f32 0.0, %v1236
      %v1238 = vpop.f32.mrb[0].mxu0
      %v1239 = vpop.f32.mrb[0].mxu0
      %v1240 = vadd.f32 0.0, %v1239
      %v1241 = vpop.f32.mrb[0].mxu0
      %1242 = vmatprep.mubr.bf16.mxu0 0
      %1243 = vmatmul.mubr.bf16.gmra.mrb[0].mxu0 %v1067
      %v1244 = vpop.f32.mrb[0].mxu0
      %v1245 = vadd.f32 0.0, %v1244
      %v1246 = vpop.f32.mrb[0].mxu0
      %v1247 = vpop.f32.mrb[0].mxu0
      %v1248 = vadd.f32 0.0, %v1247
      %v1249 = vpop.f32.mrb[0].mxu0
      %1250 = vmatprep.mubr.bf16.mxu0 0
      %1251 = vmatmul.mubr.bf16.gmra.mrb[0].mxu0 %v1068
      %v1252 = vpop.f32.mrb[0].mxu0
      %v1253 = vadd.f32 0.0, %v1252
      %v1254 = vpop.f32.mrb[0].mxu0
      %v1255 = vpop.f32.mrb[0].mxu0
      %v1256 = vadd.f32 0.0, %v1255
      %v1257 = vpop.f32.mrb[0].mxu0
      %1258 = vmatprep.mubr.bf16.mxu0 0
      %1259 = vmatmul.mubr.bf16.gmra.mrb[0].mxu0 %v1069
      %v1260 = vpop.f32.mrb[0].mxu0
      %v1261 = vadd.f32 0.0, %v1260
      %v1262 = vpop.f32.mrb[0].mxu0
      %v1263 = vpop.f32.mrb[0].mxu0
      %v1264 = vadd.f32 0.0, %v1263
      %v1265 = vpop.f32.mrb[0].mxu0
      %1266 = vmatprep.mubr.bf16.mxu0 0
      %1267 = vmatmul.mubr.bf16.gmra.mrb[0].mxu0 %v1070
      %v1268 = vpop.f32.mrb[0].mxu0
      %v1269 = vadd.f32 0.0, %v1268
      %v1270 = vpop.f32.mrb[0].mxu0
      %v1271 = vpop.f32.mrb[0].mxu0
      %v1272 = vadd.f32 0.0, %v1271
      %v1273 = vpop.f32.mrb[0].mxu0
      %1274 = vmatprep.mubr.bf16.mxu0 0
      %1275 = vmatmul.mubr.bf16.gmra.mrb[0].mxu0 %v1071
      %v1276 = vpop.f32.mrb[0].mxu0
      %v1277 = vadd.f32 0.0, %v1276
      %v1278 = vpop.f32.mrb[0].mxu0
      %v1279 = vpop.f32.mrb[0].mxu0
      %v1280 = vadd.f32 0.0, %v1279
      %v1281 = vpop.f32.mrb[0].mxu0
      %1282 = vmatprep.mubr.bf16.mxu0 0
      %1283 = vmatmul.mubr.bf16.gmra.mrb[0].mxu0 %v1072
      %v1284 = vpop.f32.mrb[0].mxu0
      %v1285 = vadd.f32 0.0, %v1284
      %v1286 = vpop.f32.mrb[0].mxu0
      %v1287 = vpop.f32.mrb[0].mxu0
      %v1288 = vadd.f32 0.0, %v1287
      %v1289 = vpop.f32.mrb[0].mxu0
      %1290 = vmatprep.mubr.bf16.mxu0 0
      %1291 = vmatmul.mubr.bf16.gmra.mrb[0].mxu0 %v1073
      %v1292 = vpop.f32.mrb[0].mxu0
      %v1293 = vadd.f32 0.0, %v1292
      %v1294 = vpop.f32.mrb[0].mxu0
      %v1295 = vpop.f32.mrb[0].mxu0
      %v1296 = vadd.f32 0.0, %v1295
      %v1297 = vpop.f32.mrb[0].mxu0
      %1298 = vdwg.mxu0
      %v1299 = vpack.c.bf16 %v801, %v800
      %v1300 = vpack.c.bf16 %v803, %v802
      %v1301 = vpack.c.bf16 %v805, %v804
      %v1302 = vpack.c.bf16 %v807, %v806
      %v1303 = vpack.c.bf16 %v809, %v808
      %v1304 = vpack.c.bf16 %v811, %v810
      %v1305 = vpack.c.bf16 %v813, %v812
      %v1306 = vpack.c.bf16 %v815, %v814
      %v1307 = vpack.c.bf16 %v817, %v816
      %v1308 = vpack.c.bf16 %v819, %v818
      %v1309 = vpack.c.bf16 %v821, %v820
      %v1310 = vpack.c.bf16 %v823, %v822
      %v1311 = vpack.c.bf16 %v825, %v824
      %v1312 = vpack.c.bf16 %v827, %v826
      %v1313 = vpack.c.bf16 %v829, %v828
      %v1314 = vpack.c.bf16 %v831, %v830
      %v1315 = vld [vmem:[%s4] sm:$0xf]
      %v1316 = vld [vmem:[%s4 + $0x4] sm:$0xf]
      %v1317 = vld [vmem:[%s4 + $0x8] sm:$0xf]
      %v1318 = vld [vmem:[%s4 + $0xc] sm:$0xf]
      %v1319 = vld [vmem:[%s4 + $0x10] sm:$0xf]
      %v1320 = vld [vmem:[%s4 + $0x14] sm:$0xf]
      %v1321 = vld [vmem:[%s4 + $0x18] sm:$0xf]
      %v1322 = vld [vmem:[%s4 + $0x1c] sm:$0xf]
      %v1323 = vld [vmem:[%s4 + $0x20] sm:$0xf]
      %v1324 = vld [vmem:[%s4 + $0x24] sm:$0xf]
      %v1325 = vld [vmem:[%s4 + $0x28] sm:$0xf]
      %v1326 = vld [vmem:[%s4 + $0x2c] sm:$0xf]
      %v1327 = vld [vmem:[%s4 + $0x30] sm:$0xf]
      %v1328 = vld [vmem:[%s4 + $0x34] sm:$0xf]
      %v1329 = vld [vmem:[%s4 + $0x38] sm:$0xf]
      %v1330 = vld [vmem:[%s4 + $0x3c] sm:$0xf]
      %v1347 = vunpack.c.l.b16 %v1315
      %v1348 = vunpack.c.l.b16 %v1316
      %v1349 = vunpack.c.l.b16 %v1317
      %v1350 = vunpack.c.l.b16 %v1318
      %v1351 = vunpack.c.l.b16 %v1319
      %v1352 = vunpack.c.l.b16 %v1320
      %v1353 = vunpack.c.l.b16 %v1321
      %v1354 = vunpack.c.l.b16 %v1322
      %v1355 = vunpack.c.l.b16 %v1323
      %v1356 = vunpack.c.l.b16 %v1324
      %v1357 = vunpack.c.l.b16 %v1325
      %v1358 = vunpack.c.l.b16 %v1326
      %v1359 = vunpack.c.l.b16 %v1327
      %v1360 = vunpack.c.l.b16 %v1328
      %v1361 = vunpack.c.l.b16 %v1329
      %v1362 = vunpack.c.l.b16 %v1330
      %v1363 = vpack.c.b16 %v1348, %v1347
      %v1364 = vpack.c.b16 %v1350, %v1349
      %v1365 = vpack.c.b16 %v1352, %v1351
      %v1366 = vpack.c.b16 %v1354, %v1353
      %v1367 = vpack.c.b16 %v1356, %v1355
      %v1368 = vpack.c.b16 %v1358, %v1357
      %v1369 = vpack.c.b16 %v1360, %v1359
      %v1370 = vpack.c.b16 %v1362, %v1361
      %1379 = vmatprep.subr.bf16.mxu0 0
      %1380 = vmatpush1.bf16.msra.mxu0 %v1363
      %1381 = vmatprep.subr.bf16.mxu0 0
      %1382 = vmatpush1.bf16.msra.mxu0 %v1364
      %1383 = vmatprep.subr.bf16.mxu0 0
      %1384 = vmatpush1.bf16.msra.mxu0 %v1365
      %1385 = vmatprep.subr.bf16.mxu0 0
      %1386 = vmatpush1.bf16.msra.mxu0 %v1366
      %1387 = vmatprep.subr.bf16.mxu0 0
      %1388 = vmatpush1.bf16.msra.mxu0 %v1367
      %1389 = vmatprep.subr.bf16.mxu0 0
      %1390 = vmatpush1.bf16.msra.mxu0 %v1368
      %1391 = vmatprep.subr.bf16.mxu0 0
      %1392 = vmatpush1.bf16.msra.mxu0 %v1369
      %1393 = vmatprep.subr.bf16.mxu0 0
      %1394 = vmatpush1.bf16.msra.mxu0 %v1370
      %1395 = vmatprep.subr.bf16.mxu0 0
      %1396 = vmatpush1.bf16.msra.mxu0 0
      %1397 = vmatprep.subr.bf16.mxu0 0
      %1398 = vmatpush1.bf16.msra.mxu0 0
      %1399 = vmatprep.subr.bf16.mxu0 0
      %1400 = vmatpush1.bf16.msra.mxu0 0
      %1401 = vmatprep.subr.bf16.mxu0 0
      %1402 = vmatpush1.bf16.msra.mxu0 0
      %1403 = vmatprep.subr.bf16.mxu0 0
      %1404 = vmatpush1.bf16.msra.mxu0 0
      %1405 = vmatprep.subr.bf16.mxu0 0
      %1406 = vmatpush1.bf16.msra.mxu0 0
      %1407 = vmatprep.subr.bf16.mxu0 0
      %1408 = vmatpush1.bf16.msra.mxu0 0
      %1409 = vmatprep.subr.bf16.mxu0 0
      %1410 = vmatpush1.bf16.msra.mxu0 0
      %1411 = vmatprep.mubr.bf16.mxu0 0
      %1412 = vmatmul.mubr.bf16.gmra.mrb[0].mxu0 %v1299
      %v1413 = vpop.f32.mrb[0].mxu0
      %v1414 = vadd.f32 %v1173, %v1413
      %v1415 = vpop.f32.mrb[0].mxu0
      %v1416 = vpop.f32.mrb[0].mxu0
      %v1417 = vadd.f32 %v1176, %v1416
      %v1418 = vpop.f32.mrb[0].mxu0
      %1419 = vmatprep.mubr.bf16.mxu0 0
      %1420 = vmatmul.mubr.bf16.gmra.mrb[0].mxu0 %v1300
      %v1421 = vpop.f32.mrb[0].mxu0
      %v1422 = vadd.f32 %v1181, %v1421
      %v1423 = vpop.f32.mrb[0].mxu0
      %v1424 = vpop.f32.mrb[0].mxu0
      %v1425 = vadd.f32 %v1184, %v1424
      %v1426 = vpop.f32.mrb[0].mxu0
      %1427 = vmatprep.mubr.bf16.mxu0 0
      %1428 = vmatmul.mubr.bf16.gmra.mrb[0].mxu0 %v1301
      %v1429 = vpop.f32.mrb[0].mxu0
      %v1430 = vadd.f32 %v1189, %v1429
      %v1431 = vpop.f32.mrb[0].mxu0
      %v1432 = vpop.f32.mrb[0].mxu0
      %v1433 = vadd.f32 %v1192, %v1432
      %v1434 = vpop.f32.mrb[0].mxu0
      %1435 = vmatprep.mubr.bf16.mxu0 0
      %1436 = vmatmul.mubr.bf16.gmra.mrb[0].mxu0 %v1302
      %v1437 = vpop.f32.mrb[0].mxu0
      %v1438 = vadd.f32 %v1197, %v1437
      %v1439 = vpop.f32.mrb[0].mxu0
      %v1440 = vpop.f32.mrb[0].mxu0
      %v1441 = vadd.f32 %v1200, %v1440
      %v1442 = vpop.f32.mrb[0].mxu0
      %1443 = vmatprep.mubr.bf16.mxu0 0
      %1444 = vmatmul.mubr.bf16.gmra.mrb[0].mxu0 %v1303
      %v1445 = vpop.f32.mrb[0].mxu0
      %v1446 = vadd.f32 %v1205, %v1445
      %v1447 = vpop.f32.mrb[0].mxu0
      %v1448 = vpop.f32.mrb[0].mxu0
      %v1449 = vadd.f32 %v1208, %v1448
      %v1450 = vpop.f32.mrb[0].mxu0
      %1451 = vmatprep.mubr.bf16.mxu0 0
      %1452 = vmatmul.mubr.bf16.gmra.mrb[0].mxu0 %v1304
      %v1453 = vpop.f32.mrb[0].mxu0
      %v1454 = vadd.f32 %v1213, %v1453
      %v1455 = vpop.f32.mrb[0].mxu0
      %v1456 = vpop.f32.mrb[0].mxu0
      %v1457 = vadd.f32 %v1216, %v1456
      %v1458 = vpop.f32.mrb[0].mxu0
      %1459 = vmatprep.mubr.bf16.mxu0 0
      %1460 = vmatmul.mubr.bf16.gmra.mrb[0].mxu0 %v1305
      %v1461 = vpop.f32.mrb[0].mxu0
      %v1462 = vadd.f32 %v1221, %v1461
      %v1463 = vpop.f32.mrb[0].mxu0
      %v1464 = vpop.f32.mrb[0].mxu0
      %v1465 = vadd.f32 %v1224, %v1464
      %v1466 = vpop.f32.mrb[0].mxu0
      %1467 = vmatprep.mubr.bf16.mxu0 0
      %1468 = vmatmul.mubr.bf16.gmra.mrb[0].mxu0 %v1306
      %v1469 = vpop.f32.mrb[0].mxu0
      %v1470 = vadd.f32 %v1229, %v1469
      %v1471 = vpop.f32.mrb[0].mxu0
      %v1472 = vpop.f32.mrb[0].mxu0
      %v1473 = vadd.f32 %v1232, %v1472
      %v1474 = vpop.f32.mrb[0].mxu0
      %1475 = vmatprep.mubr.bf16.mxu0 0
      %1476 = vmatmul.mubr.bf16.gmra.mrb[0].mxu0 %v1307
      %v1477 = vpop.f32.mrb[0].mxu0
      %v1478 = vadd.f32 %v1237, %v1477
      %v1479 = vpop.f32.mrb[0].mxu0
      %v1480 = vpop.f32.mrb[0].mxu0
      %v1481 = vadd.f32 %v1240, %v1480
      %v1482 = vpop.f32.mrb[0].mxu0
      %1483 = vmatprep.mubr.bf16.mxu0 0
      %1484 = vmatmul.mubr.bf16.gmra.mrb[0].mxu0 %v1308
      %v1485 = vpop.f32.mrb[0].mxu0
      %v1486 = vadd.f32 %v1245, %v1485
      %v1487 = vpop.f32.mrb[0].mxu0
      %v1488 = vpop.f32.mrb[0].mxu0
      %v1489 = vadd.f32 %v1248, %v1488
      %v1490 = vpop.f32.mrb[0].mxu0
      %1491 = vmatprep.mubr.bf16.mxu0 0
      %1492 = vmatmul.mubr.bf16.gmra.mrb[0].mxu0 %v1309
      %v1493 = vpop.f32.mrb[0].mxu0
      %v1494 = vadd.f32 %v1253, %v1493
      %v1495 = vpop.f32.mrb[0].mxu0
      %v1496 = vpop.f32.mrb[0].mxu0
      %v1497 = vadd.f32 %v1256, %v1496
      %v1498 = vpop.f32.mrb[0].mxu0
      %1499 = vmatprep.mubr.bf16.mxu0 0
      %1500 = vmatmul.mubr.bf16.gmra.mrb[0].mxu0 %v1310
      %v1501 = vpop.f32.mrb[0].mxu0
      %v1502 = vadd.f32 %v1261, %v1501
      %v1503 = vpop.f32.mrb[0].mxu0
      %v1504 = vpop.f32.mrb[0].mxu0
      %v1505 = vadd.f32 %v1264, %v1504
      %v1506 = vpop.f32.mrb[0].mxu0
      %1507 = vmatprep.mubr.bf16.mxu0 0
      %1508 = vmatmul.mubr.bf16.gmra.mrb[0].mxu0 %v1311
      %v1509 = vpop.f32.mrb[0].mxu0
      %v1510 = vadd.f32 %v1269, %v1509
      %v1511 = vpop.f32.mrb[0].mxu0
      %v1512 = vpop.f32.mrb[0].mxu0
      %v1513 = vadd.f32 %v1272, %v1512
      %v1514 = vpop.f32.mrb[0].mxu0
      %1515 = vmatprep.mubr.bf16.mxu0 0
      %1516 = vmatmul.mubr.bf16.gmra.mrb[0].mxu0 %v1312
      %v1517 = vpop.f32.mrb[0].mxu0
      %v1518 = vadd.f32 %v1277, %v1517
      %v1519 = vpop.f32.mrb[0].mxu0
      %v1520 = vpop.f32.mrb[0].mxu0
      %v1521 = vadd.f32 %v1280, %v1520
      %v1522 = vpop.f32.mrb[0].mxu0
      %1523 = vmatprep.mubr.bf16.mxu0 0
      %1524 = vmatmul.mubr.bf16.gmra.mrb[0].mxu0 %v1313
      %v1525 = vpop.f32.mrb[0].mxu0
      %v1526 = vadd.f32 %v1285, %v1525
      %v1527 = vpop.f32.mrb[0].mxu0
      %v1528 = vpop.f32.mrb[0].mxu0
      %v1529 = vadd.f32 %v1288, %v1528
      %v1530 = vpop.f32.mrb[0].mxu0
      %1531 = vmatprep.mubr.bf16.mxu0 0
      %1532 = vmatmul.mubr.bf16.gmra.mrb[0].mxu0 %v1314
      %v1533 = vpop.f32.mrb[0].mxu0
      %v1534 = vadd.f32 %v1293, %v1533
      %v1535 = vpop.f32.mrb[0].mxu0
      %v1536 = vpop.f32.mrb[0].mxu0
      %v1537 = vadd.f32 %v1296, %v1536
      %v1538 = vpop.f32.mrb[0].mxu0
      %1539 = vdwg.mxu0
      %v1540 = vmax.f32 %v1414, 0.0
      %v1541 = vmax.f32 %v1417, 0.0
      %v1542 = vmax.f32 %v1422, 0.0
      %v1543 = vmax.f32 %v1425, 0.0
      %v1544 = vmax.f32 %v1430, 0.0
      %v1545 = vmax.f32 %v1433, 0.0
      %v1546 = vmax.f32 %v1438, 0.0
      %v1547 = vmax.f32 %v1441, 0.0
      %v1548 = vmax.f32 %v1446, 0.0
      %v1549 = vmax.f32 %v1449, 0.0
      %v1550 = vmax.f32 %v1454, 0.0
      %v1551 = vmax.f32 %v1457, 0.0
      %v1552 = vmax.f32 %v1462, 0.0
      %v1553 = vmax.f32 %v1465, 0.0
      %v1554 = vmax.f32 %v1470, 0.0
      %v1555 = vmax.f32 %v1473, 0.0
      %v1556 = vmax.f32 %v1478, 0.0
      %v1557 = vmax.f32 %v1481, 0.0
      %v1558 = vmax.f32 %v1486, 0.0
      %v1559 = vmax.f32 %v1489, 0.0
      %v1560 = vmax.f32 %v1494, 0.0
      %v1561 = vmax.f32 %v1497, 0.0
      %v1562 = vmax.f32 %v1502, 0.0
      %v1563 = vmax.f32 %v1505, 0.0
      %v1564 = vmax.f32 %v1510, 0.0
      %v1565 = vmax.f32 %v1513, 0.0
      %v1566 = vmax.f32 %v1518, 0.0
      %v1567 = vmax.f32 %v1521, 0.0
      %v1568 = vmax.f32 %v1526, 0.0
      %v1569 = vmax.f32 %v1529, 0.0
      %v1570 = vmax.f32 %v1534, 0.0
      %v1571 = vmax.f32 %v1537, 0.0
      %v1572 = vpack.c.bf16 %v1541, %v1540
      %v1573 = vpack.c.bf16 %v1543, %v1542
      %v1574 = vpack.c.bf16 %v1545, %v1544
      %v1575 = vpack.c.bf16 %v1547, %v1546
      %v1576 = vpack.c.bf16 %v1549, %v1548
      %v1577 = vpack.c.bf16 %v1551, %v1550
      %v1578 = vpack.c.bf16 %v1553, %v1552
      %v1579 = vpack.c.bf16 %v1555, %v1554
      %v1580 = vpack.c.bf16 %v1557, %v1556
      %v1581 = vpack.c.bf16 %v1559, %v1558
      %v1582 = vpack.c.bf16 %v1561, %v1560
      %v1583 = vpack.c.bf16 %v1563, %v1562
      %v1584 = vpack.c.bf16 %v1565, %v1564
      %v1585 = vpack.c.bf16 %v1567, %v1566
      %v1586 = vpack.c.bf16 %v1569, %v1568
      %v1587 = vpack.c.bf16 %v1571, %v1570
      %v1588 = vld [vmem:[%s6] sm:$0xf]
      %v1589 = vld [vmem:[%s6 + $0x4] sm:$0xf]
      %v1590 = vld [vmem:[%s6 + $0x8] sm:$0xf]
      %v1591 = vld [vmem:[%s6 + $0xc] sm:$0xf]
      %v1592 = vld [vmem:[%s6 + $0x10] sm:$0xf]
      %v1593 = vld [vmem:[%s6 + $0x14] sm:$0xf]
      %v1594 = vld [vmem:[%s6 + $0x18] sm:$0xf]
      %v1595 = vld [vmem:[%s6 + $0x1c] sm:$0xf]
      %v1596 = vld [vmem:[%s6 + $0x20] sm:$0xf]
      %v1597 = vld [vmem:[%s6 + $0x24] sm:$0xf]
      %v1598 = vld [vmem:[%s6 + $0x28] sm:$0xf]
      %v1599 = vld [vmem:[%s6 + $0x2c] sm:$0xf]
      %v1600 = vld [vmem:[%s6 + $0x30] sm:$0xf]
      %v1601 = vld [vmem:[%s6 + $0x34] sm:$0xf]
      %v1602 = vld [vmem:[%s6 + $0x38] sm:$0xf]
      %v1603 = vld [vmem:[%s6 + $0x3c] sm:$0xf]
      %v1604 = vld [vmem:[%s7] sm:$0x1]
      %v1606 = vlaneseq
      %v1607 = vshrl.u32 %v1606, 7
      %v1608 = vsub.s32 0, %v1607
      %v1609 = vrot.slane %v1604, %v1608
      %v1627 = vunpack.c.l.b16 %v1588
      %v1628 = vunpack.c.l.b16 %v1589
      %v1629 = vunpack.c.l.b16 %v1590
      %v1630 = vunpack.c.l.b16 %v1591
      %v1631 = vunpack.c.l.b16 %v1592
      %v1632 = vunpack.c.l.b16 %v1593
      %v1633 = vunpack.c.l.b16 %v1594
      %v1634 = vunpack.c.l.b16 %v1595
      %v1635 = vunpack.c.l.b16 %v1596
      %v1636 = vunpack.c.l.b16 %v1597
      %v1637 = vunpack.c.l.b16 %v1598
      %v1638 = vunpack.c.l.b16 %v1599
      %v1639 = vunpack.c.l.b16 %v1600
      %v1640 = vunpack.c.l.b16 %v1601
      %v1641 = vunpack.c.l.b16 %v1602
      %v1642 = vunpack.c.l.b16 %v1603
      %v1643 = vpack.c.b16 %v1628, %v1627
      %v1644 = vpack.c.b16 %v1630, %v1629
      %v1645 = vpack.c.b16 %v1632, %v1631
      %v1646 = vpack.c.b16 %v1634, %v1633
      %v1647 = vpack.c.b16 %v1636, %v1635
      %v1648 = vpack.c.b16 %v1638, %v1637
      %v1649 = vpack.c.b16 %v1640, %v1639
      %v1650 = vpack.c.b16 %v1642, %v1641
      %1659 = vmatprep.subr.bf16.mxu0 0
      %1660 = vmatpush1.bf16.msra.mxu0 %v1643
      %1661 = vmatprep.subr.bf16.mxu0 0
      %1662 = vmatpush1.bf16.msra.mxu0 %v1644
      %1663 = vmatprep.subr.bf16.mxu0 0
      %1664 = vmatpush1.bf16.msra.mxu0 %v1645
      %1665 = vmatprep.subr.bf16.mxu0 0
      %1666 = vmatpush1.bf16.msra.mxu0 %v1646
      %1667 = vmatprep.subr.bf16.mxu0 0
      %1668 = vmatpush1.bf16.msra.mxu0 %v1647
      %1669 = vmatprep.subr.bf16.mxu0 0
      %1670 = vmatpush1.bf16.msra.mxu0 %v1648
      %1671 = vmatprep.subr.bf16.mxu0 0
      %1672 = vmatpush1.bf16.msra.mxu0 %v1649
      %1673 = vmatprep.subr.bf16.mxu0 0
      %1674 = vmatpush1.bf16.msra.mxu0 %v1650
      %1675 = vmatprep.subr.bf16.mxu0 0
      %1676 = vmatpush1.bf16.msra.mxu0 0
      %1677 = vmatprep.subr.bf16.mxu0 0
      %1678 = vmatpush1.bf16.msra.mxu0 0
      %1679 = vmatprep.subr.bf16.mxu0 0
      %1680 = vmatpush1.bf16.msra.mxu0 0
      %1681 = vmatprep.subr.bf16.mxu0 0
      %1682 = vmatpush1.bf16.msra.mxu0 0
      %1683 = vmatprep.subr.bf16.mxu0 0
      %1684 = vmatpush1.bf16.msra.mxu0 0
      %1685 = vmatprep.subr.bf16.mxu0 0
      %1686 = vmatpush1.bf16.msra.mxu0 0
      %1687 = vmatprep.subr.bf16.mxu0 0
      %1688 = vmatpush1.bf16.msra.mxu0 0
      %1689 = vmatprep.subr.bf16.mxu0 0
      %1690 = vmatpush1.bf16.msra.mxu0 0
      %1691 = vmatprep.mubr.bf16.mxu0 0
      %1692 = vmatmul.mubr.bf16.gmra.mrb[0].mxu0 %v1572
      %v1693 = vpop.f32.mrb[0].mxu0
      %v1694 = vadd.f32 %v1609, %v1693
      %v1695 = vpop.f32.mrb[0].mxu0
      %v1696 = vpop.f32.mrb[0].mxu0
      %v1697 = vadd.f32 %v1609, %v1696
      %v1698 = vpop.f32.mrb[0].mxu0
      %1699 = vmatprep.mubr.bf16.mxu0 0
      %1700 = vmatmul.mubr.bf16.gmra.mrb[0].mxu0 %v1573
      %v1701 = vpop.f32.mrb[0].mxu0
      %v1702 = vadd.f32 %v1609, %v1701
      %v1703 = vpop.f32.mrb[0].mxu0
      %v1704 = vpop.f32.mrb[0].mxu0
      %v1705 = vadd.f32 %v1609, %v1704
      %v1706 = vpop.f32.mrb[0].mxu0
      %1707 = vmatprep.mubr.bf16.mxu0 0
      %1708 = vmatmul.mubr.bf16.gmra.mrb[0].mxu0 %v1574
      %v1709 = vpop.f32.mrb[0].mxu0
      %v1710 = vadd.f32 %v1609, %v1709
      %v1711 = vpop.f32.mrb[0].mxu0
      %v1712 = vpop.f32.mrb[0].mxu0
      %v1713 = vadd.f32 %v1609, %v1712
      %v1714 = vpop.f32.mrb[0].mxu0
      %1715 = vmatprep.mubr.bf16.mxu0 0
      %1716 = vmatmul.mubr.bf16.gmra.mrb[0].mxu0 %v1575
      %v1717 = vpop.f32.mrb[0].mxu0
      %v1718 = vadd.f32 %v1609, %v1717
      %v1719 = vpop.f32.mrb[0].mxu0
      %v1720 = vpop.f32.mrb[0].mxu0
      %v1721 = vadd.f32 %v1609, %v1720
      %v1722 = vpop.f32.mrb[0].mxu0
      %1723 = vmatprep.mubr.bf16.mxu0 0
      %1724 = vmatmul.mubr.bf16.gmra.mrb[0].mxu0 %v1576
      %v1725 = vpop.f32.mrb[0].mxu0
      %v1726 = vadd.f32 %v1609, %v1725
      %v1727 = vpop.f32.mrb[0].mxu0
      %v1728 = vpop.f32.mrb[0].mxu0
      %v1729 = vadd.f32 %v1609, %v1728
      %v1730 = vpop.f32.mrb[0].mxu0
      %1731 = vmatprep.mubr.bf16.mxu0 0
      %1732 = vmatmul.mubr.bf16.gmra.mrb[0].mxu0 %v1577
      %v1733 = vpop.f32.mrb[0].mxu0
      %v1734 = vadd.f32 %v1609, %v1733
      %v1735 = vpop.f32.mrb[0].mxu0
      %v1736 = vpop.f32.mrb[0].mxu0
      %v1737 = vadd.f32 %v1609, %v1736
      %v1738 = vpop.f32.mrb[0].mxu0
      %1739 = vmatprep.mubr.bf16.mxu0 0
      %1740 = vmatmul.mubr.bf16.gmra.mrb[0].mxu0 %v1578
      %v1741 = vpop.f32.mrb[0].mxu0
      %v1742 = vadd.f32 %v1609, %v1741
      %v1743 = vpop.f32.mrb[0].mxu0
      %v1744 = vpop.f32.mrb[0].mxu0
      %v1745 = vadd.f32 %v1609, %v1744
      %v1746 = vpop.f32.mrb[0].mxu0
      %1747 = vmatprep.mubr.bf16.mxu0 0
      %1748 = vmatmul.mubr.bf16.gmra.mrb[0].mxu0 %v1579
      %v1749 = vpop.f32.mrb[0].mxu0
      %v1750 = vadd.f32 %v1609, %v1749
      %v1751 = vpop.f32.mrb[0].mxu0
      %v1752 = vpop.f32.mrb[0].mxu0
      %v1753 = vadd.f32 %v1609, %v1752
      %v1754 = vpop.f32.mrb[0].mxu0
      %1755 = vmatprep.mubr.bf16.mxu0 0
      %1756 = vmatmul.mubr.bf16.gmra.mrb[0].mxu0 %v1580
      %v1757 = vpop.f32.mrb[0].mxu0
      %v1758 = vadd.f32 %v1609, %v1757
      %v1759 = vpop.f32.mrb[0].mxu0
      %v1760 = vpop.f32.mrb[0].mxu0
      %v1761 = vadd.f32 %v1609, %v1760
      %v1762 = vpop.f32.mrb[0].mxu0
      %1763 = vmatprep.mubr.bf16.mxu0 0
      %1764 = vmatmul.mubr.bf16.gmra.mrb[0].mxu0 %v1581
      %v1765 = vpop.f32.mrb[0].mxu0
      %v1766 = vadd.f32 %v1609, %v1765
      %v1767 = vpop.f32.mrb[0].mxu0
      %v1768 = vpop.f32.mrb[0].mxu0
      %v1769 = vadd.f32 %v1609, %v1768
      %v1770 = vpop.f32.mrb[0].mxu0
      %1771 = vmatprep.mubr.bf16.mxu0 0
      %1772 = vmatmul.mubr.bf16.gmra.mrb[0].mxu0 %v1582
      %v1773 = vpop.f32.mrb[0].mxu0
      %v1774 = vadd.f32 %v1609, %v1773
      %v1775 = vpop.f32.mrb[0].mxu0
      %v1776 = vpop.f32.mrb[0].mxu0
      %v1777 = vadd.f32 %v1609, %v1776
      %v1778 = vpop.f32.mrb[0].mxu0
      %1779 = vmatprep.mubr.bf16.mxu0 0
      %1780 = vmatmul.mubr.bf16.gmra.mrb[0].mxu0 %v1583
      %v1781 = vpop.f32.mrb[0].mxu0
      %v1782 = vadd.f32 %v1609, %v1781
      %v1783 = vpop.f32.mrb[0].mxu0
      %v1784 = vpop.f32.mrb[0].mxu0
      %v1785 = vadd.f32 %v1609, %v1784
      %v1786 = vpop.f32.mrb[0].mxu0
      %1787 = vmatprep.mubr.bf16.mxu0 0
      %1788 = vmatmul.mubr.bf16.gmra.mrb[0].mxu0 %v1584
      %v1789 = vpop.f32.mrb[0].mxu0
      %v1790 = vadd.f32 %v1609, %v1789
      %v1791 = vpop.f32.mrb[0].mxu0
      %v1792 = vpop.f32.mrb[0].mxu0
      %v1793 = vadd.f32 %v1609, %v1792
      %v1794 = vpop.f32.mrb[0].mxu0
      %1795 = vmatprep.mubr.bf16.mxu0 0
      %1796 = vmatmul.mubr.bf16.gmra.mrb[0].mxu0 %v1585
      %v1797 = vpop.f32.mrb[0].mxu0
      %v1798 = vadd.f32 %v1609, %v1797
      %v1799 = vpop.f32.mrb[0].mxu0
      %v1800 = vpop.f32.mrb[0].mxu0
      %v1801 = vadd.f32 %v1609, %v1800
      %v1802 = vpop.f32.mrb[0].mxu0
      %1803 = vmatprep.mubr.bf16.mxu0 0
      %1804 = vmatmul.mubr.bf16.gmra.mrb[0].mxu0 %v1586
      %v1805 = vpop.f32.mrb[0].mxu0
      %v1806 = vadd.f32 %v1609, %v1805
      %v1807 = vpop.f32.mrb[0].mxu0
      %v1808 = vpop.f32.mrb[0].mxu0
      %v1809 = vadd.f32 %v1609, %v1808
      %v1810 = vpop.f32.mrb[0].mxu0
      %1811 = vmatprep.mubr.bf16.mxu0 0
      %1812 = vmatmul.mubr.bf16.gmra.mrb[0].mxu0 %v1587
      %v1813 = vpop.f32.mrb[0].mxu0
      %v1814 = vadd.f32 %v1609, %v1813
      %v1815 = vpop.f32.mrb[0].mxu0
      %v1816 = vpop.f32.mrb[0].mxu0
      %v1817 = vadd.f32 %v1609, %v1816
      %v1818 = vpop.f32.mrb[0].mxu0
      %1819 = vdwg.mxu0
      %1820 = vset.pattern.permute.xlu0 1
      %1821 = vperm.xlu0 %1820, %v832
      %v1822 = vpop.permute.xlu0 %1821
      %1823 = vset.pattern.permute.xlu0 1
      %1824 = vperm.xlu0 %1823, %v833
      %v1825 = vpop.permute.xlu0 %1824
      %1826 = vset.pattern.permute.xlu0 1
      %1827 = vperm.xlu0 %1826, %v834
      %v1828 = vpop.permute.xlu0 %1827
      %1829 = vset.pattern.permute.xlu0 1
      %1830 = vperm.xlu0 %1829, %v835
      %v1831 = vpop.permute.xlu0 %1830
      %1832 = vset.pattern.permute.xlu0 1
      %1833 = vperm.xlu0 %1832, %v836
      %v1834 = vpop.permute.xlu0 %1833
      %1835 = vset.pattern.permute.xlu0 1
      %1836 = vperm.xlu0 %1835, %v837
      %v1837 = vpop.permute.xlu0 %1836
      %1838 = vset.pattern.permute.xlu0 1
      %1839 = vperm.xlu0 %1838, %v838
      %v1840 = vpop.permute.xlu0 %1839
      %1841 = vset.pattern.permute.xlu0 1
      %1842 = vperm.xlu0 %1841, %v839
      %v1843 = vpop.permute.xlu0 %1842
      %1844 = vset.pattern.permute.xlu0 1
      %1845 = vperm.xlu0 %1844, %v840
      %v1846 = vpop.permute.xlu0 %1845
      %1847 = vset.pattern.permute.xlu0 1
      %1848 = vperm.xlu0 %1847, %v841
      %v1849 = vpop.permute.xlu0 %1848
      %1850 = vset.pattern.permute.xlu0 1
      %1851 = vperm.xlu0 %1850, %v842
      %v1852 = vpop.permute.xlu0 %1851
      %1853 = vset.pattern.permute.xlu0 1
      %1854 = vperm.xlu0 %1853, %v843
      %v1855 = vpop.permute.xlu0 %1854
      %1856 = vset.pattern.permute.xlu0 1
      %1857 = vperm.xlu0 %1856, %v844
      %v1858 = vpop.permute.xlu0 %1857
      %1859 = vset.pattern.permute.xlu0 1
      %1860 = vperm.xlu0 %1859, %v845
      %v1861 = vpop.permute.xlu0 %1860
      %1862 = vset.pattern.permute.xlu0 1
      %1863 = vperm.xlu0 %1862, %v846
      %v1864 = vpop.permute.xlu0 %1863
      %1865 = vset.pattern.permute.xlu0 1
      %1866 = vperm.xlu0 %1865, %v847
      %v1867 = vpop.permute.xlu0 %1866
      %1868 = vset.pattern.permute.xlu0 1
      %1869 = vperm.xlu0 %1868, %v848
      %v1870 = vpop.permute.xlu0 %1869
      %1871 = vset.pattern.permute.xlu0 1
      %1872 = vperm.xlu0 %1871, %v849
      %v1873 = vpop.permute.xlu0 %1872
      %1874 = vset.pattern.permute.xlu0 1
      %1875 = vperm.xlu0 %1874, %v850
      %v1876 = vpop.permute.xlu0 %1875
      %1877 = vset.pattern.permute.xlu0 1
      %1878 = vperm.xlu0 %1877, %v851
      %v1879 = vpop.permute.xlu0 %1878
      %1880 = vset.pattern.permute.xlu0 1
      %1881 = vperm.xlu0 %1880, %v852
      %v1882 = vpop.permute.xlu0 %1881
      %1883 = vset.pattern.permute.xlu0 1
      %1884 = vperm.xlu0 %1883, %v853
      %v1885 = vpop.permute.xlu0 %1884
      %1886 = vset.pattern.permute.xlu0 1
      %1887 = vperm.xlu0 %1886, %v854
      %v1888 = vpop.permute.xlu0 %1887
      %1889 = vset.pattern.permute.xlu0 1
      %1890 = vperm.xlu0 %1889, %v855
      %v1891 = vpop.permute.xlu0 %1890
      %1892 = vset.pattern.permute.xlu0 1
      %1893 = vperm.xlu0 %1892, %v856
      %v1894 = vpop.permute.xlu0 %1893
      %1895 = vset.pattern.permute.xlu0 1
      %1896 = vperm.xlu0 %1895, %v857
      %v1897 = vpop.permute.xlu0 %1896
      %1898 = vset.pattern.permute.xlu0 1
      %1899 = vperm.xlu0 %1898, %v858
      %v1900 = vpop.permute.xlu0 %1899
      %1901 = vset.pattern.permute.xlu0 1
      %1902 = vperm.xlu0 %1901, %v859
      %v1903 = vpop.permute.xlu0 %1902
      %1904 = vset.pattern.permute.xlu0 1
      %1905 = vperm.xlu0 %1904, %v860
      %v1906 = vpop.permute.xlu0 %1905
      %1907 = vset.pattern.permute.xlu0 1
      %1908 = vperm.xlu0 %1907, %v861
      %v1909 = vpop.permute.xlu0 %1908
      %1910 = vset.pattern.permute.xlu0 1
      %1911 = vperm.xlu0 %1910, %v862
      %v1912 = vpop.permute.xlu0 %1911
      %1913 = vset.pattern.permute.xlu0 1
      %1914 = vperm.xlu0 %1913, %v863
      %v1915 = vpop.permute.xlu0 %1914
      %vm1916 = vcmp.eq.s32.totalorder %v1822, %v865
      %vm1917 = vcmp.eq.s32.totalorder %v1825, %v865
      %vm1918 = vcmp.eq.s32.totalorder %v1828, %v865
      %vm1919 = vcmp.eq.s32.totalorder %v1831, %v865
      %vm1920 = vcmp.eq.s32.totalorder %v1834, %v865
      %vm1921 = vcmp.eq.s32.totalorder %v1837, %v865
      %vm1922 = vcmp.eq.s32.totalorder %v1840, %v865
      %vm1923 = vcmp.eq.s32.totalorder %v1843, %v865
      %vm1924 = vcmp.eq.s32.totalorder %v1846, %v865
      %vm1925 = vcmp.eq.s32.totalorder %v1849, %v865
      %vm1926 = vcmp.eq.s32.totalorder %v1852, %v865
      %vm1927 = vcmp.eq.s32.totalorder %v1855, %v865
      %vm1928 = vcmp.eq.s32.totalorder %v1858, %v865
      %vm1929 = vcmp.eq.s32.totalorder %v1861, %v865
      %vm1930 = vcmp.eq.s32.totalorder %v1864, %v865
      %vm1931 = vcmp.eq.s32.totalorder %v1867, %v865
      %vm1932 = vcmp.eq.s32.totalorder %v1870, %v865
      %vm1933 = vcmp.eq.s32.totalorder %v1873, %v865
      %vm1934 = vcmp.eq.s32.totalorder %v1876, %v865
      %vm1935 = vcmp.eq.s32.totalorder %v1879, %v865
      %vm1936 = vcmp.eq.s32.totalorder %v1882, %v865
      %vm1937 = vcmp.eq.s32.totalorder %v1885, %v865
      %vm1938 = vcmp.eq.s32.totalorder %v1888, %v865
      %vm1939 = vcmp.eq.s32.totalorder %v1891, %v865
      %vm1940 = vcmp.eq.s32.totalorder %v1894, %v865
      %vm1941 = vcmp.eq.s32.totalorder %v1897, %v865
      %vm1942 = vcmp.eq.s32.totalorder %v1900, %v865
      %vm1943 = vcmp.eq.s32.totalorder %v1903, %v865
      %vm1944 = vcmp.eq.s32.totalorder %v1906, %v865
      %vm1945 = vcmp.eq.s32.totalorder %v1909, %v865
      %vm1946 = vcmp.eq.s32.totalorder %v1912, %v865
      %vm1947 = vcmp.eq.s32.totalorder %v1915, %v865
      %v1948 = vsel %vm1916, 1, 0
      %v1949 = vsel %vm1917, 1, 0
      %v1950 = vsel %vm1918, 1, 0
      %v1951 = vsel %vm1919, 1, 0
      %v1952 = vsel %vm1920, 1, 0
      %v1953 = vsel %vm1921, 1, 0
      %v1954 = vsel %vm1922, 1, 0
      %v1955 = vsel %vm1923, 1, 0
      %v1956 = vsel %vm1924, 1, 0
      %v1957 = vsel %vm1925, 1, 0
      %v1958 = vsel %vm1926, 1, 0
      %v1959 = vsel %vm1927, 1, 0
      %v1960 = vsel %vm1928, 1, 0
      %v1961 = vsel %vm1929, 1, 0
      %v1962 = vsel %vm1930, 1, 0
      %v1963 = vsel %vm1931, 1, 0
      %v1964 = vsel %vm1932, 1, 0
      %v1965 = vsel %vm1933, 1, 0
      %v1966 = vsel %vm1934, 1, 0
      %v1967 = vsel %vm1935, 1, 0
      %v1968 = vsel %vm1936, 1, 0
      %v1969 = vsel %vm1937, 1, 0
      %v1970 = vsel %vm1938, 1, 0
      %v1971 = vsel %vm1939, 1, 0
      %v1972 = vsel %vm1940, 1, 0
      %v1973 = vsel %vm1941, 1, 0
      %v1974 = vsel %vm1942, 1, 0
      %v1975 = vsel %vm1943, 1, 0
      %v1976 = vsel %vm1944, 1, 0
      %v1977 = vsel %vm1945, 1, 0
      %v1978 = vsel %vm1946, 1, 0
      %v1979 = vsel %vm1947, 1, 0
      %v1980 = vcvt.s32.f32 %v1948
      %v1981 = vcvt.s32.f32 %v1949
      %v1982 = vcvt.s32.f32 %v1950
      %v1983 = vcvt.s32.f32 %v1951
      %v1984 = vcvt.s32.f32 %v1952
      %v1985 = vcvt.s32.f32 %v1953
      %v1986 = vcvt.s32.f32 %v1954
      %v1987 = vcvt.s32.f32 %v1955
      %v1988 = vcvt.s32.f32 %v1956
      %v1989 = vcvt.s32.f32 %v1957
      %v1990 = vcvt.s32.f32 %v1958
      %v1991 = vcvt.s32.f32 %v1959
      %v1992 = vcvt.s32.f32 %v1960
      %v1993 = vcvt.s32.f32 %v1961
      %v1994 = vcvt.s32.f32 %v1962
      %v1995 = vcvt.s32.f32 %v1963
      %v1996 = vcvt.s32.f32 %v1964
      %v1997 = vcvt.s32.f32 %v1965
      %v1998 = vcvt.s32.f32 %v1966
      %v1999 = vcvt.s32.f32 %v1967
      %v2000 = vcvt.s32.f32 %v1968
      %v2001 = vcvt.s32.f32 %v1969
      %v2002 = vcvt.s32.f32 %v1970
      %v2003 = vcvt.s32.f32 %v1971
      %v2004 = vcvt.s32.f32 %v1972
      %v2005 = vcvt.s32.f32 %v1973
      %v2006 = vcvt.s32.f32 %v1974
      %v2007 = vcvt.s32.f32 %v1975
      %v2008 = vcvt.s32.f32 %v1976
      %v2009 = vcvt.s32.f32 %v1977
      %v2010 = vcvt.s32.f32 %v1978
      %v2011 = vcvt.s32.f32 %v1979
      %v2012 = vpack.c.bf16 %v1981, %v1980
      %v2013 = vpack.c.bf16 %v1983, %v1982
      %v2014 = vpack.c.bf16 %v1985, %v1984
      %v2015 = vpack.c.bf16 %v1987, %v1986
      %v2016 = vpack.c.bf16 %v1989, %v1988
      %v2017 = vpack.c.bf16 %v1991, %v1990
      %v2018 = vpack.c.bf16 %v1993, %v1992
      %v2019 = vpack.c.bf16 %v1995, %v1994
      %v2020 = vpack.c.bf16 %v1997, %v1996
      %v2021 = vpack.c.bf16 %v1999, %v1998
      %v2022 = vpack.c.bf16 %v2001, %v2000
      %v2023 = vpack.c.bf16 %v2003, %v2002
      %v2024 = vpack.c.bf16 %v2005, %v2004
      %v2025 = vpack.c.bf16 %v2007, %v2006
      %v2026 = vpack.c.bf16 %v2009, %v2008
      %v2027 = vpack.c.bf16 %v2011, %v2010
      %2028 = vmatprep.subr.bf16.mxu0 0
      %2029 = vmatpush1.bf16.msra.mxu0 %v1122
      %2030 = vmatprep.subr.bf16.mxu0 0
      %2031 = vmatpush1.bf16.msra.mxu0 %v1123
      %2032 = vmatprep.subr.bf16.mxu0 0
      %2033 = vmatpush1.bf16.msra.mxu0 %v1124
      %2034 = vmatprep.subr.bf16.mxu0 0
      %2035 = vmatpush1.bf16.msra.mxu0 %v1125
      %2036 = vmatprep.subr.bf16.mxu0 0
      %2037 = vmatpush1.bf16.msra.mxu0 %v1126
      %2038 = vmatprep.subr.bf16.mxu0 0
      %2039 = vmatpush1.bf16.msra.mxu0 %v1127
      %2040 = vmatprep.subr.bf16.mxu0 0
      %2041 = vmatpush1.bf16.msra.mxu0 %v1128
      %2042 = vmatprep.subr.bf16.mxu0 0
      %2043 = vmatpush1.bf16.msra.mxu0 %v1129
      %2044 = vmatprep.subr.bf16.mxu0 0
      %2045 = vmatpush1.bf16.msra.mxu0 0
      %2046 = vmatprep.subr.bf16.mxu0 0
      %2047 = vmatpush1.bf16.msra.mxu0 0
      %2048 = vmatprep.subr.bf16.mxu0 0
      %2049 = vmatpush1.bf16.msra.mxu0 0
      %2050 = vmatprep.subr.bf16.mxu0 0
      %2051 = vmatpush1.bf16.msra.mxu0 0
      %2052 = vmatprep.subr.bf16.mxu0 0
      %2053 = vmatpush1.bf16.msra.mxu0 0
      %2054 = vmatprep.subr.bf16.mxu0 0
      %2055 = vmatpush1.bf16.msra.mxu0 0
      %2056 = vmatprep.subr.bf16.mxu0 0
      %2057 = vmatpush1.bf16.msra.mxu0 0
      %2058 = vmatprep.subr.bf16.mxu0 0
      %2059 = vmatpush1.bf16.msra.mxu0 0
      %2060 = vmatprep.mubr.bf16.mxu0 0
      %2061 = vmatmul.mubr.bf16.gmra.mrb[0].mxu0 %v2012
      %v2062 = vpop.f32.mrb[0].mxu0
      %v2063 = vadd.f32 0.0, %v2062
      %v2064 = vpop.f32.mrb[0].mxu0
      %v2065 = vpop.f32.mrb[0].mxu0
      %v2066 = vadd.f32 0.0, %v2065
      %v2067 = vpop.f32.mrb[0].mxu0
      %2068 = vmatprep.mubr.bf16.mxu0 0
      %2069 = vmatmul.mubr.bf16.gmra.mrb[0].mxu0 %v2013
      %v2070 = vpop.f32.mrb[0].mxu0
      %v2071 = vadd.f32 0.0, %v2070
      %v2072 = vpop.f32.mrb[0].mxu0
      %v2073 = vpop.f32.mrb[0].mxu0
      %v2074 = vadd.f32 0.0, %v2073
      %v2075 = vpop.f32.mrb[0].mxu0
      %2076 = vmatprep.mubr.bf16.mxu0 0
      %2077 = vmatmul.mubr.bf16.gmra.mrb[0].mxu0 %v2014
      %v2078 = vpop.f32.mrb[0].mxu0
      %v2079 = vadd.f32 0.0, %v2078
      %v2080 = vpop.f32.mrb[0].mxu0
      %v2081 = vpop.f32.mrb[0].mxu0
      %v2082 = vadd.f32 0.0, %v2081
      %v2083 = vpop.f32.mrb[0].mxu0
      %2084 = vmatprep.mubr.bf16.mxu0 0
      %2085 = vmatmul.mubr.bf16.gmra.mrb[0].mxu0 %v2015
      %v2086 = vpop.f32.mrb[0].mxu0
      %v2087 = vadd.f32 0.0, %v2086
      %v2088 = vpop.f32.mrb[0].mxu0
      %v2089 = vpop.f32.mrb[0].mxu0
      %v2090 = vadd.f32 0.0, %v2089
      %v2091 = vpop.f32.mrb[0].mxu0
      %2092 = vmatprep.mubr.bf16.mxu0 0
      %2093 = vmatmul.mubr.bf16.gmra.mrb[0].mxu0 %v2016
      %v2094 = vpop.f32.mrb[0].mxu0
      %v2095 = vadd.f32 0.0, %v2094
      %v2096 = vpop.f32.mrb[0].mxu0
      %v2097 = vpop.f32.mrb[0].mxu0
      %v2098 = vadd.f32 0.0, %v2097
      %v2099 = vpop.f32.mrb[0].mxu0
      %2100 = vmatprep.mubr.bf16.mxu0 0
      %2101 = vmatmul.mubr.bf16.gmra.mrb[0].mxu0 %v2017
      %v2102 = vpop.f32.mrb[0].mxu0
      %v2103 = vadd.f32 0.0, %v2102
      %v2104 = vpop.f32.mrb[0].mxu0
      %v2105 = vpop.f32.mrb[0].mxu0
      %v2106 = vadd.f32 0.0, %v2105
      %v2107 = vpop.f32.mrb[0].mxu0
      %2108 = vmatprep.mubr.bf16.mxu0 0
      %2109 = vmatmul.mubr.bf16.gmra.mrb[0].mxu0 %v2018
      %v2110 = vpop.f32.mrb[0].mxu0
      %v2111 = vadd.f32 0.0, %v2110
      %v2112 = vpop.f32.mrb[0].mxu0
      %v2113 = vpop.f32.mrb[0].mxu0
      %v2114 = vadd.f32 0.0, %v2113
      %v2115 = vpop.f32.mrb[0].mxu0
      %2116 = vmatprep.mubr.bf16.mxu0 0
      %2117 = vmatmul.mubr.bf16.gmra.mrb[0].mxu0 %v2019
      %v2118 = vpop.f32.mrb[0].mxu0
      %v2119 = vadd.f32 0.0, %v2118
      %v2120 = vpop.f32.mrb[0].mxu0
      %v2121 = vpop.f32.mrb[0].mxu0
      %v2122 = vadd.f32 0.0, %v2121
      %v2123 = vpop.f32.mrb[0].mxu0
      %2124 = vmatprep.mubr.bf16.mxu0 0
      %2125 = vmatmul.mubr.bf16.gmra.mrb[0].mxu0 %v2020
      %v2126 = vpop.f32.mrb[0].mxu0
      %v2127 = vadd.f32 0.0, %v2126
      %v2128 = vpop.f32.mrb[0].mxu0
      %v2129 = vpop.f32.mrb[0].mxu0
      %v2130 = vadd.f32 0.0, %v2129
      %v2131 = vpop.f32.mrb[0].mxu0
      %2132 = vmatprep.mubr.bf16.mxu0 0
      %2133 = vmatmul.mubr.bf16.gmra.mrb[0].mxu0 %v2021
      %v2134 = vpop.f32.mrb[0].mxu0
      %v2135 = vadd.f32 0.0, %v2134
      %v2136 = vpop.f32.mrb[0].mxu0
      %v2137 = vpop.f32.mrb[0].mxu0
      %v2138 = vadd.f32 0.0, %v2137
      %v2139 = vpop.f32.mrb[0].mxu0
      %2140 = vmatprep.mubr.bf16.mxu0 0
      %2141 = vmatmul.mubr.bf16.gmra.mrb[0].mxu0 %v2022
      %v2142 = vpop.f32.mrb[0].mxu0
      %v2143 = vadd.f32 0.0, %v2142
      %v2144 = vpop.f32.mrb[0].mxu0
      %v2145 = vpop.f32.mrb[0].mxu0
      %v2146 = vadd.f32 0.0, %v2145
      %v2147 = vpop.f32.mrb[0].mxu0
      %2148 = vmatprep.mubr.bf16.mxu0 0
      %2149 = vmatmul.mubr.bf16.gmra.mrb[0].mxu0 %v2023
      %v2150 = vpop.f32.mrb[0].mxu0
      %v2151 = vadd.f32 0.0, %v2150
      %v2152 = vpop.f32.mrb[0].mxu0
      %v2153 = vpop.f32.mrb[0].mxu0
      %v2154 = vadd.f32 0.0, %v2153
      %v2155 = vpop.f32.mrb[0].mxu0
      %2156 = vmatprep.mubr.bf16.mxu0 0
      %2157 = vmatmul.mubr.bf16.gmra.mrb[0].mxu0 %v2024
      %v2158 = vpop.f32.mrb[0].mxu0
      %v2159 = vadd.f32 0.0, %v2158
      %v2160 = vpop.f32.mrb[0].mxu0
      %v2161 = vpop.f32.mrb[0].mxu0
      %v2162 = vadd.f32 0.0, %v2161
      %v2163 = vpop.f32.mrb[0].mxu0
      %2164 = vmatprep.mubr.bf16.mxu0 0
      %2165 = vmatmul.mubr.bf16.gmra.mrb[0].mxu0 %v2025
      %v2166 = vpop.f32.mrb[0].mxu0
      %v2167 = vadd.f32 0.0, %v2166
      %v2168 = vpop.f32.mrb[0].mxu0
      %v2169 = vpop.f32.mrb[0].mxu0
      %v2170 = vadd.f32 0.0, %v2169
      %v2171 = vpop.f32.mrb[0].mxu0
      %2172 = vmatprep.mubr.bf16.mxu0 0
      %2173 = vmatmul.mubr.bf16.gmra.mrb[0].mxu0 %v2026
      %v2174 = vpop.f32.mrb[0].mxu0
      %v2175 = vadd.f32 0.0, %v2174
      %v2176 = vpop.f32.mrb[0].mxu0
      %v2177 = vpop.f32.mrb[0].mxu0
      %v2178 = vadd.f32 0.0, %v2177
      %v2179 = vpop.f32.mrb[0].mxu0
      %2180 = vmatprep.mubr.bf16.mxu0 0
      %2181 = vmatmul.mubr.bf16.gmra.mrb[0].mxu0 %v2027
      %v2182 = vpop.f32.mrb[0].mxu0
      %v2183 = vadd.f32 0.0, %v2182
      %v2184 = vpop.f32.mrb[0].mxu0
      %v2185 = vpop.f32.mrb[0].mxu0
      %v2186 = vadd.f32 0.0, %v2185
      %v2187 = vpop.f32.mrb[0].mxu0
      %2188 = vdwg.mxu0
      %v2189 = vpack.c.bf16 %v1697, %v1694
      %v2190 = vpack.c.bf16 %v1705, %v1702
      %v2191 = vpack.c.bf16 %v1713, %v1710
      %v2192 = vpack.c.bf16 %v1721, %v1718
      %v2193 = vpack.c.bf16 %v1729, %v1726
      %v2194 = vpack.c.bf16 %v1737, %v1734
      %v2195 = vpack.c.bf16 %v1745, %v1742
      %v2196 = vpack.c.bf16 %v1753, %v1750
      %v2197 = vpack.c.bf16 %v1761, %v1758
      %v2198 = vpack.c.bf16 %v1769, %v1766
      %v2199 = vpack.c.bf16 %v1777, %v1774
      %v2200 = vpack.c.bf16 %v1785, %v1782
      %v2201 = vpack.c.bf16 %v1793, %v1790
      %v2202 = vpack.c.bf16 %v1801, %v1798
      %v2203 = vpack.c.bf16 %v1809, %v1806
      %v2204 = vpack.c.bf16 %v1817, %v1814
      %2205 = vmatprep.subr.bf16.mxu0 0
      %2206 = vmatpush1.bf16.msra.mxu0 %v1363
      %2207 = vmatprep.subr.bf16.mxu0 0
      %2208 = vmatpush1.bf16.msra.mxu0 %v1364
      %2209 = vmatprep.subr.bf16.mxu0 0
      %2210 = vmatpush1.bf16.msra.mxu0 %v1365
      %2211 = vmatprep.subr.bf16.mxu0 0
      %2212 = vmatpush1.bf16.msra.mxu0 %v1366
      %2213 = vmatprep.subr.bf16.mxu0 0
      %2214 = vmatpush1.bf16.msra.mxu0 %v1367
      %2215 = vmatprep.subr.bf16.mxu0 0
      %2216 = vmatpush1.bf16.msra.mxu0 %v1368
      %2217 = vmatprep.subr.bf16.mxu0 0
      %2218 = vmatpush1.bf16.msra.mxu0 %v1369
      %2219 = vmatprep.subr.bf16.mxu0 0
      %2220 = vmatpush1.bf16.msra.mxu0 %v1370
      %2221 = vmatprep.subr.bf16.mxu0 0
      %2222 = vmatpush1.bf16.msra.mxu0 0
      %2223 = vmatprep.subr.bf16.mxu0 0
      %2224 = vmatpush1.bf16.msra.mxu0 0
      %2225 = vmatprep.subr.bf16.mxu0 0
      %2226 = vmatpush1.bf16.msra.mxu0 0
      %2227 = vmatprep.subr.bf16.mxu0 0
      %2228 = vmatpush1.bf16.msra.mxu0 0
      %2229 = vmatprep.subr.bf16.mxu0 0
      %2230 = vmatpush1.bf16.msra.mxu0 0
      %2231 = vmatprep.subr.bf16.mxu0 0
      %2232 = vmatpush1.bf16.msra.mxu0 0
      %2233 = vmatprep.subr.bf16.mxu0 0
      %2234 = vmatpush1.bf16.msra.mxu0 0
      %2235 = vmatprep.subr.bf16.mxu0 0
      %2236 = vmatpush1.bf16.msra.mxu0 0
      %2237 = vmatprep.mubr.bf16.mxu0 0
      %2238 = vmatmul.mubr.bf16.gmra.mrb[0].mxu0 %v2189
      %v2239 = vpop.f32.mrb[0].mxu0
      %v2240 = vadd.f32 %v2063, %v2239
      %v2241 = vpop.f32.mrb[0].mxu0
      %v2242 = vpop.f32.mrb[0].mxu0
      %v2243 = vadd.f32 %v2066, %v2242
      %v2244 = vpop.f32.mrb[0].mxu0
      %2245 = vmatprep.mubr.bf16.mxu0 0
      %2246 = vmatmul.mubr.bf16.gmra.mrb[0].mxu0 %v2190
      %v2247 = vpop.f32.mrb[0].mxu0
      %v2248 = vadd.f32 %v2071, %v2247
      %v2249 = vpop.f32.mrb[0].mxu0
      %v2250 = vpop.f32.mrb[0].mxu0
      %v2251 = vadd.f32 %v2074, %v2250
      %v2252 = vpop.f32.mrb[0].mxu0
      %2253 = vmatprep.mubr.bf16.mxu0 0
      %2254 = vmatmul.mubr.bf16.gmra.mrb[0].mxu0 %v2191
      %v2255 = vpop.f32.mrb[0].mxu0
      %v2256 = vadd.f32 %v2079, %v2255
      %v2257 = vpop.f32.mrb[0].mxu0
      %v2258 = vpop.f32.mrb[0].mxu0
      %v2259 = vadd.f32 %v2082, %v2258
      %v2260 = vpop.f32.mrb[0].mxu0
      %2261 = vmatprep.mubr.bf16.mxu0 0
      %2262 = vmatmul.mubr.bf16.gmra.mrb[0].mxu0 %v2192
      %v2263 = vpop.f32.mrb[0].mxu0
      %v2264 = vadd.f32 %v2087, %v2263
      %v2265 = vpop.f32.mrb[0].mxu0
      %v2266 = vpop.f32.mrb[0].mxu0
      %v2267 = vadd.f32 %v2090, %v2266
      %v2268 = vpop.f32.mrb[0].mxu0
      %2269 = vmatprep.mubr.bf16.mxu0 0
      %2270 = vmatmul.mubr.bf16.gmra.mrb[0].mxu0 %v2193
      %v2271 = vpop.f32.mrb[0].mxu0
      %v2272 = vadd.f32 %v2095, %v2271
      %v2273 = vpop.f32.mrb[0].mxu0
      %v2274 = vpop.f32.mrb[0].mxu0
      %v2275 = vadd.f32 %v2098, %v2274
      %v2276 = vpop.f32.mrb[0].mxu0
      %2277 = vmatprep.mubr.bf16.mxu0 0
      %2278 = vmatmul.mubr.bf16.gmra.mrb[0].mxu0 %v2194
      %v2279 = vpop.f32.mrb[0].mxu0
      %v2280 = vadd.f32 %v2103, %v2279
      %v2281 = vpop.f32.mrb[0].mxu0
      %v2282 = vpop.f32.mrb[0].mxu0
      %v2283 = vadd.f32 %v2106, %v2282
      %v2284 = vpop.f32.mrb[0].mxu0
      %2285 = vmatprep.mubr.bf16.mxu0 0
      %2286 = vmatmul.mubr.bf16.gmra.mrb[0].mxu0 %v2195
      %v2287 = vpop.f32.mrb[0].mxu0
      %v2288 = vadd.f32 %v2111, %v2287
      %v2289 = vpop.f32.mrb[0].mxu0
      %v2290 = vpop.f32.mrb[0].mxu0
      %v2291 = vadd.f32 %v2114, %v2290
      %v2292 = vpop.f32.mrb[0].mxu0
      %2293 = vmatprep.mubr.bf16.mxu0 0
      %2294 = vmatmul.mubr.bf16.gmra.mrb[0].mxu0 %v2196
      %v2295 = vpop.f32.mrb[0].mxu0
      %v2296 = vadd.f32 %v2119, %v2295
      %v2297 = vpop.f32.mrb[0].mxu0
      %v2298 = vpop.f32.mrb[0].mxu0
      %v2299 = vadd.f32 %v2122, %v2298
      %v2300 = vpop.f32.mrb[0].mxu0
      %2301 = vmatprep.mubr.bf16.mxu0 0
      %2302 = vmatmul.mubr.bf16.gmra.mrb[0].mxu0 %v2197
      %v2303 = vpop.f32.mrb[0].mxu0
      %v2304 = vadd.f32 %v2127, %v2303
      %v2305 = vpop.f32.mrb[0].mxu0
      %v2306 = vpop.f32.mrb[0].mxu0
      %v2307 = vadd.f32 %v2130, %v2306
      %v2308 = vpop.f32.mrb[0].mxu0
      %2309 = vmatprep.mubr.bf16.mxu0 0
      %2310 = vmatmul.mubr.bf16.gmra.mrb[0].mxu0 %v2198
      %v2311 = vpop.f32.mrb[0].mxu0
      %v2312 = vadd.f32 %v2135, %v2311
      %v2313 = vpop.f32.mrb[0].mxu0
      %v2314 = vpop.f32.mrb[0].mxu0
      %v2315 = vadd.f32 %v2138, %v2314
      %v2316 = vpop.f32.mrb[0].mxu0
      %2317 = vmatprep.mubr.bf16.mxu0 0
      %2318 = vmatmul.mubr.bf16.gmra.mrb[0].mxu0 %v2199
      %v2319 = vpop.f32.mrb[0].mxu0
      %v2320 = vadd.f32 %v2143, %v2319
      %v2321 = vpop.f32.mrb[0].mxu0
      %v2322 = vpop.f32.mrb[0].mxu0
      %v2323 = vadd.f32 %v2146, %v2322
      %v2324 = vpop.f32.mrb[0].mxu0
      %2325 = vmatprep.mubr.bf16.mxu0 0
      %2326 = vmatmul.mubr.bf16.gmra.mrb[0].mxu0 %v2200
      %v2327 = vpop.f32.mrb[0].mxu0
      %v2328 = vadd.f32 %v2151, %v2327
      %v2329 = vpop.f32.mrb[0].mxu0
      %v2330 = vpop.f32.mrb[0].mxu0
      %v2331 = vadd.f32 %v2154, %v2330
      %v2332 = vpop.f32.mrb[0].mxu0
      %2333 = vmatprep.mubr.bf16.mxu0 0
      %2334 = vmatmul.mubr.bf16.gmra.mrb[0].mxu0 %v2201
      %v2335 = vpop.f32.mrb[0].mxu0
      %v2336 = vadd.f32 %v2159, %v2335
      %v2337 = vpop.f32.mrb[0].mxu0
      %v2338 = vpop.f32.mrb[0].mxu0
      %v2339 = vadd.f32 %v2162, %v2338
      %v2340 = vpop.f32.mrb[0].mxu0
      %2341 = vmatprep.mubr.bf16.mxu0 0
      %2342 = vmatmul.mubr.bf16.gmra.mrb[0].mxu0 %v2202
      %v2343 = vpop.f32.mrb[0].mxu0
      %v2344 = vadd.f32 %v2167, %v2343
      %v2345 = vpop.f32.mrb[0].mxu0
      %v2346 = vpop.f32.mrb[0].mxu0
      %v2347 = vadd.f32 %v2170, %v2346
      %v2348 = vpop.f32.mrb[0].mxu0
      %2349 = vmatprep.mubr.bf16.mxu0 0
      %2350 = vmatmul.mubr.bf16.gmra.mrb[0].mxu0 %v2203
      %v2351 = vpop.f32.mrb[0].mxu0
      %v2352 = vadd.f32 %v2175, %v2351
      %v2353 = vpop.f32.mrb[0].mxu0
      %v2354 = vpop.f32.mrb[0].mxu0
      %v2355 = vadd.f32 %v2178, %v2354
      %v2356 = vpop.f32.mrb[0].mxu0
      %2357 = vmatprep.mubr.bf16.mxu0 0
      %2358 = vmatmul.mubr.bf16.gmra.mrb[0].mxu0 %v2204
      %v2359 = vpop.f32.mrb[0].mxu0
      %v2360 = vadd.f32 %v2183, %v2359
      %v2361 = vpop.f32.mrb[0].mxu0
      %v2362 = vpop.f32.mrb[0].mxu0
      %v2363 = vadd.f32 %v2186, %v2362
      %v2364 = vpop.f32.mrb[0].mxu0
      %2365 = vdwg.mxu0
      %v2366 = vmax.f32 %v2240, 0.0
      %v2367 = vmax.f32 %v2243, 0.0
      %v2368 = vmax.f32 %v2248, 0.0
      %v2369 = vmax.f32 %v2251, 0.0
      %v2370 = vmax.f32 %v2256, 0.0
      %v2371 = vmax.f32 %v2259, 0.0
      %v2372 = vmax.f32 %v2264, 0.0
      %v2373 = vmax.f32 %v2267, 0.0
      %v2374 = vmax.f32 %v2272, 0.0
      %v2375 = vmax.f32 %v2275, 0.0
      %v2376 = vmax.f32 %v2280, 0.0
      %v2377 = vmax.f32 %v2283, 0.0
      %v2378 = vmax.f32 %v2288, 0.0
      %v2379 = vmax.f32 %v2291, 0.0
      %v2380 = vmax.f32 %v2296, 0.0
      %v2381 = vmax.f32 %v2299, 0.0
      %v2382 = vmax.f32 %v2304, 0.0
      %v2383 = vmax.f32 %v2307, 0.0
      %v2384 = vmax.f32 %v2312, 0.0
      %v2385 = vmax.f32 %v2315, 0.0
      %v2386 = vmax.f32 %v2320, 0.0
      %v2387 = vmax.f32 %v2323, 0.0
      %v2388 = vmax.f32 %v2328, 0.0
      %v2389 = vmax.f32 %v2331, 0.0
      %v2390 = vmax.f32 %v2336, 0.0
      %v2391 = vmax.f32 %v2339, 0.0
      %v2392 = vmax.f32 %v2344, 0.0
      %v2393 = vmax.f32 %v2347, 0.0
      %v2394 = vmax.f32 %v2352, 0.0
      %v2395 = vmax.f32 %v2355, 0.0
      %v2396 = vmax.f32 %v2360, 0.0
      %v2397 = vmax.f32 %v2363, 0.0
      %v2398 = vpack.c.bf16 %v2367, %v2366
      %v2399 = vpack.c.bf16 %v2369, %v2368
      %v2400 = vpack.c.bf16 %v2371, %v2370
      %v2401 = vpack.c.bf16 %v2373, %v2372
      %v2402 = vpack.c.bf16 %v2375, %v2374
      %v2403 = vpack.c.bf16 %v2377, %v2376
      %v2404 = vpack.c.bf16 %v2379, %v2378
      %v2405 = vpack.c.bf16 %v2381, %v2380
      %v2406 = vpack.c.bf16 %v2383, %v2382
      %v2407 = vpack.c.bf16 %v2385, %v2384
      %v2408 = vpack.c.bf16 %v2387, %v2386
      %v2409 = vpack.c.bf16 %v2389, %v2388
      %v2410 = vpack.c.bf16 %v2391, %v2390
      %v2411 = vpack.c.bf16 %v2393, %v2392
      %v2412 = vpack.c.bf16 %v2395, %v2394
      %v2413 = vpack.c.bf16 %v2397, %v2396
      %2414 = vmatprep.subr.bf16.mxu0 0
      %2415 = vmatpush1.bf16.msra.mxu0 %v1643
      %2416 = vmatprep.subr.bf16.mxu0 0
      %2417 = vmatpush1.bf16.msra.mxu0 %v1644
      %2418 = vmatprep.subr.bf16.mxu0 0
      %2419 = vmatpush1.bf16.msra.mxu0 %v1645
      %2420 = vmatprep.subr.bf16.mxu0 0
      %2421 = vmatpush1.bf16.msra.mxu0 %v1646
      %2422 = vmatprep.subr.bf16.mxu0 0
      %2423 = vmatpush1.bf16.msra.mxu0 %v1647
      %2424 = vmatprep.subr.bf16.mxu0 0
      %2425 = vmatpush1.bf16.msra.mxu0 %v1648
      %2426 = vmatprep.subr.bf16.mxu0 0
      %2427 = vmatpush1.bf16.msra.mxu0 %v1649
      %2428 = vmatprep.subr.bf16.mxu0 0
      %2429 = vmatpush1.bf16.msra.mxu0 %v1650
      %2430 = vmatprep.subr.bf16.mxu0 0
      %2431 = vmatpush1.bf16.msra.mxu0 0
      %2432 = vmatprep.subr.bf16.mxu0 0
      %2433 = vmatpush1.bf16.msra.mxu0 0
      %2434 = vmatprep.subr.bf16.mxu0 0
      %2435 = vmatpush1.bf16.msra.mxu0 0
      %2436 = vmatprep.subr.bf16.mxu0 0
      %2437 = vmatpush1.bf16.msra.mxu0 0
      %2438 = vmatprep.subr.bf16.mxu0 0
      %2439 = vmatpush1.bf16.msra.mxu0 0
      %2440 = vmatprep.subr.bf16.mxu0 0
      %2441 = vmatpush1.bf16.msra.mxu0 0
      %2442 = vmatprep.subr.bf16.mxu0 0
      %2443 = vmatpush1.bf16.msra.mxu0 0
      %2444 = vmatprep.subr.bf16.mxu0 0
      %2445 = vmatpush1.bf16.msra.mxu0 0
      %2446 = vmatprep.mubr.bf16.mxu0 0
      %2447 = vmatmul.mubr.bf16.gmra.mrb[0].mxu0 %v2398
      %v2448 = vpop.f32.mrb[0].mxu0
      %v2449 = vadd.f32 %v1609, %v2448
      %v2450 = vpop.f32.mrb[0].mxu0
      %v2451 = vpop.f32.mrb[0].mxu0
      %v2452 = vadd.f32 %v1609, %v2451
      %v2453 = vpop.f32.mrb[0].mxu0
      %2454 = vmatprep.mubr.bf16.mxu0 0
      %2455 = vmatmul.mubr.bf16.gmra.mrb[0].mxu0 %v2399
      %v2456 = vpop.f32.mrb[0].mxu0
      %v2457 = vadd.f32 %v1609, %v2456
      %v2458 = vpop.f32.mrb[0].mxu0
      %v2459 = vpop.f32.mrb[0].mxu0
      %v2460 = vadd.f32 %v1609, %v2459
      %v2461 = vpop.f32.mrb[0].mxu0
      %2462 = vmatprep.mubr.bf16.mxu0 0
      %2463 = vmatmul.mubr.bf16.gmra.mrb[0].mxu0 %v2400
      %v2464 = vpop.f32.mrb[0].mxu0
      %v2465 = vadd.f32 %v1609, %v2464
      %v2466 = vpop.f32.mrb[0].mxu0
      %v2467 = vpop.f32.mrb[0].mxu0
      %v2468 = vadd.f32 %v1609, %v2467
      %v2469 = vpop.f32.mrb[0].mxu0
      %2470 = vmatprep.mubr.bf16.mxu0 0
      %2471 = vmatmul.mubr.bf16.gmra.mrb[0].mxu0 %v2401
      %v2472 = vpop.f32.mrb[0].mxu0
      %v2473 = vadd.f32 %v1609, %v2472
      %v2474 = vpop.f32.mrb[0].mxu0
      %v2475 = vpop.f32.mrb[0].mxu0
      %v2476 = vadd.f32 %v1609, %v2475
      %v2477 = vpop.f32.mrb[0].mxu0
      %2478 = vmatprep.mubr.bf16.mxu0 0
      %2479 = vmatmul.mubr.bf16.gmra.mrb[0].mxu0 %v2402
      %v2480 = vpop.f32.mrb[0].mxu0
      %v2481 = vadd.f32 %v1609, %v2480
      %v2482 = vpop.f32.mrb[0].mxu0
      %v2483 = vpop.f32.mrb[0].mxu0
      %v2484 = vadd.f32 %v1609, %v2483
      %v2485 = vpop.f32.mrb[0].mxu0
      %2486 = vmatprep.mubr.bf16.mxu0 0
      %2487 = vmatmul.mubr.bf16.gmra.mrb[0].mxu0 %v2403
      %v2488 = vpop.f32.mrb[0].mxu0
      %v2489 = vadd.f32 %v1609, %v2488
      %v2490 = vpop.f32.mrb[0].mxu0
      %v2491 = vpop.f32.mrb[0].mxu0
      %v2492 = vadd.f32 %v1609, %v2491
      %v2493 = vpop.f32.mrb[0].mxu0
      %2494 = vmatprep.mubr.bf16.mxu0 0
      %2495 = vmatmul.mubr.bf16.gmra.mrb[0].mxu0 %v2404
      %v2496 = vpop.f32.mrb[0].mxu0
      %v2497 = vadd.f32 %v1609, %v2496
      %v2498 = vpop.f32.mrb[0].mxu0
      %v2499 = vpop.f32.mrb[0].mxu0
      %v2500 = vadd.f32 %v1609, %v2499
      %v2501 = vpop.f32.mrb[0].mxu0
      %2502 = vmatprep.mubr.bf16.mxu0 0
      %2503 = vmatmul.mubr.bf16.gmra.mrb[0].mxu0 %v2405
      %v2504 = vpop.f32.mrb[0].mxu0
      %v2505 = vadd.f32 %v1609, %v2504
      %v2506 = vpop.f32.mrb[0].mxu0
      %v2507 = vpop.f32.mrb[0].mxu0
      %v2508 = vadd.f32 %v1609, %v2507
      %v2509 = vpop.f32.mrb[0].mxu0
      %2510 = vmatprep.mubr.bf16.mxu0 0
      %2511 = vmatmul.mubr.bf16.gmra.mrb[0].mxu0 %v2406
      %v2512 = vpop.f32.mrb[0].mxu0
      %v2513 = vadd.f32 %v1609, %v2512
      %v2514 = vpop.f32.mrb[0].mxu0
      %v2515 = vpop.f32.mrb[0].mxu0
      %v2516 = vadd.f32 %v1609, %v2515
      %v2517 = vpop.f32.mrb[0].mxu0
      %2518 = vmatprep.mubr.bf16.mxu0 0
      %2519 = vmatmul.mubr.bf16.gmra.mrb[0].mxu0 %v2407
      %v2520 = vpop.f32.mrb[0].mxu0
      %v2521 = vadd.f32 %v1609, %v2520
      %v2522 = vpop.f32.mrb[0].mxu0
      %v2523 = vpop.f32.mrb[0].mxu0
      %v2524 = vadd.f32 %v1609, %v2523
      %v2525 = vpop.f32.mrb[0].mxu0
      %2526 = vmatprep.mubr.bf16.mxu0 0
      %2527 = vmatmul.mubr.bf16.gmra.mrb[0].mxu0 %v2408
      %v2528 = vpop.f32.mrb[0].mxu0
      %v2529 = vadd.f32 %v1609, %v2528
      %v2530 = vpop.f32.mrb[0].mxu0
      %v2531 = vpop.f32.mrb[0].mxu0
      %v2532 = vadd.f32 %v1609, %v2531
      %v2533 = vpop.f32.mrb[0].mxu0
      %2534 = vmatprep.mubr.bf16.mxu0 0
      %2535 = vmatmul.mubr.bf16.gmra.mrb[0].mxu0 %v2409
      %v2536 = vpop.f32.mrb[0].mxu0
      %v2537 = vadd.f32 %v1609, %v2536
      %v2538 = vpop.f32.mrb[0].mxu0
      %v2539 = vpop.f32.mrb[0].mxu0
      %v2540 = vadd.f32 %v1609, %v2539
      %v2541 = vpop.f32.mrb[0].mxu0
      %2542 = vmatprep.mubr.bf16.mxu0 0
      %2543 = vmatmul.mubr.bf16.gmra.mrb[0].mxu0 %v2410
      %v2544 = vpop.f32.mrb[0].mxu0
      %v2545 = vadd.f32 %v1609, %v2544
      %v2546 = vpop.f32.mrb[0].mxu0
      %v2547 = vpop.f32.mrb[0].mxu0
      %v2548 = vadd.f32 %v1609, %v2547
      %v2549 = vpop.f32.mrb[0].mxu0
      %2550 = vmatprep.mubr.bf16.mxu0 0
      %2551 = vmatmul.mubr.bf16.gmra.mrb[0].mxu0 %v2411
      %v2552 = vpop.f32.mrb[0].mxu0
      %v2553 = vadd.f32 %v1609, %v2552
      %v2554 = vpop.f32.mrb[0].mxu0
      %v2555 = vpop.f32.mrb[0].mxu0
      %v2556 = vadd.f32 %v1609, %v2555
      %v2557 = vpop.f32.mrb[0].mxu0
      %2558 = vmatprep.mubr.bf16.mxu0 0
      %2559 = vmatmul.mubr.bf16.gmra.mrb[0].mxu0 %v2412
      %v2560 = vpop.f32.mrb[0].mxu0
      %v2561 = vadd.f32 %v1609, %v2560
      %v2562 = vpop.f32.mrb[0].mxu0
      %v2563 = vpop.f32.mrb[0].mxu0
      %v2564 = vadd.f32 %v1609, %v2563
      %v2565 = vpop.f32.mrb[0].mxu0
      %2566 = vmatprep.mubr.bf16.mxu0 0
      %2567 = vmatmul.mubr.bf16.gmra.mrb[0].mxu0 %v2413
      %v2568 = vpop.f32.mrb[0].mxu0
      %v2569 = vadd.f32 %v1609, %v2568
      %v2570 = vpop.f32.mrb[0].mxu0
      %v2571 = vpop.f32.mrb[0].mxu0
      %v2572 = vadd.f32 %v1609, %v2571
      %v2573 = vpop.f32.mrb[0].mxu0
      %2574 = vdwg.mxu0
      %2575 = vset.pattern.permute.xlu0 2
      %2576 = vperm.xlu0 %2575, %v832
      %v2577 = vpop.permute.xlu0 %2576
      %2578 = vset.pattern.permute.xlu0 2
      %2579 = vperm.xlu0 %2578, %v833
      %v2580 = vpop.permute.xlu0 %2579
      %2581 = vset.pattern.permute.xlu0 2
      %2582 = vperm.xlu0 %2581, %v834
      %v2583 = vpop.permute.xlu0 %2582
      %2584 = vset.pattern.permute.xlu0 2
      %2585 = vperm.xlu0 %2584, %v835
      %v2586 = vpop.permute.xlu0 %2585
      %2587 = vset.pattern.permute.xlu0 2
      %2588 = vperm.xlu0 %2587, %v836
      %v2589 = vpop.permute.xlu0 %2588
      %2590 = vset.pattern.permute.xlu0 2
      %2591 = vperm.xlu0 %2590, %v837
      %v2592 = vpop.permute.xlu0 %2591
      %2593 = vset.pattern.permute.xlu0 2
      %2594 = vperm.xlu0 %2593, %v838
      %v2595 = vpop.permute.xlu0 %2594
      %2596 = vset.pattern.permute.xlu0 2
      %2597 = vperm.xlu0 %2596, %v839
      %v2598 = vpop.permute.xlu0 %2597
      %2599 = vset.pattern.permute.xlu0 2
      %2600 = vperm.xlu0 %2599, %v840
      %v2601 = vpop.permute.xlu0 %2600
      %2602 = vset.pattern.permute.xlu0 2
      %2603 = vperm.xlu0 %2602, %v841
      %v2604 = vpop.permute.xlu0 %2603
      %2605 = vset.pattern.permute.xlu0 2
      %2606 = vperm.xlu0 %2605, %v842
      %v2607 = vpop.permute.xlu0 %2606
      %2608 = vset.pattern.permute.xlu0 2
      %2609 = vperm.xlu0 %2608, %v843
      %v2610 = vpop.permute.xlu0 %2609
      %2611 = vset.pattern.permute.xlu0 2
      %2612 = vperm.xlu0 %2611, %v844
      %v2613 = vpop.permute.xlu0 %2612
      %2614 = vset.pattern.permute.xlu0 2
      %2615 = vperm.xlu0 %2614, %v845
      %v2616 = vpop.permute.xlu0 %2615
      %2617 = vset.pattern.permute.xlu0 2
      %2618 = vperm.xlu0 %2617, %v846
      %v2619 = vpop.permute.xlu0 %2618
      %2620 = vset.pattern.permute.xlu0 2
      %2621 = vperm.xlu0 %2620, %v847
      %v2622 = vpop.permute.xlu0 %2621
      %2623 = vset.pattern.permute.xlu0 2
      %2624 = vperm.xlu0 %2623, %v848
      %v2625 = vpop.permute.xlu0 %2624
      %2626 = vset.pattern.permute.xlu0 2
      %2627 = vperm.xlu0 %2626, %v849
      %v2628 = vpop.permute.xlu0 %2627
      %2629 = vset.pattern.permute.xlu0 2
      %2630 = vperm.xlu0 %2629, %v850
      %v2631 = vpop.permute.xlu0 %2630
      %2632 = vset.pattern.permute.xlu0 2
      %2633 = vperm.xlu0 %2632, %v851
      %v2634 = vpop.permute.xlu0 %2633
      %2635 = vset.pattern.permute.xlu0 2
      %2636 = vperm.xlu0 %2635, %v852
      %v2637 = vpop.permute.xlu0 %2636
      %2638 = vset.pattern.permute.xlu0 2
      %2639 = vperm.xlu0 %2638, %v853
      %v2640 = vpop.permute.xlu0 %2639
      %2641 = vset.pattern.permute.xlu0 2
      %2642 = vperm.xlu0 %2641, %v854
      %v2643 = vpop.permute.xlu0 %2642
      %2644 = vset.pattern.permute.xlu0 2
      %2645 = vperm.xlu0 %2644, %v855
      %v2646 = vpop.permute.xlu0 %2645
      %2647 = vset.pattern.permute.xlu0 2
      %2648 = vperm.xlu0 %2647, %v856
      %v2649 = vpop.permute.xlu0 %2648
      %2650 = vset.pattern.permute.xlu0 2
      %2651 = vperm.xlu0 %2650, %v857
      %v2652 = vpop.permute.xlu0 %2651
      %2653 = vset.pattern.permute.xlu0 2
      %2654 = vperm.xlu0 %2653, %v858
      %v2655 = vpop.permute.xlu0 %2654
      %2656 = vset.pattern.permute.xlu0 2
      %2657 = vperm.xlu0 %2656, %v859
      %v2658 = vpop.permute.xlu0 %2657
      %2659 = vset.pattern.permute.xlu0 2
      %2660 = vperm.xlu0 %2659, %v860
      %v2661 = vpop.permute.xlu0 %2660
      %2662 = vset.pattern.permute.xlu0 2
      %2663 = vperm.xlu0 %2662, %v861
      %v2664 = vpop.permute.xlu0 %2663
      %2665 = vset.pattern.permute.xlu0 2
      %2666 = vperm.xlu0 %2665, %v862
      %v2667 = vpop.permute.xlu0 %2666
      %2668 = vset.pattern.permute.xlu0 2
      %2669 = vperm.xlu0 %2668, %v863
      %v2670 = vpop.permute.xlu0 %2669
      %vm2671 = vcmp.eq.s32.totalorder %v2577, %v865
      %vm2672 = vcmp.eq.s32.totalorder %v2580, %v865
      %vm2673 = vcmp.eq.s32.totalorder %v2583, %v865
      %vm2674 = vcmp.eq.s32.totalorder %v2586, %v865
      %vm2675 = vcmp.eq.s32.totalorder %v2589, %v865
      %vm2676 = vcmp.eq.s32.totalorder %v2592, %v865
      %vm2677 = vcmp.eq.s32.totalorder %v2595, %v865
      %vm2678 = vcmp.eq.s32.totalorder %v2598, %v865
      %vm2679 = vcmp.eq.s32.totalorder %v2601, %v865
      %vm2680 = vcmp.eq.s32.totalorder %v2604, %v865
      %vm2681 = vcmp.eq.s32.totalorder %v2607, %v865
      %vm2682 = vcmp.eq.s32.totalorder %v2610, %v865
      %vm2683 = vcmp.eq.s32.totalorder %v2613, %v865
      %vm2684 = vcmp.eq.s32.totalorder %v2616, %v865
      %vm2685 = vcmp.eq.s32.totalorder %v2619, %v865
      %vm2686 = vcmp.eq.s32.totalorder %v2622, %v865
      %vm2687 = vcmp.eq.s32.totalorder %v2625, %v865
      %vm2688 = vcmp.eq.s32.totalorder %v2628, %v865
      %vm2689 = vcmp.eq.s32.totalorder %v2631, %v865
      %vm2690 = vcmp.eq.s32.totalorder %v2634, %v865
      %vm2691 = vcmp.eq.s32.totalorder %v2637, %v865
      %vm2692 = vcmp.eq.s32.totalorder %v2640, %v865
      %vm2693 = vcmp.eq.s32.totalorder %v2643, %v865
      %vm2694 = vcmp.eq.s32.totalorder %v2646, %v865
      %vm2695 = vcmp.eq.s32.totalorder %v2649, %v865
      %vm2696 = vcmp.eq.s32.totalorder %v2652, %v865
      %vm2697 = vcmp.eq.s32.totalorder %v2655, %v865
      %vm2698 = vcmp.eq.s32.totalorder %v2658, %v865
      %vm2699 = vcmp.eq.s32.totalorder %v2661, %v865
      %vm2700 = vcmp.eq.s32.totalorder %v2664, %v865
      %vm2701 = vcmp.eq.s32.totalorder %v2667, %v865
      %vm2702 = vcmp.eq.s32.totalorder %v2670, %v865
      %v2703 = vsel %vm2671, 1, 0
      %v2704 = vsel %vm2672, 1, 0
      %v2705 = vsel %vm2673, 1, 0
      %v2706 = vsel %vm2674, 1, 0
      %v2707 = vsel %vm2675, 1, 0
      %v2708 = vsel %vm2676, 1, 0
      %v2709 = vsel %vm2677, 1, 0
      %v2710 = vsel %vm2678, 1, 0
      %v2711 = vsel %vm2679, 1, 0
      %v2712 = vsel %vm2680, 1, 0
      %v2713 = vsel %vm2681, 1, 0
      %v2714 = vsel %vm2682, 1, 0
      %v2715 = vsel %vm2683, 1, 0
      %v2716 = vsel %vm2684, 1, 0
      %v2717 = vsel %vm2685, 1, 0
      %v2718 = vsel %vm2686, 1, 0
      %v2719 = vsel %vm2687, 1, 0
      %v2720 = vsel %vm2688, 1, 0
      %v2721 = vsel %vm2689, 1, 0
      %v2722 = vsel %vm2690, 1, 0
      %v2723 = vsel %vm2691, 1, 0
      %v2724 = vsel %vm2692, 1, 0
      %v2725 = vsel %vm2693, 1, 0
      %v2726 = vsel %vm2694, 1, 0
      %v2727 = vsel %vm2695, 1, 0
      %v2728 = vsel %vm2696, 1, 0
      %v2729 = vsel %vm2697, 1, 0
      %v2730 = vsel %vm2698, 1, 0
      %v2731 = vsel %vm2699, 1, 0
      %v2732 = vsel %vm2700, 1, 0
      %v2733 = vsel %vm2701, 1, 0
      %v2734 = vsel %vm2702, 1, 0
      %v2735 = vcvt.s32.f32 %v2703
      %v2736 = vcvt.s32.f32 %v2704
      %v2737 = vcvt.s32.f32 %v2705
      %v2738 = vcvt.s32.f32 %v2706
      %v2739 = vcvt.s32.f32 %v2707
      %v2740 = vcvt.s32.f32 %v2708
      %v2741 = vcvt.s32.f32 %v2709
      %v2742 = vcvt.s32.f32 %v2710
      %v2743 = vcvt.s32.f32 %v2711
      %v2744 = vcvt.s32.f32 %v2712
      %v2745 = vcvt.s32.f32 %v2713
      %v2746 = vcvt.s32.f32 %v2714
      %v2747 = vcvt.s32.f32 %v2715
      %v2748 = vcvt.s32.f32 %v2716
      %v2749 = vcvt.s32.f32 %v2717
      %v2750 = vcvt.s32.f32 %v2718
      %v2751 = vcvt.s32.f32 %v2719
      %v2752 = vcvt.s32.f32 %v2720
      %v2753 = vcvt.s32.f32 %v2721
      %v2754 = vcvt.s32.f32 %v2722
      %v2755 = vcvt.s32.f32 %v2723
      %v2756 = vcvt.s32.f32 %v2724
      %v2757 = vcvt.s32.f32 %v2725
      %v2758 = vcvt.s32.f32 %v2726
      %v2759 = vcvt.s32.f32 %v2727
      %v2760 = vcvt.s32.f32 %v2728
      %v2761 = vcvt.s32.f32 %v2729
      %v2762 = vcvt.s32.f32 %v2730
      %v2763 = vcvt.s32.f32 %v2731
      %v2764 = vcvt.s32.f32 %v2732
      %v2765 = vcvt.s32.f32 %v2733
      %v2766 = vcvt.s32.f32 %v2734
      %v2767 = vpack.c.bf16 %v2736, %v2735
      %v2768 = vpack.c.bf16 %v2738, %v2737
      %v2769 = vpack.c.bf16 %v2740, %v2739
      %v2770 = vpack.c.bf16 %v2742, %v2741
      %v2771 = vpack.c.bf16 %v2744, %v2743
      %v2772 = vpack.c.bf16 %v2746, %v2745
      %v2773 = vpack.c.bf16 %v2748, %v2747
      %v2774 = vpack.c.bf16 %v2750, %v2749
      %v2775 = vpack.c.bf16 %v2752, %v2751
      %v2776 = vpack.c.bf16 %v2754, %v2753
      %v2777 = vpack.c.bf16 %v2756, %v2755
      %v2778 = vpack.c.bf16 %v2758, %v2757
      %v2779 = vpack.c.bf16 %v2760, %v2759
      %v2780 = vpack.c.bf16 %v2762, %v2761
      %v2781 = vpack.c.bf16 %v2764, %v2763
      %v2782 = vpack.c.bf16 %v2766, %v2765
      %2783 = vmatprep.subr.bf16.mxu0 0
      %2784 = vmatpush1.bf16.msra.mxu0 %v1122
      %2785 = vmatprep.subr.bf16.mxu0 0
      %2786 = vmatpush1.bf16.msra.mxu0 %v1123
      %2787 = vmatprep.subr.bf16.mxu0 0
      %2788 = vmatpush1.bf16.msra.mxu0 %v1124
      %2789 = vmatprep.subr.bf16.mxu0 0
      %2790 = vmatpush1.bf16.msra.mxu0 %v1125
      %2791 = vmatprep.subr.bf16.mxu0 0
      %2792 = vmatpush1.bf16.msra.mxu0 %v1126
      %2793 = vmatprep.subr.bf16.mxu0 0
      %2794 = vmatpush1.bf16.msra.mxu0 %v1127
      %2795 = vmatprep.subr.bf16.mxu0 0
      %2796 = vmatpush1.bf16.msra.mxu0 %v1128
      %2797 = vmatprep.subr.bf16.mxu0 0
      %2798 = vmatpush1.bf16.msra.mxu0 %v1129
      %2799 = vmatprep.subr.bf16.mxu0 0
      %2800 = vmatpush1.bf16.msra.mxu0 0
      %2801 = vmatprep.subr.bf16.mxu0 0
      %2802 = vmatpush1.bf16.msra.mxu0 0
      %2803 = vmatprep.subr.bf16.mxu0 0
      %2804 = vmatpush1.bf16.msra.mxu0 0
      %2805 = vmatprep.subr.bf16.mxu0 0
      %2806 = vmatpush1.bf16.msra.mxu0 0
      %2807 = vmatprep.subr.bf16.mxu0 0
      %2808 = vmatpush1.bf16.msra.mxu0 0
      %2809 = vmatprep.subr.bf16.mxu0 0
      %2810 = vmatpush1.bf16.msra.mxu0 0
      %2811 = vmatprep.subr.bf16.mxu0 0
      %2812 = vmatpush1.bf16.msra.mxu0 0
      %2813 = vmatprep.subr.bf16.mxu0 0
      %2814 = vmatpush1.bf16.msra.mxu0 0
      %2815 = vmatprep.mubr.bf16.mxu0 0
      %2816 = vmatmul.mubr.bf16.gmra.mrb[0].mxu0 %v2767
      %v2817 = vpop.f32.mrb[0].mxu0
      %v2818 = vadd.f32 0.0, %v2817
      %v2819 = vpop.f32.mrb[0].mxu0
      %v2820 = vpop.f32.mrb[0].mxu0
      %v2821 = vadd.f32 0.0, %v2820
      %v2822 = vpop.f32.mrb[0].mxu0
      %2823 = vmatprep.mubr.bf16.mxu0 0
      %2824 = vmatmul.mubr.bf16.gmra.mrb[0].mxu0 %v2768
      %v2825 = vpop.f32.mrb[0].mxu0
      %v2826 = vadd.f32 0.0, %v2825
      %v2827 = vpop.f32.mrb[0].mxu0
      %v2828 = vpop.f32.mrb[0].mxu0
      %v2829 = vadd.f32 0.0, %v2828
      %v2830 = vpop.f32.mrb[0].mxu0
      %2831 = vmatprep.mubr.bf16.mxu0 0
      %2832 = vmatmul.mubr.bf16.gmra.mrb[0].mxu0 %v2769
      %v2833 = vpop.f32.mrb[0].mxu0
      %v2834 = vadd.f32 0.0, %v2833
      %v2835 = vpop.f32.mrb[0].mxu0
      %v2836 = vpop.f32.mrb[0].mxu0
      %v2837 = vadd.f32 0.0, %v2836
      %v2838 = vpop.f32.mrb[0].mxu0
      %2839 = vmatprep.mubr.bf16.mxu0 0
      %2840 = vmatmul.mubr.bf16.gmra.mrb[0].mxu0 %v2770
      %v2841 = vpop.f32.mrb[0].mxu0
      %v2842 = vadd.f32 0.0, %v2841
      %v2843 = vpop.f32.mrb[0].mxu0
      %v2844 = vpop.f32.mrb[0].mxu0
      %v2845 = vadd.f32 0.0, %v2844
      %v2846 = vpop.f32.mrb[0].mxu0
      %2847 = vmatprep.mubr.bf16.mxu0 0
      %2848 = vmatmul.mubr.bf16.gmra.mrb[0].mxu0 %v2771
      %v2849 = vpop.f32.mrb[0].mxu0
      %v2850 = vadd.f32 0.0, %v2849
      %v2851 = vpop.f32.mrb[0].mxu0
      %v2852 = vpop.f32.mrb[0].mxu0
      %v2853 = vadd.f32 0.0, %v2852
      %v2854 = vpop.f32.mrb[0].mxu0
      %2855 = vmatprep.mubr.bf16.mxu0 0
      %2856 = vmatmul.mubr.bf16.gmra.mrb[0].mxu0 %v2772
      %v2857 = vpop.f32.mrb[0].mxu0
      %v2858 = vadd.f32 0.0, %v2857
      %v2859 = vpop.f32.mrb[0].mxu0
      %v2860 = vpop.f32.mrb[0].mxu0
      %v2861 = vadd.f32 0.0, %v2860
      %v2862 = vpop.f32.mrb[0].mxu0
      %2863 = vmatprep.mubr.bf16.mxu0 0
      %2864 = vmatmul.mubr.bf16.gmra.mrb[0].mxu0 %v2773
      %v2865 = vpop.f32.mrb[0].mxu0
      %v2866 = vadd.f32 0.0, %v2865
      %v2867 = vpop.f32.mrb[0].mxu0
      %v2868 = vpop.f32.mrb[0].mxu0
      %v2869 = vadd.f32 0.0, %v2868
      %v2870 = vpop.f32.mrb[0].mxu0
      %2871 = vmatprep.mubr.bf16.mxu0 0
      %2872 = vmatmul.mubr.bf16.gmra.mrb[0].mxu0 %v2774
      %v2873 = vpop.f32.mrb[0].mxu0
      %v2874 = vadd.f32 0.0, %v2873
      %v2875 = vpop.f32.mrb[0].mxu0
      %v2876 = vpop.f32.mrb[0].mxu0
      %v2877 = vadd.f32 0.0, %v2876
      %v2878 = vpop.f32.mrb[0].mxu0
      %2879 = vmatprep.mubr.bf16.mxu0 0
      %2880 = vmatmul.mubr.bf16.gmra.mrb[0].mxu0 %v2775
      %v2881 = vpop.f32.mrb[0].mxu0
      %v2882 = vadd.f32 0.0, %v2881
      %v2883 = vpop.f32.mrb[0].mxu0
      %v2884 = vpop.f32.mrb[0].mxu0
      %v2885 = vadd.f32 0.0, %v2884
      %v2886 = vpop.f32.mrb[0].mxu0
      %2887 = vmatprep.mubr.bf16.mxu0 0
      %2888 = vmatmul.mubr.bf16.gmra.mrb[0].mxu0 %v2776
      %v2889 = vpop.f32.mrb[0].mxu0
      %v2890 = vadd.f32 0.0, %v2889
      %v2891 = vpop.f32.mrb[0].mxu0
      %v2892 = vpop.f32.mrb[0].mxu0
      %v2893 = vadd.f32 0.0, %v2892
      %v2894 = vpop.f32.mrb[0].mxu0
      %2895 = vmatprep.mubr.bf16.mxu0 0
      %2896 = vmatmul.mubr.bf16.gmra.mrb[0].mxu0 %v2777
      %v2897 = vpop.f32.mrb[0].mxu0
      %v2898 = vadd.f32 0.0, %v2897
      %v2899 = vpop.f32.mrb[0].mxu0
      %v2900 = vpop.f32.mrb[0].mxu0
      %v2901 = vadd.f32 0.0, %v2900
      %v2902 = vpop.f32.mrb[0].mxu0
      %2903 = vmatprep.mubr.bf16.mxu0 0
      %2904 = vmatmul.mubr.bf16.gmra.mrb[0].mxu0 %v2778
      %v2905 = vpop.f32.mrb[0].mxu0
      %v2906 = vadd.f32 0.0, %v2905
      %v2907 = vpop.f32.mrb[0].mxu0
      %v2908 = vpop.f32.mrb[0].mxu0
      %v2909 = vadd.f32 0.0, %v2908
      %v2910 = vpop.f32.mrb[0].mxu0
      %2911 = vmatprep.mubr.bf16.mxu0 0
      %2912 = vmatmul.mubr.bf16.gmra.mrb[0].mxu0 %v2779
      %v2913 = vpop.f32.mrb[0].mxu0
      %v2914 = vadd.f32 0.0, %v2913
      %v2915 = vpop.f32.mrb[0].mxu0
      %v2916 = vpop.f32.mrb[0].mxu0
      %v2917 = vadd.f32 0.0, %v2916
      %v2918 = vpop.f32.mrb[0].mxu0
      %2919 = vmatprep.mubr.bf16.mxu0 0
      %2920 = vmatmul.mubr.bf16.gmra.mrb[0].mxu0 %v2780
      %v2921 = vpop.f32.mrb[0].mxu0
      %v2922 = vadd.f32 0.0, %v2921
      %v2923 = vpop.f32.mrb[0].mxu0
      %v2924 = vpop.f32.mrb[0].mxu0
      %v2925 = vadd.f32 0.0, %v2924
      %v2926 = vpop.f32.mrb[0].mxu0
      %2927 = vmatprep.mubr.bf16.mxu0 0
      %2928 = vmatmul.mubr.bf16.gmra.mrb[0].mxu0 %v2781
      %v2929 = vpop.f32.mrb[0].mxu0
      %v2930 = vadd.f32 0.0, %v2929
      %v2931 = vpop.f32.mrb[0].mxu0
      %v2932 = vpop.f32.mrb[0].mxu0
      %v2933 = vadd.f32 0.0, %v2932
      %v2934 = vpop.f32.mrb[0].mxu0
      %2935 = vmatprep.mubr.bf16.mxu0 0
      %2936 = vmatmul.mubr.bf16.gmra.mrb[0].mxu0 %v2782
      %v2937 = vpop.f32.mrb[0].mxu0
      %v2938 = vadd.f32 0.0, %v2937
      %v2939 = vpop.f32.mrb[0].mxu0
      %v2940 = vpop.f32.mrb[0].mxu0
      %v2941 = vadd.f32 0.0, %v2940
      %v2942 = vpop.f32.mrb[0].mxu0
      %2943 = vdwg.mxu0
      %v2944 = vpack.c.bf16 %v2452, %v2449
      %v2945 = vpack.c.bf16 %v2460, %v2457
      %v2946 = vpack.c.bf16 %v2468, %v2465
      %v2947 = vpack.c.bf16 %v2476, %v2473
      %v2948 = vpack.c.bf16 %v2484, %v2481
      %v2949 = vpack.c.bf16 %v2492, %v2489
      %v2950 = vpack.c.bf16 %v2500, %v2497
      %v2951 = vpack.c.bf16 %v2508, %v2505
      %v2952 = vpack.c.bf16 %v2516, %v2513
      %v2953 = vpack.c.bf16 %v2524, %v2521
      %v2954 = vpack.c.bf16 %v2532, %v2529
      %v2955 = vpack.c.bf16 %v2540, %v2537
      %v2956 = vpack.c.bf16 %v2548, %v2545
      %v2957 = vpack.c.bf16 %v2556, %v2553
      %v2958 = vpack.c.bf16 %v2564, %v2561
      %v2959 = vpack.c.bf16 %v2572, %v2569
      %2960 = vmatprep.subr.bf16.mxu0 0
      %2961 = vmatpush1.bf16.msra.mxu0 %v1363
      %2962 = vmatprep.subr.bf16.mxu0 0
      %2963 = vmatpush1.bf16.msra.mxu0 %v1364
      %2964 = vmatprep.subr.bf16.mxu0 0
      %2965 = vmatpush1.bf16.msra.mxu0 %v1365
      %2966 = vmatprep.subr.bf16.mxu0 0
      %2967 = vmatpush1.bf16.msra.mxu0 %v1366
      %2968 = vmatprep.subr.bf16.mxu0 0
      %2969 = vmatpush1.bf16.msra.mxu0 %v1367
      %2970 = vmatprep.subr.bf16.mxu0 0
      %2971 = vmatpush1.bf16.msra.mxu0 %v1368
      %2972 = vmatprep.subr.bf16.mxu0 0
      %2973 = vmatpush1.bf16.msra.mxu0 %v1369
      %2974 = vmatprep.subr.bf16.mxu0 0
      %2975 = vmatpush1.bf16.msra.mxu0 %v1370
      %2976 = vmatprep.subr.bf16.mxu0 0
      %2977 = vmatpush1.bf16.msra.mxu0 0
      %2978 = vmatprep.subr.bf16.mxu0 0
      %2979 = vmatpush1.bf16.msra.mxu0 0
      %2980 = vmatprep.subr.bf16.mxu0 0
      %2981 = vmatpush1.bf16.msra.mxu0 0
      %2982 = vmatprep.subr.bf16.mxu0 0
      %2983 = vmatpush1.bf16.msra.mxu0 0
      %2984 = vmatprep.subr.bf16.mxu0 0
      %2985 = vmatpush1.bf16.msra.mxu0 0
      %2986 = vmatprep.subr.bf16.mxu0 0
      %2987 = vmatpush1.bf16.msra.mxu0 0
      %2988 = vmatprep.subr.bf16.mxu0 0
      %2989 = vmatpush1.bf16.msra.mxu0 0
      %2990 = vmatprep.subr.bf16.mxu0 0
      %2991 = vmatpush1.bf16.msra.mxu0 0
      %2992 = vmatprep.mubr.bf16.mxu0 0
      %2993 = vmatmul.mubr.bf16.gmra.mrb[0].mxu0 %v2944
      %v2994 = vpop.f32.mrb[0].mxu0
      %v2995 = vadd.f32 %v2818, %v2994
      %v2996 = vpop.f32.mrb[0].mxu0
      %v2997 = vpop.f32.mrb[0].mxu0
      %v2998 = vadd.f32 %v2821, %v2997
      %v2999 = vpop.f32.mrb[0].mxu0
      %3000 = vmatprep.mubr.bf16.mxu0 0
      %3001 = vmatmul.mubr.bf16.gmra.mrb[0].mxu0 %v2945
      %v3002 = vpop.f32.mrb[0].mxu0
      %v3003 = vadd.f32 %v2826, %v3002
      %v3004 = vpop.f32.mrb[0].mxu0
      %v3005 = vpop.f32.mrb[0].mxu0
      %v3006 = vadd.f32 %v2829, %v3005
      %v3007 = vpop.f32.mrb[0].mxu0
      %3008 = vmatprep.mubr.bf16.mxu0 0
      %3009 = vmatmul.mubr.bf16.gmra.mrb[0].mxu0 %v2946
      %v3010 = vpop.f32.mrb[0].mxu0
      %v3011 = vadd.f32 %v2834, %v3010
      %v3012 = vpop.f32.mrb[0].mxu0
      %v3013 = vpop.f32.mrb[0].mxu0
      %v3014 = vadd.f32 %v2837, %v3013
      %v3015 = vpop.f32.mrb[0].mxu0
      %3016 = vmatprep.mubr.bf16.mxu0 0
      %3017 = vmatmul.mubr.bf16.gmra.mrb[0].mxu0 %v2947
      %v3018 = vpop.f32.mrb[0].mxu0
      %v3019 = vadd.f32 %v2842, %v3018
      %v3020 = vpop.f32.mrb[0].mxu0
      %v3021 = vpop.f32.mrb[0].mxu0
      %v3022 = vadd.f32 %v2845, %v3021
      %v3023 = vpop.f32.mrb[0].mxu0
      %3024 = vmatprep.mubr.bf16.mxu0 0
      %3025 = vmatmul.mubr.bf16.gmra.mrb[0].mxu0 %v2948
      %v3026 = vpop.f32.mrb[0].mxu0
      %v3027 = vadd.f32 %v2850, %v3026
      %v3028 = vpop.f32.mrb[0].mxu0
      %v3029 = vpop.f32.mrb[0].mxu0
      %v3030 = vadd.f32 %v2853, %v3029
      %v3031 = vpop.f32.mrb[0].mxu0
      %3032 = vmatprep.mubr.bf16.mxu0 0
      %3033 = vmatmul.mubr.bf16.gmra.mrb[0].mxu0 %v2949
      %v3034 = vpop.f32.mrb[0].mxu0
      %v3035 = vadd.f32 %v2858, %v3034
      %v3036 = vpop.f32.mrb[0].mxu0
      %v3037 = vpop.f32.mrb[0].mxu0
      %v3038 = vadd.f32 %v2861, %v3037
      %v3039 = vpop.f32.mrb[0].mxu0
      %3040 = vmatprep.mubr.bf16.mxu0 0
      %3041 = vmatmul.mubr.bf16.gmra.mrb[0].mxu0 %v2950
      %v3042 = vpop.f32.mrb[0].mxu0
      %v3043 = vadd.f32 %v2866, %v3042
      %v3044 = vpop.f32.mrb[0].mxu0
      %v3045 = vpop.f32.mrb[0].mxu0
      %v3046 = vadd.f32 %v2869, %v3045
      %v3047 = vpop.f32.mrb[0].mxu0
      %3048 = vmatprep.mubr.bf16.mxu0 0
      %3049 = vmatmul.mubr.bf16.gmra.mrb[0].mxu0 %v2951
      %v3050 = vpop.f32.mrb[0].mxu0
      %v3051 = vadd.f32 %v2874, %v3050
      %v3052 = vpop.f32.mrb[0].mxu0
      %v3053 = vpop.f32.mrb[0].mxu0
      %v3054 = vadd.f32 %v2877, %v3053
      %v3055 = vpop.f32.mrb[0].mxu0
      %3056 = vmatprep.mubr.bf16.mxu0 0
      %3057 = vmatmul.mubr.bf16.gmra.mrb[0].mxu0 %v2952
      %v3058 = vpop.f32.mrb[0].mxu0
      %v3059 = vadd.f32 %v2882, %v3058
      %v3060 = vpop.f32.mrb[0].mxu0
      %v3061 = vpop.f32.mrb[0].mxu0
      %v3062 = vadd.f32 %v2885, %v3061
      %v3063 = vpop.f32.mrb[0].mxu0
      %3064 = vmatprep.mubr.bf16.mxu0 0
      %3065 = vmatmul.mubr.bf16.gmra.mrb[0].mxu0 %v2953
      %v3066 = vpop.f32.mrb[0].mxu0
      %v3067 = vadd.f32 %v2890, %v3066
      %v3068 = vpop.f32.mrb[0].mxu0
      %v3069 = vpop.f32.mrb[0].mxu0
      %v3070 = vadd.f32 %v2893, %v3069
      %v3071 = vpop.f32.mrb[0].mxu0
      %3072 = vmatprep.mubr.bf16.mxu0 0
      %3073 = vmatmul.mubr.bf16.gmra.mrb[0].mxu0 %v2954
      %v3074 = vpop.f32.mrb[0].mxu0
      %v3075 = vadd.f32 %v2898, %v3074
      %v3076 = vpop.f32.mrb[0].mxu0
      %v3077 = vpop.f32.mrb[0].mxu0
      %v3078 = vadd.f32 %v2901, %v3077
      %v3079 = vpop.f32.mrb[0].mxu0
      %3080 = vmatprep.mubr.bf16.mxu0 0
      %3081 = vmatmul.mubr.bf16.gmra.mrb[0].mxu0 %v2955
      %v3082 = vpop.f32.mrb[0].mxu0
      %v3083 = vadd.f32 %v2906, %v3082
      %v3084 = vpop.f32.mrb[0].mxu0
      %v3085 = vpop.f32.mrb[0].mxu0
      %v3086 = vadd.f32 %v2909, %v3085
      %v3087 = vpop.f32.mrb[0].mxu0
      %3088 = vmatprep.mubr.bf16.mxu0 0
      %3089 = vmatmul.mubr.bf16.gmra.mrb[0].mxu0 %v2956
      %v3090 = vpop.f32.mrb[0].mxu0
      %v3091 = vadd.f32 %v2914, %v3090
      %v3092 = vpop.f32.mrb[0].mxu0
      %v3093 = vpop.f32.mrb[0].mxu0
      %v3094 = vadd.f32 %v2917, %v3093
      %v3095 = vpop.f32.mrb[0].mxu0
      %3096 = vmatprep.mubr.bf16.mxu0 0
      %3097 = vmatmul.mubr.bf16.gmra.mrb[0].mxu0 %v2957
      %v3098 = vpop.f32.mrb[0].mxu0
      %v3099 = vadd.f32 %v2922, %v3098
      %v3100 = vpop.f32.mrb[0].mxu0
      %v3101 = vpop.f32.mrb[0].mxu0
      %v3102 = vadd.f32 %v2925, %v3101
      %v3103 = vpop.f32.mrb[0].mxu0
      %3104 = vmatprep.mubr.bf16.mxu0 0
      %3105 = vmatmul.mubr.bf16.gmra.mrb[0].mxu0 %v2958
      %v3106 = vpop.f32.mrb[0].mxu0
      %v3107 = vadd.f32 %v2930, %v3106
      %v3108 = vpop.f32.mrb[0].mxu0
      %v3109 = vpop.f32.mrb[0].mxu0
      %v3110 = vadd.f32 %v2933, %v3109
      %v3111 = vpop.f32.mrb[0].mxu0
      %3112 = vmatprep.mubr.bf16.mxu0 0
      %3113 = vmatmul.mubr.bf16.gmra.mrb[0].mxu0 %v2959
      %v3114 = vpop.f32.mrb[0].mxu0
      %v3115 = vadd.f32 %v2938, %v3114
      %v3116 = vpop.f32.mrb[0].mxu0
      %v3117 = vpop.f32.mrb[0].mxu0
      %v3118 = vadd.f32 %v2941, %v3117
      %v3119 = vpop.f32.mrb[0].mxu0
      %3120 = vdwg.mxu0
      %v3121 = vmax.f32 %v2995, 0.0
      %v3122 = vmax.f32 %v2998, 0.0
      %v3123 = vmax.f32 %v3003, 0.0
      %v3124 = vmax.f32 %v3006, 0.0
      %v3125 = vmax.f32 %v3011, 0.0
      %v3126 = vmax.f32 %v3014, 0.0
      %v3127 = vmax.f32 %v3019, 0.0
      %v3128 = vmax.f32 %v3022, 0.0
      %v3129 = vmax.f32 %v3027, 0.0
      %v3130 = vmax.f32 %v3030, 0.0
      %v3131 = vmax.f32 %v3035, 0.0
      %v3132 = vmax.f32 %v3038, 0.0
      %v3133 = vmax.f32 %v3043, 0.0
      %v3134 = vmax.f32 %v3046, 0.0
      %v3135 = vmax.f32 %v3051, 0.0
      %v3136 = vmax.f32 %v3054, 0.0
      %v3137 = vmax.f32 %v3059, 0.0
      %v3138 = vmax.f32 %v3062, 0.0
      %v3139 = vmax.f32 %v3067, 0.0
      %v3140 = vmax.f32 %v3070, 0.0
      %v3141 = vmax.f32 %v3075, 0.0
      %v3142 = vmax.f32 %v3078, 0.0
      %v3143 = vmax.f32 %v3083, 0.0
      %v3144 = vmax.f32 %v3086, 0.0
      %v3145 = vmax.f32 %v3091, 0.0
      %v3146 = vmax.f32 %v3094, 0.0
      %v3147 = vmax.f32 %v3099, 0.0
      %v3148 = vmax.f32 %v3102, 0.0
      %v3149 = vmax.f32 %v3107, 0.0
      %v3150 = vmax.f32 %v3110, 0.0
      %v3151 = vmax.f32 %v3115, 0.0
      %v3152 = vmax.f32 %v3118, 0.0
      %v3153 = vpack.c.bf16 %v3122, %v3121
      %v3154 = vpack.c.bf16 %v3124, %v3123
      %v3155 = vpack.c.bf16 %v3126, %v3125
      %v3156 = vpack.c.bf16 %v3128, %v3127
      %v3157 = vpack.c.bf16 %v3130, %v3129
      %v3158 = vpack.c.bf16 %v3132, %v3131
      %v3159 = vpack.c.bf16 %v3134, %v3133
      %v3160 = vpack.c.bf16 %v3136, %v3135
      %v3161 = vpack.c.bf16 %v3138, %v3137
      %v3162 = vpack.c.bf16 %v3140, %v3139
      %v3163 = vpack.c.bf16 %v3142, %v3141
      %v3164 = vpack.c.bf16 %v3144, %v3143
      %v3165 = vpack.c.bf16 %v3146, %v3145
      %v3166 = vpack.c.bf16 %v3148, %v3147
      %v3167 = vpack.c.bf16 %v3150, %v3149
      %v3168 = vpack.c.bf16 %v3152, %v3151
      %3169 = vmatprep.subr.bf16.mxu0 0
      %3170 = vmatpush1.bf16.msra.mxu0 %v1643
      %3171 = vmatprep.subr.bf16.mxu0 0
      %3172 = vmatpush1.bf16.msra.mxu0 %v1644
      %3173 = vmatprep.subr.bf16.mxu0 0
      %3174 = vmatpush1.bf16.msra.mxu0 %v1645
      %3175 = vmatprep.subr.bf16.mxu0 0
      %3176 = vmatpush1.bf16.msra.mxu0 %v1646
      %3177 = vmatprep.subr.bf16.mxu0 0
      %3178 = vmatpush1.bf16.msra.mxu0 %v1647
      %3179 = vmatprep.subr.bf16.mxu0 0
      %3180 = vmatpush1.bf16.msra.mxu0 %v1648
      %3181 = vmatprep.subr.bf16.mxu0 0
      %3182 = vmatpush1.bf16.msra.mxu0 %v1649
      %3183 = vmatprep.subr.bf16.mxu0 0
      %3184 = vmatpush1.bf16.msra.mxu0 %v1650
      %3185 = vmatprep.subr.bf16.mxu0 0
      %3186 = vmatpush1.bf16.msra.mxu0 0
      %3187 = vmatprep.subr.bf16.mxu0 0
      %3188 = vmatpush1.bf16.msra.mxu0 0
      %3189 = vmatprep.subr.bf16.mxu0 0
      %3190 = vmatpush1.bf16.msra.mxu0 0
      %3191 = vmatprep.subr.bf16.mxu0 0
      %3192 = vmatpush1.bf16.msra.mxu0 0
      %3193 = vmatprep.subr.bf16.mxu0 0
      %3194 = vmatpush1.bf16.msra.mxu0 0
      %3195 = vmatprep.subr.bf16.mxu0 0
      %3196 = vmatpush1.bf16.msra.mxu0 0
      %3197 = vmatprep.subr.bf16.mxu0 0
      %3198 = vmatpush1.bf16.msra.mxu0 0
      %3199 = vmatprep.subr.bf16.mxu0 0
      %3200 = vmatpush1.bf16.msra.mxu0 0
      %3201 = vmatprep.mubr.bf16.mxu0 0
      %3202 = vmatmul.mubr.bf16.gmra.mrb[0].mxu0 %v3153
      %v3203 = vpop.f32.mrb[0].mxu0
      %v3204 = vadd.f32 %v1609, %v3203
      %v3205 = vpop.f32.mrb[0].mxu0
      %v3206 = vpop.f32.mrb[0].mxu0
      %v3207 = vadd.f32 %v1609, %v3206
      %v3208 = vpop.f32.mrb[0].mxu0
      %3209 = vmatprep.mubr.bf16.mxu0 0
      %3210 = vmatmul.mubr.bf16.gmra.mrb[0].mxu0 %v3154
      %v3211 = vpop.f32.mrb[0].mxu0
      %v3212 = vadd.f32 %v1609, %v3211
      %v3213 = vpop.f32.mrb[0].mxu0
      %v3214 = vpop.f32.mrb[0].mxu0
      %v3215 = vadd.f32 %v1609, %v3214
      %v3216 = vpop.f32.mrb[0].mxu0
      %3217 = vmatprep.mubr.bf16.mxu0 0
      %3218 = vmatmul.mubr.bf16.gmra.mrb[0].mxu0 %v3155
      %v3219 = vpop.f32.mrb[0].mxu0
      %v3220 = vadd.f32 %v1609, %v3219
      %v3221 = vpop.f32.mrb[0].mxu0
      %v3222 = vpop.f32.mrb[0].mxu0
      %v3223 = vadd.f32 %v1609, %v3222
      %v3224 = vpop.f32.mrb[0].mxu0
      %3225 = vmatprep.mubr.bf16.mxu0 0
      %3226 = vmatmul.mubr.bf16.gmra.mrb[0].mxu0 %v3156
      %v3227 = vpop.f32.mrb[0].mxu0
      %v3228 = vadd.f32 %v1609, %v3227
      %v3229 = vpop.f32.mrb[0].mxu0
      %v3230 = vpop.f32.mrb[0].mxu0
      %v3231 = vadd.f32 %v1609, %v3230
      %v3232 = vpop.f32.mrb[0].mxu0
      %3233 = vmatprep.mubr.bf16.mxu0 0
      %3234 = vmatmul.mubr.bf16.gmra.mrb[0].mxu0 %v3157
      %v3235 = vpop.f32.mrb[0].mxu0
      %v3236 = vadd.f32 %v1609, %v3235
      %v3237 = vpop.f32.mrb[0].mxu0
      %v3238 = vpop.f32.mrb[0].mxu0
      %v3239 = vadd.f32 %v1609, %v3238
      %v3240 = vpop.f32.mrb[0].mxu0
      %3241 = vmatprep.mubr.bf16.mxu0 0
      %3242 = vmatmul.mubr.bf16.gmra.mrb[0].mxu0 %v3158
      %v3243 = vpop.f32.mrb[0].mxu0
      %v3244 = vadd.f32 %v1609, %v3243
      %v3245 = vpop.f32.mrb[0].mxu0
      %v3246 = vpop.f32.mrb[0].mxu0
      %v3247 = vadd.f32 %v1609, %v3246
      %v3248 = vpop.f32.mrb[0].mxu0
      %3249 = vmatprep.mubr.bf16.mxu0 0
      %3250 = vmatmul.mubr.bf16.gmra.mrb[0].mxu0 %v3159
      %v3251 = vpop.f32.mrb[0].mxu0
      %v3252 = vadd.f32 %v1609, %v3251
      %v3253 = vpop.f32.mrb[0].mxu0
      %v3254 = vpop.f32.mrb[0].mxu0
      %v3255 = vadd.f32 %v1609, %v3254
      %v3256 = vpop.f32.mrb[0].mxu0
      %3257 = vmatprep.mubr.bf16.mxu0 0
      %3258 = vmatmul.mubr.bf16.gmra.mrb[0].mxu0 %v3160
      %v3259 = vpop.f32.mrb[0].mxu0
      %v3260 = vadd.f32 %v1609, %v3259
      %v3261 = vpop.f32.mrb[0].mxu0
      %v3262 = vpop.f32.mrb[0].mxu0
      %v3263 = vadd.f32 %v1609, %v3262
      %v3264 = vpop.f32.mrb[0].mxu0
      %3265 = vmatprep.mubr.bf16.mxu0 0
      %3266 = vmatmul.mubr.bf16.gmra.mrb[0].mxu0 %v3161
      %v3267 = vpop.f32.mrb[0].mxu0
      %v3268 = vadd.f32 %v1609, %v3267
      %v3269 = vpop.f32.mrb[0].mxu0
      %v3270 = vpop.f32.mrb[0].mxu0
      %v3271 = vadd.f32 %v1609, %v3270
      %v3272 = vpop.f32.mrb[0].mxu0
      %3273 = vmatprep.mubr.bf16.mxu0 0
      %3274 = vmatmul.mubr.bf16.gmra.mrb[0].mxu0 %v3162
      %v3275 = vpop.f32.mrb[0].mxu0
      %v3276 = vadd.f32 %v1609, %v3275
      %v3277 = vpop.f32.mrb[0].mxu0
      %v3278 = vpop.f32.mrb[0].mxu0
      %v3279 = vadd.f32 %v1609, %v3278
      %v3280 = vpop.f32.mrb[0].mxu0
      %3281 = vmatprep.mubr.bf16.mxu0 0
      %3282 = vmatmul.mubr.bf16.gmra.mrb[0].mxu0 %v3163
      %v3283 = vpop.f32.mrb[0].mxu0
      %v3284 = vadd.f32 %v1609, %v3283
      %v3285 = vpop.f32.mrb[0].mxu0
      %v3286 = vpop.f32.mrb[0].mxu0
      %v3287 = vadd.f32 %v1609, %v3286
      %v3288 = vpop.f32.mrb[0].mxu0
      %3289 = vmatprep.mubr.bf16.mxu0 0
      %3290 = vmatmul.mubr.bf16.gmra.mrb[0].mxu0 %v3164
      %v3291 = vpop.f32.mrb[0].mxu0
      %v3292 = vadd.f32 %v1609, %v3291
      %v3293 = vpop.f32.mrb[0].mxu0
      %v3294 = vpop.f32.mrb[0].mxu0
      %v3295 = vadd.f32 %v1609, %v3294
      %v3296 = vpop.f32.mrb[0].mxu0
      %3297 = vmatprep.mubr.bf16.mxu0 0
      %3298 = vmatmul.mubr.bf16.gmra.mrb[0].mxu0 %v3165
      %v3299 = vpop.f32.mrb[0].mxu0
      %v3300 = vadd.f32 %v1609, %v3299
      %v3301 = vpop.f32.mrb[0].mxu0
      %v3302 = vpop.f32.mrb[0].mxu0
      %v3303 = vadd.f32 %v1609, %v3302
      %v3304 = vpop.f32.mrb[0].mxu0
      %3305 = vmatprep.mubr.bf16.mxu0 0
      %3306 = vmatmul.mubr.bf16.gmra.mrb[0].mxu0 %v3166
      %v3307 = vpop.f32.mrb[0].mxu0
      %v3308 = vadd.f32 %v1609, %v3307
      %v3309 = vpop.f32.mrb[0].mxu0
      %v3310 = vpop.f32.mrb[0].mxu0
      %v3311 = vadd.f32 %v1609, %v3310
      %v3312 = vpop.f32.mrb[0].mxu0
      %3313 = vmatprep.mubr.bf16.mxu0 0
      %3314 = vmatmul.mubr.bf16.gmra.mrb[0].mxu0 %v3167
      %v3315 = vpop.f32.mrb[0].mxu0
      %v3316 = vadd.f32 %v1609, %v3315
      %v3317 = vpop.f32.mrb[0].mxu0
      %v3318 = vpop.f32.mrb[0].mxu0
      %v3319 = vadd.f32 %v1609, %v3318
      %v3320 = vpop.f32.mrb[0].mxu0
      %3321 = vmatprep.mubr.bf16.mxu0 0
      %3322 = vmatmul.mubr.bf16.gmra.mrb[0].mxu0 %v3168
      %v3323 = vpop.f32.mrb[0].mxu0
      %v3324 = vadd.f32 %v1609, %v3323
      %v3325 = vpop.f32.mrb[0].mxu0
      %v3326 = vpop.f32.mrb[0].mxu0
      %v3327 = vadd.f32 %v1609, %v3326
      %v3328 = vpop.f32.mrb[0].mxu0
      %3329 = vdwg.mxu0
      %3330 = vadd.xlane.f32.xlu0 %v3204
      %v3331 = vpop.xlane.xlu0 %3330
      %3332 = vadd.xlane.f32.xlu0 %v3207
      %v3333 = vpop.xlane.xlu0 %3332
      %3334 = vadd.xlane.f32.xlu0 %v3212
      %v3335 = vpop.xlane.xlu0 %3334
      %3336 = vadd.xlane.f32.xlu0 %v3215
      %v3337 = vpop.xlane.xlu0 %3336
      %3338 = vadd.xlane.f32.xlu0 %v3220
      %v3339 = vpop.xlane.xlu0 %3338
      %3340 = vadd.xlane.f32.xlu0 %v3223
      %v3341 = vpop.xlane.xlu0 %3340
      %3342 = vadd.xlane.f32.xlu0 %v3228
      %v3343 = vpop.xlane.xlu0 %3342
      %3344 = vadd.xlane.f32.xlu0 %v3231
      %v3345 = vpop.xlane.xlu0 %3344
      %3346 = vadd.xlane.f32.xlu0 %v3236
      %v3347 = vpop.xlane.xlu0 %3346
      %3348 = vadd.xlane.f32.xlu0 %v3239
      %v3349 = vpop.xlane.xlu0 %3348
      %3350 = vadd.xlane.f32.xlu0 %v3244
      %v3351 = vpop.xlane.xlu0 %3350
      %3352 = vadd.xlane.f32.xlu0 %v3247
      %v3353 = vpop.xlane.xlu0 %3352
      %3354 = vadd.xlane.f32.xlu0 %v3252
      %v3355 = vpop.xlane.xlu0 %3354
      %3356 = vadd.xlane.f32.xlu0 %v3255
      %v3357 = vpop.xlane.xlu0 %3356
      %3358 = vadd.xlane.f32.xlu0 %v3260
      %v3359 = vpop.xlane.xlu0 %3358
      %3360 = vadd.xlane.f32.xlu0 %v3263
      %v3361 = vpop.xlane.xlu0 %3360
      %3362 = vadd.xlane.f32.xlu0 %v3268
      %v3363 = vpop.xlane.xlu0 %3362
      %3364 = vadd.xlane.f32.xlu0 %v3271
      %v3365 = vpop.xlane.xlu0 %3364
      %3366 = vadd.xlane.f32.xlu0 %v3276
      %v3367 = vpop.xlane.xlu0 %3366
      %3368 = vadd.xlane.f32.xlu0 %v3279
      %v3369 = vpop.xlane.xlu0 %3368
      %3370 = vadd.xlane.f32.xlu0 %v3284
      %v3371 = vpop.xlane.xlu0 %3370
      %3372 = vadd.xlane.f32.xlu0 %v3287
      %v3373 = vpop.xlane.xlu0 %3372
      %3374 = vadd.xlane.f32.xlu0 %v3292
      %v3375 = vpop.xlane.xlu0 %3374
      %3376 = vadd.xlane.f32.xlu0 %v3295
      %v3377 = vpop.xlane.xlu0 %3376
      %3378 = vadd.xlane.f32.xlu0 %v3300
      %v3379 = vpop.xlane.xlu0 %3378
      %3380 = vadd.xlane.f32.xlu0 %v3303
      %v3381 = vpop.xlane.xlu0 %3380
      %3382 = vadd.xlane.f32.xlu0 %v3308
      %v3383 = vpop.xlane.xlu0 %3382
      %3384 = vadd.xlane.f32.xlu0 %v3311
      %v3385 = vpop.xlane.xlu0 %3384
      %3386 = vadd.xlane.f32.xlu0 %v3316
      %v3387 = vpop.xlane.xlu0 %3386
      %3388 = vadd.xlane.f32.xlu0 %v3319
      %v3389 = vpop.xlane.xlu0 %3388
      %3390 = vadd.xlane.f32.xlu0 %v3324
      %v3391 = vpop.xlane.xlu0 %3390
      %3392 = vadd.xlane.f32.xlu0 %v3327
      %v3393 = vpop.xlane.xlu0 %3392
      %v3394 = vrcp.pop 128.0
      %v3395 = vmul.f32 %v3331, %v3394
      %v3396 = vmul.f32 %v3333, %v3394
      %v3397 = vmul.f32 %v3335, %v3394
      %v3398 = vmul.f32 %v3337, %v3394
      %v3399 = vmul.f32 %v3339, %v3394
      %v3400 = vmul.f32 %v3341, %v3394
      %v3401 = vmul.f32 %v3343, %v3394
      %v3402 = vmul.f32 %v3345, %v3394
      %v3403 = vmul.f32 %v3347, %v3394
      %v3404 = vmul.f32 %v3349, %v3394
      %v3405 = vmul.f32 %v3351, %v3394
      %v3406 = vmul.f32 %v3353, %v3394
      %v3407 = vmul.f32 %v3355, %v3394
      %v3408 = vmul.f32 %v3357, %v3394
      %v3409 = vmul.f32 %v3359, %v3394
      %v3410 = vmul.f32 %v3361, %v3394
      %v3411 = vmul.f32 %v3363, %v3394
      %v3412 = vmul.f32 %v3365, %v3394
      %v3413 = vmul.f32 %v3367, %v3394
      %v3414 = vmul.f32 %v3369, %v3394
      %v3415 = vmul.f32 %v3371, %v3394
      %v3416 = vmul.f32 %v3373, %v3394
      %v3417 = vmul.f32 %v3375, %v3394
      %v3418 = vmul.f32 %v3377, %v3394
      %v3419 = vmul.f32 %v3379, %v3394
      %v3420 = vmul.f32 %v3381, %v3394
      %v3421 = vmul.f32 %v3383, %v3394
      %v3422 = vmul.f32 %v3385, %v3394
      %v3423 = vmul.f32 %v3387, %v3394
      %v3424 = vmul.f32 %v3389, %v3394
      %v3425 = vmul.f32 %v3391, %v3394
      %v3426 = vmul.f32 %v3393, %v3394
      %v3427 = vsub.f32 %v3204, %v3395
      %v3428 = vsub.f32 %v3207, %v3396
      %v3429 = vsub.f32 %v3212, %v3397
      %v3430 = vsub.f32 %v3215, %v3398
      %v3431 = vsub.f32 %v3220, %v3399
      %v3432 = vsub.f32 %v3223, %v3400
      %v3433 = vsub.f32 %v3228, %v3401
      %v3434 = vsub.f32 %v3231, %v3402
      %v3435 = vsub.f32 %v3236, %v3403
      %v3436 = vsub.f32 %v3239, %v3404
      %v3437 = vsub.f32 %v3244, %v3405
      %v3438 = vsub.f32 %v3247, %v3406
      %v3439 = vsub.f32 %v3252, %v3407
      %v3440 = vsub.f32 %v3255, %v3408
      %v3441 = vsub.f32 %v3260, %v3409
      %v3442 = vsub.f32 %v3263, %v3410
      %v3443 = vsub.f32 %v3268, %v3411
      %v3444 = vsub.f32 %v3271, %v3412
      %v3445 = vsub.f32 %v3276, %v3413
      %v3446 = vsub.f32 %v3279, %v3414
      %v3447 = vsub.f32 %v3284, %v3415
      %v3448 = vsub.f32 %v3287, %v3416
      %v3449 = vsub.f32 %v3292, %v3417
      %v3450 = vsub.f32 %v3295, %v3418
      %v3451 = vsub.f32 %v3300, %v3419
      %v3452 = vsub.f32 %v3303, %v3420
      %v3453 = vsub.f32 %v3308, %v3421
      %v3454 = vsub.f32 %v3311, %v3422
      %v3455 = vsub.f32 %v3316, %v3423
      %v3456 = vsub.f32 %v3319, %v3424
      %v3457 = vsub.f32 %v3324, %v3425
      %v3458 = vsub.f32 %v3327, %v3426
      %v3459 = vmul.f32 %v3427, %v3427
      %v3460 = vmul.f32 %v3428, %v3428
      %v3461 = vmul.f32 %v3429, %v3429
      %v3462 = vmul.f32 %v3430, %v3430
      %v3463 = vmul.f32 %v3431, %v3431
      %v3464 = vmul.f32 %v3432, %v3432
      %v3465 = vmul.f32 %v3433, %v3433
      %v3466 = vmul.f32 %v3434, %v3434
      %v3467 = vmul.f32 %v3435, %v3435
      %v3468 = vmul.f32 %v3436, %v3436
      %v3469 = vmul.f32 %v3437, %v3437
      %v3470 = vmul.f32 %v3438, %v3438
      %v3471 = vmul.f32 %v3439, %v3439
      %v3472 = vmul.f32 %v3440, %v3440
      %v3473 = vmul.f32 %v3441, %v3441
      %v3474 = vmul.f32 %v3442, %v3442
      %v3475 = vmul.f32 %v3443, %v3443
      %v3476 = vmul.f32 %v3444, %v3444
      %v3477 = vmul.f32 %v3445, %v3445
      %v3478 = vmul.f32 %v3446, %v3446
      %v3479 = vmul.f32 %v3447, %v3447
      %v3480 = vmul.f32 %v3448, %v3448
      %v3481 = vmul.f32 %v3449, %v3449
      %v3482 = vmul.f32 %v3450, %v3450
      %v3483 = vmul.f32 %v3451, %v3451
      %v3484 = vmul.f32 %v3452, %v3452
      %v3485 = vmul.f32 %v3453, %v3453
      %v3486 = vmul.f32 %v3454, %v3454
      %v3487 = vmul.f32 %v3455, %v3455
      %v3488 = vmul.f32 %v3456, %v3456
      %v3489 = vmul.f32 %v3457, %v3457
      %v3490 = vmul.f32 %v3458, %v3458
      %3491 = vadd.xlane.f32.xlu0 %v3459
      %v3492 = vpop.xlane.xlu0 %3491
      %3493 = vadd.xlane.f32.xlu0 %v3460
      %v3494 = vpop.xlane.xlu0 %3493
      %3495 = vadd.xlane.f32.xlu0 %v3461
      %v3496 = vpop.xlane.xlu0 %3495
      %3497 = vadd.xlane.f32.xlu0 %v3462
      %v3498 = vpop.xlane.xlu0 %3497
      %3499 = vadd.xlane.f32.xlu0 %v3463
      %v3500 = vpop.xlane.xlu0 %3499
      %3501 = vadd.xlane.f32.xlu0 %v3464
      %v3502 = vpop.xlane.xlu0 %3501
      %3503 = vadd.xlane.f32.xlu0 %v3465
      %v3504 = vpop.xlane.xlu0 %3503
      %3505 = vadd.xlane.f32.xlu0 %v3466
      %v3506 = vpop.xlane.xlu0 %3505
      %3507 = vadd.xlane.f32.xlu0 %v3467
      %v3508 = vpop.xlane.xlu0 %3507
      %3509 = vadd.xlane.f32.xlu0 %v3468
      %v3510 = vpop.xlane.xlu0 %3509
      %3511 = vadd.xlane.f32.xlu0 %v3469
      %v3512 = vpop.xlane.xlu0 %3511
      %3513 = vadd.xlane.f32.xlu0 %v3470
      %v3514 = vpop.xlane.xlu0 %3513
      %3515 = vadd.xlane.f32.xlu0 %v3471
      %v3516 = vpop.xlane.xlu0 %3515
      %3517 = vadd.xlane.f32.xlu0 %v3472
      %v3518 = vpop.xlane.xlu0 %3517
      %3519 = vadd.xlane.f32.xlu0 %v3473
      %v3520 = vpop.xlane.xlu0 %3519
      %3521 = vadd.xlane.f32.xlu0 %v3474
      %v3522 = vpop.xlane.xlu0 %3521
      %3523 = vadd.xlane.f32.xlu0 %v3475
      %v3524 = vpop.xlane.xlu0 %3523
      %3525 = vadd.xlane.f32.xlu0 %v3476
      %v3526 = vpop.xlane.xlu0 %3525
      %3527 = vadd.xlane.f32.xlu0 %v3477
      %v3528 = vpop.xlane.xlu0 %3527
      %3529 = vadd.xlane.f32.xlu0 %v3478
      %v3530 = vpop.xlane.xlu0 %3529
      %3531 = vadd.xlane.f32.xlu0 %v3479
      %v3532 = vpop.xlane.xlu0 %3531
      %3533 = vadd.xlane.f32.xlu0 %v3480
      %v3534 = vpop.xlane.xlu0 %3533
      %3535 = vadd.xlane.f32.xlu0 %v3481
      %v3536 = vpop.xlane.xlu0 %3535
      %3537 = vadd.xlane.f32.xlu0 %v3482
      %v3538 = vpop.xlane.xlu0 %3537
      %3539 = vadd.xlane.f32.xlu0 %v3483
      %v3540 = vpop.xlane.xlu0 %3539
      %3541 = vadd.xlane.f32.xlu0 %v3484
      %v3542 = vpop.xlane.xlu0 %3541
      %3543 = vadd.xlane.f32.xlu0 %v3485
      %v3544 = vpop.xlane.xlu0 %3543
      %3545 = vadd.xlane.f32.xlu0 %v3486
      %v3546 = vpop.xlane.xlu0 %3545
      %3547 = vadd.xlane.f32.xlu0 %v3487
      %v3548 = vpop.xlane.xlu0 %3547
      %3549 = vadd.xlane.f32.xlu0 %v3488
      %v3550 = vpop.xlane.xlu0 %3549
      %3551 = vadd.xlane.f32.xlu0 %v3489
      %v3552 = vpop.xlane.xlu0 %3551
      %3553 = vadd.xlane.f32.xlu0 %v3490
      %v3554 = vpop.xlane.xlu0 %3553
      %v3555 = vmul.f32 %v3492, %v3394
      %v3556 = vmul.f32 %v3494, %v3394
      %v3557 = vmul.f32 %v3496, %v3394
      %v3558 = vmul.f32 %v3498, %v3394
      %v3559 = vmul.f32 %v3500, %v3394
      %v3560 = vmul.f32 %v3502, %v3394
      %v3561 = vmul.f32 %v3504, %v3394
      %v3562 = vmul.f32 %v3506, %v3394
      %v3563 = vmul.f32 %v3508, %v3394
      %v3564 = vmul.f32 %v3510, %v3394
      %v3565 = vmul.f32 %v3512, %v3394
      %v3566 = vmul.f32 %v3514, %v3394
      %v3567 = vmul.f32 %v3516, %v3394
      %v3568 = vmul.f32 %v3518, %v3394
      %v3569 = vmul.f32 %v3520, %v3394
      %v3570 = vmul.f32 %v3522, %v3394
      %v3571 = vmul.f32 %v3524, %v3394
      %v3572 = vmul.f32 %v3526, %v3394
      %v3573 = vmul.f32 %v3528, %v3394
      %v3574 = vmul.f32 %v3530, %v3394
      %v3575 = vmul.f32 %v3532, %v3394
      %v3576 = vmul.f32 %v3534, %v3394
      %v3577 = vmul.f32 %v3536, %v3394
      %v3578 = vmul.f32 %v3538, %v3394
      %v3579 = vmul.f32 %v3540, %v3394
      %v3580 = vmul.f32 %v3542, %v3394
      %v3581 = vmul.f32 %v3544, %v3394
      %v3582 = vmul.f32 %v3546, %v3394
      %v3583 = vmul.f32 %v3548, %v3394
      %v3584 = vmul.f32 %v3550, %v3394
      %v3585 = vmul.f32 %v3552, %v3394
      %v3586 = vmul.f32 %v3554, %v3394
      %v3587 = vadd.f32 %v3555, 1e-05
      %v3588 = vadd.f32 %v3556, 1e-05
      %v3589 = vadd.f32 %v3557, 1e-05
      %v3590 = vadd.f32 %v3558, 1e-05
      %v3591 = vadd.f32 %v3559, 1e-05
      %v3592 = vadd.f32 %v3560, 1e-05
      %v3593 = vadd.f32 %v3561, 1e-05
      %v3594 = vadd.f32 %v3562, 1e-05
      %v3595 = vadd.f32 %v3563, 1e-05
      %v3596 = vadd.f32 %v3564, 1e-05
      %v3597 = vadd.f32 %v3565, 1e-05
      %v3598 = vadd.f32 %v3566, 1e-05
      %v3599 = vadd.f32 %v3567, 1e-05
      %v3600 = vadd.f32 %v3568, 1e-05
      %v3601 = vadd.f32 %v3569, 1e-05
      %v3602 = vadd.f32 %v3570, 1e-05
      %v3603 = vadd.f32 %v3571, 1e-05
      %v3604 = vadd.f32 %v3572, 1e-05
      %v3605 = vadd.f32 %v3573, 1e-05
      %v3606 = vadd.f32 %v3574, 1e-05
      %v3607 = vadd.f32 %v3575, 1e-05
      %v3608 = vadd.f32 %v3576, 1e-05
      %v3609 = vadd.f32 %v3577, 1e-05
      %v3610 = vadd.f32 %v3578, 1e-05
      %v3611 = vadd.f32 %v3579, 1e-05
      %v3612 = vadd.f32 %v3580, 1e-05
      %v3613 = vadd.f32 %v3581, 1e-05
      %v3614 = vadd.f32 %v3582, 1e-05
      %v3615 = vadd.f32 %v3583, 1e-05
      %v3616 = vadd.f32 %v3584, 1e-05
      %v3617 = vadd.f32 %v3585, 1e-05
      %v3618 = vadd.f32 %v3586, 1e-05
      %v3619 = vrsqrt.pop %v3587
      %v3620 = vrsqrt.pop %v3588
      %v3621 = vrsqrt.pop %v3589
      %v3622 = vrsqrt.pop %v3590
      %v3623 = vrsqrt.pop %v3591
      %v3624 = vrsqrt.pop %v3592
      %v3625 = vrsqrt.pop %v3593
      %v3626 = vrsqrt.pop %v3594
      %v3627 = vrsqrt.pop %v3595
      %v3628 = vrsqrt.pop %v3596
      %v3629 = vrsqrt.pop %v3597
      %v3630 = vrsqrt.pop %v3598
      %v3631 = vrsqrt.pop %v3599
      %v3632 = vrsqrt.pop %v3600
      %v3633 = vrsqrt.pop %v3601
      %v3634 = vrsqrt.pop %v3602
      %v3635 = vrsqrt.pop %v3603
      %v3636 = vrsqrt.pop %v3604
      %v3637 = vrsqrt.pop %v3605
      %v3638 = vrsqrt.pop %v3606
      %v3639 = vrsqrt.pop %v3607
      %v3640 = vrsqrt.pop %v3608
      %v3641 = vrsqrt.pop %v3609
      %v3642 = vrsqrt.pop %v3610
      %v3643 = vrsqrt.pop %v3611
      %v3644 = vrsqrt.pop %v3612
      %v3645 = vrsqrt.pop %v3613
      %v3646 = vrsqrt.pop %v3614
      %v3647 = vrsqrt.pop %v3615
      %v3648 = vrsqrt.pop %v3616
      %v3649 = vrsqrt.pop %v3617
      %v3650 = vrsqrt.pop %v3618
      %v3651 = vmul.f32 %v3427, %v3619
      %v3652 = vmul.f32 %v3428, %v3620
      %v3653 = vmul.f32 %v3429, %v3621
      %v3654 = vmul.f32 %v3430, %v3622
      %v3655 = vmul.f32 %v3431, %v3623
      %v3656 = vmul.f32 %v3432, %v3624
      %v3657 = vmul.f32 %v3433, %v3625
      %v3658 = vmul.f32 %v3434, %v3626
      %v3659 = vmul.f32 %v3435, %v3627
      %v3660 = vmul.f32 %v3436, %v3628
      %v3661 = vmul.f32 %v3437, %v3629
      %v3662 = vmul.f32 %v3438, %v3630
      %v3663 = vmul.f32 %v3439, %v3631
      %v3664 = vmul.f32 %v3440, %v3632
      %v3665 = vmul.f32 %v3441, %v3633
      %v3666 = vmul.f32 %v3442, %v3634
      %v3667 = vmul.f32 %v3443, %v3635
      %v3668 = vmul.f32 %v3444, %v3636
      %v3669 = vmul.f32 %v3445, %v3637
      %v3670 = vmul.f32 %v3446, %v3638
      %v3671 = vmul.f32 %v3447, %v3639
      %v3672 = vmul.f32 %v3448, %v3640
      %v3673 = vmul.f32 %v3449, %v3641
      %v3674 = vmul.f32 %v3450, %v3642
      %v3675 = vmul.f32 %v3451, %v3643
      %v3676 = vmul.f32 %v3452, %v3644
      %v3677 = vmul.f32 %v3453, %v3645
      %v3678 = vmul.f32 %v3454, %v3646
      %v3679 = vmul.f32 %v3455, %v3647
      %v3680 = vmul.f32 %v3456, %v3648
      %v3681 = vmul.f32 %v3457, %v3649
      %v3682 = vmul.f32 %v3458, %v3650
      %v3683 = vld [vmem:[%s8] sm:$0x1]
      %v3685 = vlaneseq
      %v3686 = vshrl.u32 %v3685, 7
      %v3687 = vsub.s32 0, %v3686
      %v3688 = vrot.slane %v3683, %v3687
      %v3690 = vmul.f32 %v3651, %v3688
      %v3691 = vmul.f32 %v3652, %v3688
      %v3692 = vmul.f32 %v3653, %v3688
      %v3693 = vmul.f32 %v3654, %v3688
      %v3694 = vmul.f32 %v3655, %v3688
      %v3695 = vmul.f32 %v3656, %v3688
      %v3696 = vmul.f32 %v3657, %v3688
      %v3697 = vmul.f32 %v3658, %v3688
      %v3698 = vmul.f32 %v3659, %v3688
      %v3699 = vmul.f32 %v3660, %v3688
      %v3700 = vmul.f32 %v3661, %v3688
      %v3701 = vmul.f32 %v3662, %v3688
      %v3702 = vmul.f32 %v3663, %v3688
      %v3703 = vmul.f32 %v3664, %v3688
      %v3704 = vmul.f32 %v3665, %v3688
      %v3705 = vmul.f32 %v3666, %v3688
      %v3706 = vmul.f32 %v3667, %v3688
      %v3707 = vmul.f32 %v3668, %v3688
      %v3708 = vmul.f32 %v3669, %v3688
      %v3709 = vmul.f32 %v3670, %v3688
      %v3710 = vmul.f32 %v3671, %v3688
      %v3711 = vmul.f32 %v3672, %v3688
      %v3712 = vmul.f32 %v3673, %v3688
      %v3713 = vmul.f32 %v3674, %v3688
      %v3714 = vmul.f32 %v3675, %v3688
      %v3715 = vmul.f32 %v3676, %v3688
      %v3716 = vmul.f32 %v3677, %v3688
      %v3717 = vmul.f32 %v3678, %v3688
      %v3718 = vmul.f32 %v3679, %v3688
      %v3719 = vmul.f32 %v3680, %v3688
      %v3720 = vmul.f32 %v3681, %v3688
      %v3721 = vmul.f32 %v3682, %v3688
      %v3722 = vld [vmem:[%s9] sm:$0x1]
      %v3724 = vlaneseq
      %v3725 = vshrl.u32 %v3724, 7
      %v3726 = vsub.s32 0, %v3725
      %v3727 = vrot.slane %v3722, %v3726
      %v3729 = vadd.f32 %v3690, %v3727
      %v3730 = vadd.f32 %v3691, %v3727
      %v3731 = vadd.f32 %v3692, %v3727
      %v3732 = vadd.f32 %v3693, %v3727
      %v3733 = vadd.f32 %v3694, %v3727
      %v3734 = vadd.f32 %v3695, %v3727
      %v3735 = vadd.f32 %v3696, %v3727
      %v3736 = vadd.f32 %v3697, %v3727
      %v3737 = vadd.f32 %v3698, %v3727
      %v3738 = vadd.f32 %v3699, %v3727
      %v3739 = vadd.f32 %v3700, %v3727
      %v3740 = vadd.f32 %v3701, %v3727
      %v3741 = vadd.f32 %v3702, %v3727
      %v3742 = vadd.f32 %v3703, %v3727
      %v3743 = vadd.f32 %v3704, %v3727
      %v3744 = vadd.f32 %v3705, %v3727
      %v3745 = vadd.f32 %v3706, %v3727
      %v3746 = vadd.f32 %v3707, %v3727
      %v3747 = vadd.f32 %v3708, %v3727
      %v3748 = vadd.f32 %v3709, %v3727
      %v3749 = vadd.f32 %v3710, %v3727
      %v3750 = vadd.f32 %v3711, %v3727
      %v3751 = vadd.f32 %v3712, %v3727
      %v3752 = vadd.f32 %v3713, %v3727
      %v3753 = vadd.f32 %v3714, %v3727
      %v3754 = vadd.f32 %v3715, %v3727
      %v3755 = vadd.f32 %v3716, %v3727
      %v3756 = vadd.f32 %v3717, %v3727
      %v3757 = vadd.f32 %v3718, %v3727
      %v3758 = vadd.f32 %v3719, %v3727
      %v3759 = vadd.f32 %v3720, %v3727
      %v3760 = vadd.f32 %v3721, %v3727
      %v3761 = vpack.c.bf16 %v3730, %v3729
      %v3762 = vpack.c.bf16 %v3732, %v3731
      %v3763 = vpack.c.bf16 %v3734, %v3733
      %v3764 = vpack.c.bf16 %v3736, %v3735
      %v3765 = vpack.c.bf16 %v3738, %v3737
      %v3766 = vpack.c.bf16 %v3740, %v3739
      %v3767 = vpack.c.bf16 %v3742, %v3741
      %v3768 = vpack.c.bf16 %v3744, %v3743
      %v3769 = vpack.c.bf16 %v3746, %v3745
      %v3770 = vpack.c.bf16 %v3748, %v3747
      %v3771 = vpack.c.bf16 %v3750, %v3749
      %v3772 = vpack.c.bf16 %v3752, %v3751
      %v3773 = vpack.c.bf16 %v3754, %v3753
      %v3774 = vpack.c.bf16 %v3756, %v3755
      %v3775 = vpack.c.bf16 %v3758, %v3757
      %v3776 = vpack.c.bf16 %v3760, %v3759
      %v3777 = vld [vmem:[%s10] sm:$0xf]
      %v3778 = vld [vmem:[%s10 + $0x4] sm:$0xf]
      %v3779 = vld [vmem:[%s10 + $0x8] sm:$0xf]
      %v3780 = vld [vmem:[%s10 + $0xc] sm:$0xf]
      %v3781 = vld [vmem:[%s10 + $0x10] sm:$0xf]
      %v3782 = vld [vmem:[%s10 + $0x14] sm:$0xf]
      %v3783 = vld [vmem:[%s10 + $0x18] sm:$0xf]
      %v3784 = vld [vmem:[%s10 + $0x1c] sm:$0xf]
      %v3785 = vld [vmem:[%s10 + $0x20] sm:$0xf]
      %v3786 = vld [vmem:[%s10 + $0x24] sm:$0xf]
      %v3787 = vld [vmem:[%s10 + $0x28] sm:$0xf]
      %v3788 = vld [vmem:[%s10 + $0x2c] sm:$0xf]
      %v3789 = vld [vmem:[%s10 + $0x30] sm:$0xf]
      %v3790 = vld [vmem:[%s10 + $0x34] sm:$0xf]
      %v3791 = vld [vmem:[%s10 + $0x38] sm:$0xf]
      %v3792 = vld [vmem:[%s10 + $0x3c] sm:$0xf]
      %v3793 = vld [vmem:[%s11] sm:$0x1]
      %v3795 = vlaneseq
      %v3796 = vshrl.u32 %v3795, 7
      %v3797 = vsub.s32 0, %v3796
      %v3798 = vrot.slane %v3793, %v3797
      %v3816 = vunpack.c.l.b16 %v3777
      %v3817 = vunpack.c.l.b16 %v3778
      %v3818 = vunpack.c.l.b16 %v3779
      %v3819 = vunpack.c.l.b16 %v3780
      %v3820 = vunpack.c.l.b16 %v3781
      %v3821 = vunpack.c.l.b16 %v3782
      %v3822 = vunpack.c.l.b16 %v3783
      %v3823 = vunpack.c.l.b16 %v3784
      %v3824 = vunpack.c.l.b16 %v3785
      %v3825 = vunpack.c.l.b16 %v3786
      %v3826 = vunpack.c.l.b16 %v3787
      %v3827 = vunpack.c.l.b16 %v3788
      %v3828 = vunpack.c.l.b16 %v3789
      %v3829 = vunpack.c.l.b16 %v3790
      %v3830 = vunpack.c.l.b16 %v3791
      %v3831 = vunpack.c.l.b16 %v3792
      %v3832 = vpack.c.b16 %v3817, %v3816
      %v3833 = vpack.c.b16 %v3819, %v3818
      %v3834 = vpack.c.b16 %v3821, %v3820
      %v3835 = vpack.c.b16 %v3823, %v3822
      %v3836 = vpack.c.b16 %v3825, %v3824
      %v3837 = vpack.c.b16 %v3827, %v3826
      %v3838 = vpack.c.b16 %v3829, %v3828
      %v3839 = vpack.c.b16 %v3831, %v3830
      %3848 = vmatprep.subr.bf16.mxu0 0
      %3849 = vmatpush1.bf16.msra.mxu0 %v3832
      %3850 = vmatprep.subr.bf16.mxu0 0
      %3851 = vmatpush1.bf16.msra.mxu0 %v3833
      %3852 = vmatprep.subr.bf16.mxu0 0
      %3853 = vmatpush1.bf16.msra.mxu0 %v3834
      %3854 = vmatprep.subr.bf16.mxu0 0
      %3855 = vmatpush1.bf16.msra.mxu0 %v3835
      %3856 = vmatprep.subr.bf16.mxu0 0
      %3857 = vmatpush1.bf16.msra.mxu0 %v3836
      %3858 = vmatprep.subr.bf16.mxu0 0
      %3859 = vmatpush1.bf16.msra.mxu0 %v3837
      %3860 = vmatprep.subr.bf16.mxu0 0
      %3861 = vmatpush1.bf16.msra.mxu0 %v3838
      %3862 = vmatprep.subr.bf16.mxu0 0
      %3863 = vmatpush1.bf16.msra.mxu0 %v3839
      %3864 = vmatprep.subr.bf16.mxu0 0
      %3865 = vmatpush1.bf16.msra.mxu0 0
      %3866 = vmatprep.subr.bf16.mxu0 0
      %3867 = vmatpush1.bf16.msra.mxu0 0
      %3868 = vmatprep.subr.bf16.mxu0 0
      %3869 = vmatpush1.bf16.msra.mxu0 0
      %3870 = vmatprep.subr.bf16.mxu0 0
      %3871 = vmatpush1.bf16.msra.mxu0 0
      %3872 = vmatprep.subr.bf16.mxu0 0
      %3873 = vmatpush1.bf16.msra.mxu0 0
      %3874 = vmatprep.subr.bf16.mxu0 0
      %3875 = vmatpush1.bf16.msra.mxu0 0
      %3876 = vmatprep.subr.bf16.mxu0 0
      %3877 = vmatpush1.bf16.msra.mxu0 0
      %3878 = vmatprep.subr.bf16.mxu0 0
      %3879 = vmatpush1.bf16.msra.mxu0 0
      %3880 = vmatprep.mubr.bf16.mxu0 0
      %3881 = vmatmul.mubr.bf16.gmra.mrb[0].mxu0 %v3761
      %v3882 = vpop.f32.mrb[0].mxu0
      %v3883 = vadd.f32 %v3798, %v3882
      %v3884 = vpop.f32.mrb[0].mxu0
      %v3885 = vpop.f32.mrb[0].mxu0
      %v3886 = vadd.f32 %v3798, %v3885
      %v3887 = vpop.f32.mrb[0].mxu0
      %3888 = vmatprep.mubr.bf16.mxu0 0
      %3889 = vmatmul.mubr.bf16.gmra.mrb[0].mxu0 %v3762
      %v3890 = vpop.f32.mrb[0].mxu0
      %v3891 = vadd.f32 %v3798, %v3890
      %v3892 = vpop.f32.mrb[0].mxu0
      %v3893 = vpop.f32.mrb[0].mxu0
      %v3894 = vadd.f32 %v3798, %v3893
      %v3895 = vpop.f32.mrb[0].mxu0
      %3896 = vmatprep.mubr.bf16.mxu0 0
      %3897 = vmatmul.mubr.bf16.gmra.mrb[0].mxu0 %v3763
      %v3898 = vpop.f32.mrb[0].mxu0
      %v3899 = vadd.f32 %v3798, %v3898
      %v3900 = vpop.f32.mrb[0].mxu0
      %v3901 = vpop.f32.mrb[0].mxu0
      %v3902 = vadd.f32 %v3798, %v3901
      %v3903 = vpop.f32.mrb[0].mxu0
      %3904 = vmatprep.mubr.bf16.mxu0 0
      %3905 = vmatmul.mubr.bf16.gmra.mrb[0].mxu0 %v3764
      %v3906 = vpop.f32.mrb[0].mxu0
      %v3907 = vadd.f32 %v3798, %v3906
      %v3908 = vpop.f32.mrb[0].mxu0
      %v3909 = vpop.f32.mrb[0].mxu0
      %v3910 = vadd.f32 %v3798, %v3909
      %v3911 = vpop.f32.mrb[0].mxu0
      %3912 = vmatprep.mubr.bf16.mxu0 0
      %3913 = vmatmul.mubr.bf16.gmra.mrb[0].mxu0 %v3765
      %v3914 = vpop.f32.mrb[0].mxu0
      %v3915 = vadd.f32 %v3798, %v3914
      %v3916 = vpop.f32.mrb[0].mxu0
      %v3917 = vpop.f32.mrb[0].mxu0
      %v3918 = vadd.f32 %v3798, %v3917
      %v3919 = vpop.f32.mrb[0].mxu0
      %3920 = vmatprep.mubr.bf16.mxu0 0
      %3921 = vmatmul.mubr.bf16.gmra.mrb[0].mxu0 %v3766
      %v3922 = vpop.f32.mrb[0].mxu0
      %v3923 = vadd.f32 %v3798, %v3922
      %v3924 = vpop.f32.mrb[0].mxu0
      %v3925 = vpop.f32.mrb[0].mxu0
      %v3926 = vadd.f32 %v3798, %v3925
      %v3927 = vpop.f32.mrb[0].mxu0
      %3928 = vmatprep.mubr.bf16.mxu0 0
      %3929 = vmatmul.mubr.bf16.gmra.mrb[0].mxu0 %v3767
      %v3930 = vpop.f32.mrb[0].mxu0
      %v3931 = vadd.f32 %v3798, %v3930
      %v3932 = vpop.f32.mrb[0].mxu0
      %v3933 = vpop.f32.mrb[0].mxu0
      %v3934 = vadd.f32 %v3798, %v3933
      %v3935 = vpop.f32.mrb[0].mxu0
      %3936 = vmatprep.mubr.bf16.mxu0 0
      %3937 = vmatmul.mubr.bf16.gmra.mrb[0].mxu0 %v3768
      %v3938 = vpop.f32.mrb[0].mxu0
      %v3939 = vadd.f32 %v3798, %v3938
      %v3940 = vpop.f32.mrb[0].mxu0
      %v3941 = vpop.f32.mrb[0].mxu0
      %v3942 = vadd.f32 %v3798, %v3941
      %v3943 = vpop.f32.mrb[0].mxu0
      %3944 = vmatprep.mubr.bf16.mxu0 0
      %3945 = vmatmul.mubr.bf16.gmra.mrb[0].mxu0 %v3769
      %v3946 = vpop.f32.mrb[0].mxu0
      %v3947 = vadd.f32 %v3798, %v3946
      %v3948 = vpop.f32.mrb[0].mxu0
      %v3949 = vpop.f32.mrb[0].mxu0
      %v3950 = vadd.f32 %v3798, %v3949
      %v3951 = vpop.f32.mrb[0].mxu0
      %3952 = vmatprep.mubr.bf16.mxu0 0
      %3953 = vmatmul.mubr.bf16.gmra.mrb[0].mxu0 %v3770
      %v3954 = vpop.f32.mrb[0].mxu0
      %v3955 = vadd.f32 %v3798, %v3954
      %v3956 = vpop.f32.mrb[0].mxu0
      %v3957 = vpop.f32.mrb[0].mxu0
      %v3958 = vadd.f32 %v3798, %v3957
      %v3959 = vpop.f32.mrb[0].mxu0
      %3960 = vmatprep.mubr.bf16.mxu0 0
      %3961 = vmatmul.mubr.bf16.gmra.mrb[0].mxu0 %v3771
      %v3962 = vpop.f32.mrb[0].mxu0
      %v3963 = vadd.f32 %v3798, %v3962
      %v3964 = vpop.f32.mrb[0].mxu0
      %v3965 = vpop.f32.mrb[0].mxu0
      %v3966 = vadd.f32 %v3798, %v3965
      %v3967 = vpop.f32.mrb[0].mxu0
      %3968 = vmatprep.mubr.bf16.mxu0 0
      %3969 = vmatmul.mubr.bf16.gmra.mrb[0].mxu0 %v3772
      %v3970 = vpop.f32.mrb[0].mxu0
      %v3971 = vadd.f32 %v3798, %v3970
      %v3972 = vpop.f32.mrb[0].mxu0
      %v3973 = vpop.f32.mrb[0].mxu0
      %v3974 = vadd.f32 %v3798, %v3973
      %v3975 = vpop.f32.mrb[0].mxu0
      %3976 = vmatprep.mubr.bf16.mxu0 0
      %3977 = vmatmul.mubr.bf16.gmra.mrb[0].mxu0 %v3773
      %v3978 = vpop.f32.mrb[0].mxu0
      %v3979 = vadd.f32 %v3798, %v3978
      %v3980 = vpop.f32.mrb[0].mxu0
      %v3981 = vpop.f32.mrb[0].mxu0
      %v3982 = vadd.f32 %v3798, %v3981
      %v3983 = vpop.f32.mrb[0].mxu0
      %3984 = vmatprep.mubr.bf16.mxu0 0
      %3985 = vmatmul.mubr.bf16.gmra.mrb[0].mxu0 %v3774
      %v3986 = vpop.f32.mrb[0].mxu0
      %v3987 = vadd.f32 %v3798, %v3986
      %v3988 = vpop.f32.mrb[0].mxu0
      %v3989 = vpop.f32.mrb[0].mxu0
      %v3990 = vadd.f32 %v3798, %v3989
      %v3991 = vpop.f32.mrb[0].mxu0
      %3992 = vmatprep.mubr.bf16.mxu0 0
      %3993 = vmatmul.mubr.bf16.gmra.mrb[0].mxu0 %v3775
      %v3994 = vpop.f32.mrb[0].mxu0
      %v3995 = vadd.f32 %v3798, %v3994
      %v3996 = vpop.f32.mrb[0].mxu0
      %v3997 = vpop.f32.mrb[0].mxu0
      %v3998 = vadd.f32 %v3798, %v3997
      %v3999 = vpop.f32.mrb[0].mxu0
      %4000 = vmatprep.mubr.bf16.mxu0 0
      %4001 = vmatmul.mubr.bf16.gmra.mrb[0].mxu0 %v3776
      %v4002 = vpop.f32.mrb[0].mxu0
      %v4003 = vadd.f32 %v3798, %v4002
      %v4004 = vpop.f32.mrb[0].mxu0
      %v4005 = vpop.f32.mrb[0].mxu0
      %v4006 = vadd.f32 %v3798, %v4005
      %v4007 = vpop.f32.mrb[0].mxu0
      %4008 = vdwg.mxu0
      %4009 = vst [vmem:[%s437] sm:$0xff] %v3883
      %4010 = vst [vmem:[%s437 + $0x8] sm:$0xff] %v3886
      %4011 = vst [vmem:[%s437 + $0x10] sm:$0xff] %v3891
      %4012 = vst [vmem:[%s437 + $0x18] sm:$0xff] %v3894
      %4013 = vst [vmem:[%s437 + $0x20] sm:$0xff] %v3899
      %4014 = vst [vmem:[%s437 + $0x28] sm:$0xff] %v3902
      %4015 = vst [vmem:[%s437 + $0x30] sm:$0xff] %v3907
      %4016 = vst [vmem:[%s437 + $0x38] sm:$0xff] %v3910
      %4017 = vst [vmem:[%s437 + $0x40] sm:$0xff] %v3915
      %4018 = vst [vmem:[%s437 + $0x48] sm:$0xff] %v3918
      %4019 = vst [vmem:[%s437 + $0x50] sm:$0xff] %v3923
      %4020 = vst [vmem:[%s437 + $0x58] sm:$0xff] %v3926
      %4021 = vst [vmem:[%s437 + $0x60] sm:$0xff] %v3931
      %4022 = vst [vmem:[%s437 + $0x68] sm:$0xff] %v3934
      %4023 = vst [vmem:[%s437 + $0x70] sm:$0xff] %v3939
      %4024 = vst [vmem:[%s437 + $0x78] sm:$0xff] %v3942
      %4025 = vst [vmem:[%s437 + $0x80] sm:$0xff] %v3947
      %4026 = vst [vmem:[%s437 + $0x88] sm:$0xff] %v3950
      %4027 = vst [vmem:[%s437 + $0x90] sm:$0xff] %v3955
      %4028 = vst [vmem:[%s437 + $0x98] sm:$0xff] %v3958
      %4029 = vst [vmem:[%s437 + $0xa0] sm:$0xff] %v3963
      %4030 = vst [vmem:[%s437 + $0xa8] sm:$0xff] %v3966
      %4031 = vst [vmem:[%s437 + $0xb0] sm:$0xff] %v3971
      %4032 = vst [vmem:[%s437 + $0xb8] sm:$0xff] %v3974
      %4033 = vst [vmem:[%s437 + $0xc0] sm:$0xff] %v3979
      %4034 = vst [vmem:[%s437 + $0xc8] sm:$0xff] %v3982
      %4035 = vst [vmem:[%s437 + $0xd0] sm:$0xff] %v3987
      %4036 = vst [vmem:[%s437 + $0xd8] sm:$0xff] %v3990
      %4037 = vst [vmem:[%s437 + $0xe0] sm:$0xff] %v3995
      %4038 = vst [vmem:[%s437 + $0xe8] sm:$0xff] %v3998
      %4039 = vst [vmem:[%s437 + $0xf0] sm:$0xff] %v4003
      %4040 = vst [vmem:[%s437 + $0xf8] sm:$0xff] %v4006
      %s4041 = smul.u32 32, %s23
      %p4042 = scmp.lt.s32.totalorder %s4041, 63
      %s4043 = scalar_select %p4042, %s4041, 63
      %s4044 = smul.addr %s4043, 8
      %s4045 = scalar_lea.vmem %s12, %s4044
      // Predicated region
      $region69: #{als_forward.1} parent=67 // pred_check
        %p4046 = pneg %p303
      $region70: #{als_forward.1} parent=67 // pred_check_branch
        %4048 = sbr.rel (%p4046) target = $region72
      $region71: #{als_forward.1} parent=67 // pred_region
        %s4049 = smul.u32 32, %s23
      $region72: #{als_forward.1} parent=67 // pred_fallthru
        _
    $region68: #{als_forward.1} parent=5 // pred_fallthru
      _
    %p4050 = scmp.le.s32.totalorder 2, %s18
    // Predicated region
    $region73: #{als_forward.1} parent=5 // pred_check
      %p4051 = pneg %p4050
    $region74: #{als_forward.1} parent=5 // pred_check_branch
      %4053 = sbr.rel (%p4051) target = $region76
    $region75: #{als_forward.1} parent=5 // pred_region
      %s4054 = ssub.s32 %s18, 2
      // Predicated region
      $region77: #{als_forward.1} parent=75 // pred_check
        %p4055 = pneg %p309
      $region78: #{als_forward.1} parent=75 // pred_check_branch
        %4057 = sbr.rel (%p4055) target = $region80
      $region79: #{als_forward.1} parent=75 // pred_region
        %s4058 = smul.u32 32, %s24
        %p4059 = scmp.lt.s32.totalorder %s4058, 63
        %s4060 = scalar_select %p4059, %s4058, 63
        %s4061 = smul.addr %s4060, 8
        %s4062 = scalar_lea.vmem %s12, %s4061
      $region80: #{als_forward.1} parent=75 // pred_fallthru
        _
    $region76: #{als_forward.1} parent=5 // pred_fallthru
      _
  $region6: #{als_forward.1} parent=0 // loop_footer
    %s22 = sadd.s32 1, %s18
  $region7: #{als_forward.1} parent=0 // loop_footer_branch
    %17 = sbr.rel target = $region3
  $region8: #{als_forward.1} parent=0 // loop_exit
    _

</llo_original>
